<compile_context>
chip_gen: v7x
topology: tpu7x:2x2x1
jax: 0.10.0
libtpu: 0.0.40
codegen_flags: <defaults>
</compile_context>

<pallas_src>
import functools

import jax
import jax.numpy as jnp
from jax import lax
from jax.experimental import pallas as pl
from jax.experimental.pallas import tpu as pltpu


def _fused_pixel_attention_kernel(x_ref, masks_ref, w1_ref, b1_ref,
                                  w2_ref, b2_ref, o_ref, *, H, W):
    """Fused conv3x3+ReLU -> conv3x3+Sigmoid for one batch element.

    Layouts (channels on sublanes, flattened spatial on lanes):
      x_ref    : (1, Cin,  H*W)   storage dtype (f32 or bf16)
      masks_ref: (4, H*W)         0/1 boundary masks, storage dtype
      w1_ref   : (9, Cmid, Cin)   tap-major, MXU-ready (lane dim = Cin)
      b1_ref   : (Cmid, 1)        f32
      w2_ref   : (Cmid, 9)        per-channel tap weights (lane dim = 9)
      b2_ref   : (1, 1)           f32
      o_ref    : (1, 1, H*W)      lane-dense output
    """
    HW = H * W
    cmid = w1_ref.shape[1]

    x = x_ref[0]                                          # (Cin, HW), no upcast

    # Full f32 MXU accuracy for f32 storage; bf16 inputs use the native path.
    precision = (lax.Precision.HIGHEST if x.dtype == jnp.float32
                 else lax.Precision.DEFAULT)

    # Boundary masks (precomputed in the wrapper): 0/1 in storage dtype, plus
    # f32 copies for the f32 intermediate h.
    m_up_x = masks_ref[0:1, :]     # reading row-1 valid (dy = -1)
    m_dn_x = masks_ref[1:2, :]     # reading row+1 valid (dy = +1)
    m_lf_x = masks_ref[2:3, :]     # reading col-1 valid (dx = -1)
    m_rt_x = masks_ref[3:4, :]     # reading col+1 valid (dx = +1)
    m_up_f = m_up_x.astype(jnp.float32)
    m_dn_f = m_dn_x.astype(jnp.float32)
    m_lf_f = m_lf_x.astype(jnp.float32)
    m_rt_f = m_rt_x.astype(jnp.float32)

    def row_shift(v, dy, m_up, m_dn):
        """Lane f of result = v[.., f + dy*W]; zero where source row is off-image."""
        if dy == -1:
            return pltpu.roll(v, W, axis=1) * m_up
        if dy == 1:
            return pltpu.roll(v, HW - W, axis=1) * m_dn
        return v

    def col_shift(v, dx, m_lf, m_rt):
        """Lane f of result = v[.., f + dx]; zero where source col is off-image."""
        if dx == -1:
            return pltpu.roll(v, 1, axis=1) * m_lf
        if dx == 1:
            return pltpu.roll(v, HW - 1, axis=1) * m_rt
        return v

    # ---- conv1 (3x3, Cin -> Cmid) + ReLU: 9 accumulating MXU dots ----------
    acc1 = jnp.zeros((cmid, HW), jnp.float32)
    for dy in (-1, 0, 1):
        vr = row_shift(x, dy, m_up_x, m_dn_x)             # shared across 3 dx taps
        for dx in (-1, 0, 1):
            t = (dy + 1) * 3 + (dx + 1)                   # HWIO tap order ky*3+kx
            vt = col_shift(vr, dx, m_lf_x, m_rt_x)        # (Cin, HW)
            acc1 = acc1 + jnp.dot(w1_ref[t], vt,
                                  precision=precision,
                                  preferred_element_type=jnp.float32)
    h = jnp.maximum(acc1 + b1_ref[...].astype(jnp.float32), 0.0)   # (Cmid, HW)

    # ---- conv2 (3x3, Cmid -> 1) + Sigmoid: tiny, stays on the VPU ----------
    acc2 = jnp.zeros((cmid, HW), jnp.float32)
    for dy in (-1, 0, 1):
        vr = row_shift(h, dy, m_up_f, m_dn_f)
        for dx in (-1, 0, 1):
            t = (dy + 1) * 3 + (dx + 1)
            vt = col_shift(vr, dx, m_lf_f, m_rt_f)        # (Cmid, HW) f32
            wcol = w2_ref[:, t:t + 1].astype(jnp.float32) # (Cmid, 1) lane-bcast
            acc2 = acc2 + wcol * vt
    pre = jnp.sum(acc2, axis=0, keepdims=True) + b2_ref[...].astype(jnp.float32)
    o_ref[0] = jax.nn.sigmoid(pre).astype(o_ref.dtype)


def _prep_w1(w_hwio, dtype):
    """(3,3,Cin,Cmid) HWIO -> (9, Cmid, Cin): tap-major, MXU-oriented, lane-dense."""
    kh, kw, ci, co = w_hwio.shape
    assert (kh, kw) == (3, 3)
    return jnp.transpose(w_hwio.reshape(9, ci, co), (0, 2, 1)).astype(dtype)


def _prep_w2(w_hwio, dtype):
    """(3,3,Cmid,1) HWIO -> (Cmid, 9): per-channel tap columns, lane-dense."""
    kh, kw, ci, co = w_hwio.shape
    assert (kh, kw) == (3, 3) and co == 1
    return jnp.transpose(w_hwio.reshape(9, ci), (1, 0)).astype(dtype)


def _boundary_masks(H, W, dtype):
    """(4, H*W) 0/1 masks: [row>=1, row<=H-2, col>=1, col<=W-2]."""
    pos = jnp.arange(H * W, dtype=jnp.int32)
    row = pos // W
    col = pos % W
    m = jnp.stack([row >= 1, row <= H - 2, col >= 1, col <= W - 2], axis=0)
    return m.astype(dtype)


def pixel_attention(x_nchw, params):
    """PixelAttentionModule.forward. Input NCHW, output NCHW (N, 1, H, W)."""
    N, C, H, W = x_nchw.shape
    HW = H * W
    dtype = x_nchw.dtype

    w1 = _prep_w1(params["w1"], dtype)                    # (9, Cmid, Cin)
    w2 = _prep_w2(params["w2"], dtype)                    # (Cmid, 9)
    cmid = w1.shape[1]
    b1 = params["b1"].reshape(cmid, 1).astype(jnp.float32)
    b2 = params["b2"].reshape(1, 1).astype(jnp.float32)
    masks = _boundary_masks(H, W, dtype)                  # (4, HW), compile-time const

    x_flat = x_nchw.reshape(N, C, HW)                     # free reshape (no transpose)

    kernel = functools.partial(_fused_pixel_attention_kernel, H=H, W=W)
    out = pl.pallas_call(
        kernel,
        out_shape=jax.ShapeDtypeStruct((N, 1, HW), dtype),
        grid=(N,),
        in_specs=[
            pl.BlockSpec((1, C, HW), lambda n: (n, 0, 0)),
            pl.BlockSpec((4, HW), lambda n: (0, 0)),
            pl.BlockSpec((9, cmid, C), lambda n: (0, 0, 0)),
            pl.BlockSpec((cmid, 1), lambda n: (0, 0)),
            pl.BlockSpec((cmid, 9), lambda n: (0, 0)),
            pl.BlockSpec((1, 1), lambda n: (0, 0)),
        ],
        out_specs=pl.BlockSpec((1, 1, HW), lambda n: (n, 0, 0)),
        compiler_params=pltpu.CompilerParams(
            dimension_semantics=("parallel",),            # batch across TCs
        ),
    )(x_flat, masks, w1, b1, w2, b2)
    return out.reshape(N, 1, H, W)


def _reference(x_nchw, params):
    """Pure-JAX reference (lax.conv) for correctness checking."""
    x = jnp.transpose(x_nchw, (0, 2, 3, 1))
    dn = ("NHWC", "HWIO", "NHWC")
    h = lax.conv_general_dilated(x, params["w1"], (1, 1), "SAME",
                                 dimension_numbers=dn,
                                 precision=lax.Precision.HIGHEST) + params["b1"]
    h = jnp.maximum(h, 0.0)
    a = lax.conv_general_dilated(h, params["w2"], (1, 1), "SAME",
                                 dimension_numbers=dn,
                                 precision=lax.Precision.HIGHEST) + params["b2"]
    a = jax.nn.sigmoid(a)
    return jnp.transpose(a, (0, 3, 1, 2))


if __name__ == "__main__":
    N, C, H, W = 2, 4, 16, 16
    Cmid = C // 2  # 2

    key = jax.random.PRNGKey(0)
    kx, k1, k2, k3, k4 = jax.random.split(key, 5)

    x = jax.random.normal(kx, (N, C, H, W), dtype=jnp.float32)

    # Deterministic synthetic parameters (HWIO weights, 1-D biases).
    params = {
        "w1": jax.random.normal(k1, (3, 3, C, Cmid), dtype=jnp.float32) * 0.2,
        "b1": jax.random.normal(k2, (Cmid,), dtype=jnp.float32) * 0.1,
        "w2": jax.random.normal(k3, (3, 3, Cmid, 1), dtype=jnp.float32) * 0.2,
        "b2": jax.random.normal(k4, (1,), dtype=jnp.float32) * 0.1,
    }

    out = jax.block_until_ready(jax.jit(pixel_attention)(x, params))
    assert out.shape == (N, 1, H, W), out.shape

    ref = jax.block_until_ready(_reference(x, params))
    assert jnp.allclose(out, ref, atol=1e-4, rtol=1e-4), (
        float(jnp.max(jnp.abs(out - ref))))

    print("KERNEL_OK")
</pallas_src>

<mosaic_0001>
module attributes {stable_mosaic.version = 11 : i64} {
  func.func @_fused_pixel_attention_kernel(%arg0: i32, %arg1: memref<1x4x256xf32, #tpu.memory_space<vmem>>, %arg2: memref<4x256xf32, #tpu.memory_space<vmem>>, %arg3: memref<9x2x4xf32, #tpu.memory_space<vmem>>, %arg4: memref<2x1xf32, #tpu.memory_space<vmem>>, %arg5: memref<2x9xf32, #tpu.memory_space<vmem>>, %arg6: memref<1x1xf32, #tpu.memory_space<vmem>>, %arg7: memref<1x1x256xf32, #tpu.memory_space<vmem>>) attributes {dimension_semantics = [#tpu.dimension_semantics<parallel>], iteration_bounds = array<i64: 2>, scalar_prefetch = 0 : i64, scratch_operands = 0 : i64, tpu.core_type = #tpu.core_type<tc>, window_params = [{transform_indices = @transform_0, window_bounds = array<i64: 1, 4, 256>}, {pipeline_mode = #tpu.pipeline_mode<synchronous>, transform_indices = @transform_1, window_bounds = array<i64: 4, 256>}, {pipeline_mode = #tpu.pipeline_mode<synchronous>, transform_indices = @transform_2, window_bounds = array<i64: 9, 2, 4>}, {pipeline_mode = #tpu.pipeline_mode<synchronous>, transform_indices = @transform_3, window_bounds = array<i64: 2, 1>}, {pipeline_mode = #tpu.pipeline_mode<synchronous>, transform_indices = @transform_4, window_bounds = array<i64: 2, 9>}, {pipeline_mode = #tpu.pipeline_mode<synchronous>, transform_indices = @transform_5, window_bounds = array<i64: 1, 1>}, {transform_indices = @transform_6, window_bounds = array<i64: 1, 1, 256>}]} {
    %c0 = arith.constant 0 : index
    %c0_0 = arith.constant 0 : index
    %c0_1 = arith.constant 0 : index
    %0 = vector.load %arg1[%c0, %c0_0, %c0_1] : memref<1x4x256xf32, #tpu.memory_space<vmem>>, vector<1x4x256xf32>
    %1 = vector.shape_cast %0 : vector<1x4x256xf32> to vector<4x256xf32>
    %c0_2 = arith.constant 0 : index
    %c0_3 = arith.constant 0 : index
    %2 = vector.load %arg2[%c0_2, %c0_3] : memref<4x256xf32, #tpu.memory_space<vmem>>, vector<1x256xf32>
    %c1 = arith.constant 1 : index
    %c0_4 = arith.constant 0 : index
    %3 = vector.load %arg2[%c1, %c0_4] : memref<4x256xf32, #tpu.memory_space<vmem>>, vector<1x256xf32>
    %c2 = arith.constant 2 : index
    %c0_5 = arith.constant 0 : index
    %4 = vector.load %arg2[%c2, %c0_5] : memref<4x256xf32, #tpu.memory_space<vmem>>, vector<1x256xf32>
    %c3 = arith.constant 3 : index
    %c0_6 = arith.constant 0 : index
    %5 = vector.load %arg2[%c3, %c0_6] : memref<4x256xf32, #tpu.memory_space<vmem>>, vector<1x256xf32>
    %cst = arith.constant 0.000000e+00 : f32
    %6 = vector.broadcast %cst : f32 to vector<2x256xf32>
    %c16_i32 = arith.constant 16 : i32
    %7 = tpu.dynamic_rotate %1 by %c16_i32 dim 1 : vector<4x256xf32>, i32 -> vector<4x256xf32>
    %8 = vector.broadcast %2 : vector<1x256xf32> to vector<4x256xf32>
    %9 = arith.mulf %7, %8 : vector<4x256xf32>
    %c1_i32 = arith.constant 1 : i32
    %10 = tpu.dynamic_rotate %9 by %c1_i32 dim 1 : vector<4x256xf32>, i32 -> vector<4x256xf32>
    %11 = vector.broadcast %4 : vector<1x256xf32> to vector<4x256xf32>
    %12 = arith.mulf %10, %11 : vector<4x256xf32>
    %c0_7 = arith.constant 0 : index
    %c0_8 = arith.constant 0 : index
    %c0_9 = arith.constant 0 : index
    %13 = vector.load %arg3[%c0_7, %c0_8, %c0_9] : memref<9x2x4xf32, #tpu.memory_space<vmem>>, vector<1x2x4xf32>
    %14 = vector.shape_cast %13 : vector<1x2x4xf32> to vector<2x4xf32>
    %cst_10 = arith.constant dense<0.000000e+00> : vector<2x256xf32>
    %15 = tpu.matmul %14, %12, %cst_10 {dimension_numbers = #tpu.dot_dimension_numbers<[1], [0], [0], [1], [0, 0, 1, 1], [], []>, precision = #tpu.contract_precision<fp32>} : vector<2x4xf32>, vector<4x256xf32>, vector<2x256xf32> -> vector<2x256xf32>
    %16 = arith.addf %6, %15 : vector<2x256xf32>
    %c1_11 = arith.constant 1 : index
    %c0_12 = arith.constant 0 : index
    %c0_13 = arith.constant 0 : index
    %17 = vector.load %arg3[%c1_11, %c0_12, %c0_13] : memref<9x2x4xf32, #tpu.memory_space<vmem>>, vector<1x2x4xf32>
    %18 = vector.shape_cast %17 : vector<1x2x4xf32> to vector<2x4xf32>
    %cst_14 = arith.constant dense<0.000000e+00> : vector<2x256xf32>
    %19 = tpu.matmul %18, %9, %cst_14 {dimension_numbers = #tpu.dot_dimension_numbers<[1], [0], [0], [1], [0, 0, 1, 1], [], []>, precision = #tpu.contract_precision<fp32>} : vector<2x4xf32>, vector<4x256xf32>, vector<2x256xf32> -> vector<2x256xf32>
    %20 = arith.addf %16, %19 : vector<2x256xf32>
    %c255_i32 = arith.constant 255 : i32
    %21 = tpu.dynamic_rotate %9 by %c255_i32 dim 1 : vector<4x256xf32>, i32 -> vector<4x256xf32>
    %22 = vector.broadcast %5 : vector<1x256xf32> to vector<4x256xf32>
    %23 = arith.mulf %21, %22 : vector<4x256xf32>
    %c2_15 = arith.constant 2 : index
    %c0_16 = arith.constant 0 : index
    %c0_17 = arith.constant 0 : index
    %24 = vector.load %arg3[%c2_15, %c0_16, %c0_17] : memref<9x2x4xf32, #tpu.memory_space<vmem>>, vector<1x2x4xf32>
    %25 = vector.shape_cast %24 : vector<1x2x4xf32> to vector<2x4xf32>
    %cst_18 = arith.constant dense<0.000000e+00> : vector<2x256xf32>
    %26 = tpu.matmul %25, %23, %cst_18 {dimension_numbers = #tpu.dot_dimension_numbers<[1], [0], [0], [1], [0, 0, 1, 1], [], []>, precision = #tpu.contract_precision<fp32>} : vector<2x4xf32>, vector<4x256xf32>, vector<2x256xf32> -> vector<2x256xf32>
    %27 = arith.addf %20, %26 : vector<2x256xf32>
    %c1_i32_19 = arith.constant 1 : i32
    %28 = tpu.dynamic_rotate %1 by %c1_i32_19 dim 1 : vector<4x256xf32>, i32 -> vector<4x256xf32>
    %29 = vector.broadcast %4 : vector<1x256xf32> to vector<4x256xf32>
    %30 = arith.mulf %28, %29 : vector<4x256xf32>
    %c3_20 = arith.constant 3 : index
    %c0_21 = arith.constant 0 : index
    %c0_22 = arith.constant 0 : index
    %31 = vector.load %arg3[%c3_20, %c0_21, %c0_22] : memref<9x2x4xf32, #tpu.memory_space<vmem>>, vector<1x2x4xf32>
    %32 = vector.shape_cast %31 : vector<1x2x4xf32> to vector<2x4xf32>
    %cst_23 = arith.constant dense<0.000000e+00> : vector<2x256xf32>
    %33 = tpu.matmul %32, %30, %cst_23 {dimension_numbers = #tpu.dot_dimension_numbers<[1], [0], [0], [1], [0, 0, 1, 1], [], []>, precision = #tpu.contract_precision<fp32>} : vector<2x4xf32>, vector<4x256xf32>, vector<2x256xf32> -> vector<2x256xf32>
    %34 = arith.addf %27, %33 : vector<2x256xf32>
    %c4 = arith.constant 4 : index
    %c0_24 = arith.constant 0 : index
    %c0_25 = arith.constant 0 : index
    %35 = vector.load %arg3[%c4, %c0_24, %c0_25] : memref<9x2x4xf32, #tpu.memory_space<vmem>>, vector<1x2x4xf32>
    %36 = vector.shape_cast %35 : vector<1x2x4xf32> to vector<2x4xf32>
    %cst_26 = arith.constant dense<0.000000e+00> : vector<2x256xf32>
    %37 = tpu.matmul %36, %1, %cst_26 {dimension_numbers = #tpu.dot_dimension_numbers<[1], [0], [0], [1], [0, 0, 1, 1], [], []>, precision = #tpu.contract_precision<fp32>} : vector<2x4xf32>, vector<4x256xf32>, vector<2x256xf32> -> vector<2x256xf32>
    %38 = arith.addf %34, %37 : vector<2x256xf32>
    %c255_i32_27 = arith.constant 255 : i32
    %39 = tpu.dynamic_rotate %1 by %c255_i32_27 dim 1 : vector<4x256xf32>, i32 -> vector<4x256xf32>
    %40 = vector.broadcast %5 : vector<1x256xf32> to vector<4x256xf32>
    %41 = arith.mulf %39, %40 : vector<4x256xf32>
    %c5 = arith.constant 5 : index
    %c0_28 = arith.constant 0 : index
    %c0_29 = arith.constant 0 : index
    %42 = vector.load %arg3[%c5, %c0_28, %c0_29] : memref<9x2x4xf32, #tpu.memory_space<vmem>>, vector<1x2x4xf32>
    %43 = vector.shape_cast %42 : vector<1x2x4xf32> to vector<2x4xf32>
    %cst_30 = arith.constant dense<0.000000e+00> : vector<2x256xf32>
    %44 = tpu.matmul %43, %41, %cst_30 {dimension_numbers = #tpu.dot_dimension_numbers<[1], [0], [0], [1], [0, 0, 1, 1], [], []>, precision = #tpu.contract_precision<fp32>} : vector<2x4xf32>, vector<4x256xf32>, vector<2x256xf32> -> vector<2x256xf32>
    %45 = arith.addf %38, %44 : vector<2x256xf32>
    %c240_i32 = arith.constant 240 : i32
    %46 = tpu.dynamic_rotate %1 by %c240_i32 dim 1 : vector<4x256xf32>, i32 -> vector<4x256xf32>
    %47 = vector.broadcast %3 : vector<1x256xf32> to vector<4x256xf32>
    %48 = arith.mulf %46, %47 : vector<4x256xf32>
    %c1_i32_31 = arith.constant 1 : i32
    %49 = tpu.dynamic_rotate %48 by %c1_i32_31 dim 1 : vector<4x256xf32>, i32 -> vector<4x256xf32>
    %50 = vector.broadcast %4 : vector<1x256xf32> to vector<4x256xf32>
    %51 = arith.mulf %49, %50 : vector<4x256xf32>
    %c6 = arith.constant 6 : index
    %c0_32 = arith.constant 0 : index
    %c0_33 = arith.constant 0 : index
    %52 = vector.load %arg3[%c6, %c0_32, %c0_33] : memref<9x2x4xf32, #tpu.memory_space<vmem>>, vector<1x2x4xf32>
    %53 = vector.shape_cast %52 : vector<1x2x4xf32> to vector<2x4xf32>
    %cst_34 = arith.constant dense<0.000000e+00> : vector<2x256xf32>
    %54 = tpu.matmul %53, %51, %cst_34 {dimension_numbers = #tpu.dot_dimension_numbers<[1], [0], [0], [1], [0, 0, 1, 1], [], []>, precision = #tpu.contract_precision<fp32>} : vector<2x4xf32>, vector<4x256xf32>, vector<2x256xf32> -> vector<2x256xf32>
    %55 = arith.addf %45, %54 : vector<2x256xf32>
    %c7 = arith.constant 7 : index
    %c0_35 = arith.constant 0 : index
    %c0_36 = arith.constant 0 : index
    %56 = vector.load %arg3[%c7, %c0_35, %c0_36] : memref<9x2x4xf32, #tpu.memory_space<vmem>>, vector<1x2x4xf32>
    %57 = vector.shape_cast %56 : vector<1x2x4xf32> to vector<2x4xf32>
    %cst_37 = arith.constant dense<0.000000e+00> : vector<2x256xf32>
    %58 = tpu.matmul %57, %48, %cst_37 {dimension_numbers = #tpu.dot_dimension_numbers<[1], [0], [0], [1], [0, 0, 1, 1], [], []>, precision = #tpu.contract_precision<fp32>} : vector<2x4xf32>, vector<4x256xf32>, vector<2x256xf32> -> vector<2x256xf32>
    %59 = arith.addf %55, %58 : vector<2x256xf32>
    %c255_i32_38 = arith.constant 255 : i32
    %60 = tpu.dynamic_rotate %48 by %c255_i32_38 dim 1 : vector<4x256xf32>, i32 -> vector<4x256xf32>
    %61 = vector.broadcast %5 : vector<1x256xf32> to vector<4x256xf32>
    %62 = arith.mulf %60, %61 : vector<4x256xf32>
    %c8 = arith.constant 8 : index
    %c0_39 = arith.constant 0 : index
    %c0_40 = arith.constant 0 : index
    %63 = vector.load %arg3[%c8, %c0_39, %c0_40] : memref<9x2x4xf32, #tpu.memory_space<vmem>>, vector<1x2x4xf32>
    %64 = vector.shape_cast %63 : vector<1x2x4xf32> to vector<2x4xf32>
    %cst_41 = arith.constant dense<0.000000e+00> : vector<2x256xf32>
    %65 = tpu.matmul %64, %62, %cst_41 {dimension_numbers = #tpu.dot_dimension_numbers<[1], [0], [0], [1], [0, 0, 1, 1], [], []>, precision = #tpu.contract_precision<fp32>} : vector<2x4xf32>, vector<4x256xf32>, vector<2x256xf32> -> vector<2x256xf32>
    %66 = arith.addf %59, %65 : vector<2x256xf32>
    %c0_42 = arith.constant 0 : index
    %c0_43 = arith.constant 0 : index
    %67 = vector.load %arg4[%c0_42, %c0_43] : memref<2x1xf32, #tpu.memory_space<vmem>>, vector<2x1xf32>
    %68 = vector.broadcast %67 : vector<2x1xf32> to vector<2x256xf32>
    %69 = arith.addf %66, %68 : vector<2x256xf32>
    %cst_44 = arith.constant 0.000000e+00 : f32
    %70 = vector.broadcast %cst_44 : f32 to vector<2x256xf32>
    %71 = arith.maximumf %69, %70 : vector<2x256xf32>
    %cst_45 = arith.constant 0.000000e+00 : f32
    %72 = vector.broadcast %cst_45 : f32 to vector<2x256xf32>
    %c16_i32_46 = arith.constant 16 : i32
    %73 = tpu.dynamic_rotate %71 by %c16_i32_46 dim 1 : vector<2x256xf32>, i32 -> vector<2x256xf32>
    %74 = vector.broadcast %2 : vector<1x256xf32> to vector<2x256xf32>
    %75 = arith.mulf %73, %74 : vector<2x256xf32>
    %c1_i32_47 = arith.constant 1 : i32
    %76 = tpu.dynamic_rotate %75 by %c1_i32_47 dim 1 : vector<2x256xf32>, i32 -> vector<2x256xf32>
    %77 = vector.broadcast %4 : vector<1x256xf32> to vector<2x256xf32>
    %78 = arith.mulf %76, %77 : vector<2x256xf32>
    %c0_48 = arith.constant 0 : index
    %c0_49 = arith.constant 0 : index
    %79 = vector.load %arg5[%c0_48, %c0_49] : memref<2x9xf32, #tpu.memory_space<vmem>>, vector<2x1xf32>
    %80 = vector.broadcast %79 : vector<2x1xf32> to vector<2x256xf32>
    %81 = arith.mulf %80, %78 : vector<2x256xf32>
    %82 = arith.addf %72, %81 : vector<2x256xf32>
    %c0_50 = arith.constant 0 : index
    %c1_51 = arith.constant 1 : index
    %83 = vector.load %arg5[%c0_50, %c1_51] : memref<2x9xf32, #tpu.memory_space<vmem>>, vector<2x1xf32>
    %84 = vector.broadcast %83 : vector<2x1xf32> to vector<2x256xf32>
    %85 = arith.mulf %84, %75 : vector<2x256xf32>
    %86 = arith.addf %82, %85 : vector<2x256xf32>
    %c255_i32_52 = arith.constant 255 : i32
    %87 = tpu.dynamic_rotate %75 by %c255_i32_52 dim 1 : vector<2x256xf32>, i32 -> vector<2x256xf32>
    %88 = vector.broadcast %5 : vector<1x256xf32> to vector<2x256xf32>
    %89 = arith.mulf %87, %88 : vector<2x256xf32>
    %c0_53 = arith.constant 0 : index
    %c2_54 = arith.constant 2 : index
    %90 = vector.load %arg5[%c0_53, %c2_54] : memref<2x9xf32, #tpu.memory_space<vmem>>, vector<2x1xf32>
    %91 = vector.broadcast %90 : vector<2x1xf32> to vector<2x256xf32>
    %92 = arith.mulf %91, %89 : vector<2x256xf32>
    %93 = arith.addf %86, %92 : vector<2x256xf32>
    %c1_i32_55 = arith.constant 1 : i32
    %94 = tpu.dynamic_rotate %71 by %c1_i32_55 dim 1 : vector<2x256xf32>, i32 -> vector<2x256xf32>
    %95 = vector.broadcast %4 : vector<1x256xf32> to vector<2x256xf32>
    %96 = arith.mulf %94, %95 : vector<2x256xf32>
    %c0_56 = arith.constant 0 : index
    %c3_57 = arith.constant 3 : index
    %97 = vector.load %arg5[%c0_56, %c3_57] : memref<2x9xf32, #tpu.memory_space<vmem>>, vector<2x1xf32>
    %98 = vector.broadcast %97 : vector<2x1xf32> to vector<2x256xf32>
    %99 = arith.mulf %98, %96 : vector<2x256xf32>
    %100 = arith.addf %93, %99 : vector<2x256xf32>
    %c0_58 = arith.constant 0 : index
    %c4_59 = arith.constant 4 : index
    %101 = vector.load %arg5[%c0_58, %c4_59] : memref<2x9xf32, #tpu.memory_space<vmem>>, vector<2x1xf32>
    %102 = vector.broadcast %101 : vector<2x1xf32> to vector<2x256xf32>
    %103 = arith.mulf %102, %71 : vector<2x256xf32>
    %104 = arith.addf %100, %103 : vector<2x256xf32>
    %c255_i32_60 = arith.constant 255 : i32
    %105 = tpu.dynamic_rotate %71 by %c255_i32_60 dim 1 : vector<2x256xf32>, i32 -> vector<2x256xf32>
    %106 = vector.broadcast %5 : vector<1x256xf32> to vector<2x256xf32>
    %107 = arith.mulf %105, %106 : vector<2x256xf32>
    %c0_61 = arith.constant 0 : index
    %c5_62 = arith.constant 5 : index
    %108 = vector.load %arg5[%c0_61, %c5_62] : memref<2x9xf32, #tpu.memory_space<vmem>>, vector<2x1xf32>
    %109 = vector.broadcast %108 : vector<2x1xf32> to vector<2x256xf32>
    %110 = arith.mulf %109, %107 : vector<2x256xf32>
    %111 = arith.addf %104, %110 : vector<2x256xf32>
    %c240_i32_63 = arith.constant 240 : i32
    %112 = tpu.dynamic_rotate %71 by %c240_i32_63 dim 1 : vector<2x256xf32>, i32 -> vector<2x256xf32>
    %113 = vector.broadcast %3 : vector<1x256xf32> to vector<2x256xf32>
    %114 = arith.mulf %112, %113 : vector<2x256xf32>
    %c1_i32_64 = arith.constant 1 : i32
    %115 = tpu.dynamic_rotate %114 by %c1_i32_64 dim 1 : vector<2x256xf32>, i32 -> vector<2x256xf32>
    %116 = vector.broadcast %4 : vector<1x256xf32> to vector<2x256xf32>
    %117 = arith.mulf %115, %116 : vector<2x256xf32>
    %c0_65 = arith.constant 0 : index
    %c6_66 = arith.constant 6 : index
    %118 = vector.load %arg5[%c0_65, %c6_66] : memref<2x9xf32, #tpu.memory_space<vmem>>, vector<2x1xf32>
    %119 = vector.broadcast %118 : vector<2x1xf32> to vector<2x256xf32>
    %120 = arith.mulf %119, %117 : vector<2x256xf32>
    %121 = arith.addf %111, %120 : vector<2x256xf32>
    %c0_67 = arith.constant 0 : index
    %c7_68 = arith.constant 7 : index
    %122 = vector.load %arg5[%c0_67, %c7_68] : memref<2x9xf32, #tpu.memory_space<vmem>>, vector<2x1xf32>
    %123 = vector.broadcast %122 : vector<2x1xf32> to vector<2x256xf32>
    %124 = arith.mulf %123, %114 : vector<2x256xf32>
    %125 = arith.addf %121, %124 : vector<2x256xf32>
    %c255_i32_69 = arith.constant 255 : i32
    %126 = tpu.dynamic_rotate %114 by %c255_i32_69 dim 1 : vector<2x256xf32>, i32 -> vector<2x256xf32>
    %127 = vector.broadcast %5 : vector<1x256xf32> to vector<2x256xf32>
    %128 = arith.mulf %126, %127 : vector<2x256xf32>
    %c0_70 = arith.constant 0 : index
    %c8_71 = arith.constant 8 : index
    %129 = vector.load %arg5[%c0_70, %c8_71] : memref<2x9xf32, #tpu.memory_space<vmem>>, vector<2x1xf32>
    %130 = vector.broadcast %129 : vector<2x1xf32> to vector<2x256xf32>
    %131 = arith.mulf %130, %128 : vector<2x256xf32>
    %132 = arith.addf %125, %131 : vector<2x256xf32>
    %cst_72 = arith.constant dense<0.000000e+00> : vector<256xf32>
    %133 = vector.multi_reduction <add>, %132, %cst_72 [0] : vector<2x256xf32> to vector<256xf32>
    %134 = vector.shape_cast %133 : vector<256xf32> to vector<1x256xf32>
    %c0_73 = arith.constant 0 : index
    %c0_74 = arith.constant 0 : index
    %135 = vector.load %arg6[%c0_73, %c0_74] : memref<1x1xf32, #tpu.memory_space<vmem>>, vector<1x1xf32>
    %136 = vector.broadcast %135 : vector<1x1xf32> to vector<1x256xf32>
    %137 = arith.addf %134, %136 : vector<1x256xf32>
    %138 = arith.negf %137 : vector<1x256xf32>
    %139 = math.exp %138 : vector<1x256xf32>
    %cst_75 = arith.constant 1.000000e+00 : f32
    %140 = vector.broadcast %cst_75 : f32 to vector<1x256xf32>
    %141 = arith.addf %140, %139 : vector<1x256xf32>
    %142 = arith.divf %140, %141 : vector<1x256xf32>
    %c0_76 = arith.constant 0 : index
    %c0_77 = arith.constant 0 : index
    %c0_78 = arith.constant 0 : index
    %143 = vector.load %arg7[%c0_76, %c0_77, %c0_78] : memref<1x1x256xf32, #tpu.memory_space<vmem>>, vector<1x1x256xf32>
    %144 = vector.shape_cast %143 : vector<1x1x256xf32> to vector<1x256xf32>
    %145 = vector.shape_cast %142 : vector<1x256xf32> to vector<1x1x256xf32>
    tpu.vector_store %arg7[%c0_76, %c0_77, %c0_78], %145 {strides = array<i32>} : memref<1x1x256xf32, #tpu.memory_space<vmem>>, vector<1x1x256xf32>,
    return
  }
  func.func @transform_0(%arg0: i32) -> (i32, i32, i32) {
    %c0_i32 = arith.constant 0 : i32
    %c0_i32_0 = arith.constant 0 : i32
    %c0_i32_1 = arith.constant 0 : i32
    return %arg0, %c0_i32, %c0_i32_0 : i32, i32, i32
  }
  func.func @transform_1(%arg0: i32) -> (i32, i32) {
    %c0_i32 = arith.constant 0 : i32
    %c0_i32_0 = arith.constant 0 : i32
    %c0_i32_1 = arith.constant 0 : i32
    return %c0_i32, %c0_i32_0 : i32, i32
  }
  func.func @transform_2(%arg0: i32) -> (i32, i32, i32) {
    %c0_i32 = arith.constant 0 : i32
    %c0_i32_0 = arith.constant 0 : i32
    %c0_i32_1 = arith.constant 0 : i32
    %c0_i32_2 = arith.constant 0 : i32
    return %c0_i32, %c0_i32_0, %c0_i32_1 : i32, i32, i32
  }
  func.func @transform_3(%arg0: i32) -> (i32, i32) {
    %c0_i32 = arith.constant 0 : i32
    %c0_i32_0 = arith.constant 0 : i32
    %c0_i32_1 = arith.constant 0 : i32
    return %c0_i32, %c0_i32_0 : i32, i32
  }
  func.func @transform_4(%arg0: i32) -> (i32, i32) {
    %c0_i32 = arith.constant 0 : i32
    %c0_i32_0 = arith.constant 0 : i32
    %c0_i32_1 = arith.constant 0 : i32
    return %c0_i32, %c0_i32_0 : i32, i32
  }
  func.func @transform_5(%arg0: i32) -> (i32, i32) {
    %c0_i32 = arith.constant 0 : i32
    %c0_i32_0 = arith.constant 0 : i32
    %c0_i32_1 = arith.constant 0 : i32
    return %c0_i32, %c0_i32_0 : i32, i32
  }
  func.func @transform_6(%arg0: i32) -> (i32, i32, i32) {
    %c0_i32 = arith.constant 0 : i32
    %c0_i32_0 = arith.constant 0 : i32
    %c0_i32_1 = arith.constant 0 : i32
    return %arg0, %c0_i32, %c0_i32_0 : i32, i32, i32
  }
}

</mosaic_0001>

<llo_original>
// kernel: pixel_attention.1
$region0: #{pixel_attention.1}
  #allocation0 [shape = 'u32[]', space=smem, size = 0x4, offset = 0x4, fixed_abs, tag = 'smem constant byte address 0x4 - core index']
  #allocation1 [shape = 'u32[144,128]{1,0:T(1,128)}', space=vmem, size = 0x12000, scoped, tag = 'internal scratch']
  #allocation2 [shape = 'f32[1,1]{1,0:T(1,128)S(1)}', space=vmem, size = 0x200, scoped, tag = 'scoped memory for pixel_attention.1']
  %s0 = inlined_call_operand.vmem [shape: f32[2,4,256], index: 0, kind: input, shape index: {}]
  %s1 = inlined_call_operand.vmem [shape: f32[4,256], index: 1, kind: input, shape index: {}]
  %s2 = inlined_call_operand.vmem [shape: f32[9,2,4], index: 2, kind: input, shape index: {}]
  %s3 = inlined_call_operand.vmem [shape: f32[2,1], index: 3, kind: input, shape index: {}]
  %s4 = inlined_call_operand.vmem [shape: f32[2,9], index: 4, kind: input, shape index: {}]
  %s5 = inlined_call_operand.<no memory space> [shape: f32[1,1], index: 5, kind: input, shape index: {}]
  %s6 = inlined_call_operand.vmem [shape: f32[2,1,256], index: 6, kind: output, shape index: {}]
  %s7 = sld [smem:[#allocation0]]
  $region57: #{pixel_attention.1} parent=0
    _
  %s9 = ssub.s32 1, %s7
  %s10 = scalar_select 0, %s9, %s7
  %v11 = vstv %s5
  %12 = vst [vmem:[#allocation2] sm:$0x1] %v11
  loop: start=0, step=1, limit=4
  $region2: #{pixel_attention.1} parent=0 // loop_pre_header
    _
  $region3: #{pixel_attention.1} parent=0 // loop_header
    %s14 = sphi 0, %s18
    %p15 = scmp.ge.s32.totalorder %s14, 4
    %s24 = sphi 0, %s26
    %s27 = sphi 0, %s24
    %s28 = sphi 0, %s27
    %s44 = sphi 0, %s28
    %s48 = sphi 0, %s48
    %s50 = sphi 0, %s48
    %s51 = sphi 0, %s50
    %s65 = sphi 0, %s51
    %s69 = sphi 0, %s69
    %s71 = sphi 0, %s69
    %s72 = sphi 0, %s71
    %s86 = sphi 0, %s72
    %s90 = sphi 0, %s90
    %s92 = sphi 0, %s90
    %s93 = sphi 0, %s92
    %s107 = sphi 0, %s93
    %s111 = sphi 0, %s111
    %s113 = sphi 0, %s111
    %s114 = sphi 0, %s113
    %s128 = sphi 0, %s114
    %s132 = sphi 0, %s132
    %s134 = sphi 0, %s132
    %s135 = sphi 0, %s134
    %s149 = sphi 0, %s135
    %s155 = sphi 0, %s157
    %s158 = sphi 0, %s155
    %s159 = sphi 0, %s158
    %s175 = sphi 0, %s159
  $region4: #{pixel_attention.1} parent=0 // loop_header_branch
    %17 = sbr.rel (%p15) target = $region8
  $region5: #{pixel_attention.1} parent=0 // loop_body
    %s19 = ssub.s32 %s14, 1
    %s20 = ssub.s32 %s14, 2
    %s21 = sadd.s32 %s14, 1
    %s22 = ssub.s32 %s14, %s21
    %p23 = scmp.eq.s32.totalorder %s22, 0
    %s25 = sadd.s32 %s24, 1
    %s26 = scalar_select %p23, %s24, %s25
    %p29 = pneg %p23
    %p30 = scmp.eq.s32.totalorder %s14, 1
    %p31 = por %p29, %p30
    %p32 = scmp.ne.s32.totalorder %s24, %s27
    %p33 = scmp.eq.s32.totalorder %s14, 0
    %p34 = por %p32, %p33
    %p35 = scmp.ne.s32.totalorder %s24, %s27
    %p36 = scmp.eq.s32.totalorder %s19, 1
    %p37 = por %p35, %p36
    %p38 = scmp.ne.s32.totalorder %s27, %s28
    %p39 = scmp.eq.s32.totalorder %s19, 0
    %p40 = por %p38, %p39
    %p41 = scmp.ne.s32.totalorder %s27, %s28
    %p42 = scmp.eq.s32.totalorder %s20, 1
    %p43 = por %p41, %p42
    %p45 = scmp.ne.s32.totalorder %s28, %s44
    %p46 = scmp.eq.s32.totalorder %s20, 0
    %p47 = por %p45, %p46
    %s49 = sadd.s32 %s48, 1
    %p52 = scmp.eq.s32.totalorder %s14, 1
    %p53 = scmp.ne.s32.totalorder %s48, %s50
    %p54 = scmp.eq.s32.totalorder %s14, 0
    %p55 = por %p53, %p54
    %p56 = scmp.ne.s32.totalorder %s48, %s50
    %p57 = scmp.eq.s32.totalorder %s19, 1
    %p58 = por %p56, %p57
    %p59 = scmp.ne.s32.totalorder %s50, %s51
    %p60 = scmp.eq.s32.totalorder %s19, 0
    %p61 = por %p59, %p60
    %p62 = scmp.ne.s32.totalorder %s50, %s51
    %p63 = scmp.eq.s32.totalorder %s20, 1
    %p64 = por %p62, %p63
    %p66 = scmp.ne.s32.totalorder %s51, %s65
    %p67 = scmp.eq.s32.totalorder %s20, 0
    %p68 = por %p66, %p67
    %s70 = sadd.s32 %s69, 1
    %p73 = scmp.eq.s32.totalorder %s14, 1
    %p74 = scmp.ne.s32.totalorder %s69, %s71
    %p75 = scmp.eq.s32.totalorder %s14, 0
    %p76 = por %p74, %p75
    %p77 = scmp.ne.s32.totalorder %s69, %s71
    %p78 = scmp.eq.s32.totalorder %s19, 1
    %p79 = por %p77, %p78
    %p80 = scmp.ne.s32.totalorder %s71, %s72
    %p81 = scmp.eq.s32.totalorder %s19, 0
    %p82 = por %p80, %p81
    %p83 = scmp.ne.s32.totalorder %s71, %s72
    %p84 = scmp.eq.s32.totalorder %s20, 1
    %p85 = por %p83, %p84
    %p87 = scmp.ne.s32.totalorder %s72, %s86
    %p88 = scmp.eq.s32.totalorder %s20, 0
    %p89 = por %p87, %p88
    %s91 = sadd.s32 %s90, 1
    %p94 = scmp.eq.s32.totalorder %s14, 1
    %p95 = scmp.ne.s32.totalorder %s90, %s92
    %p96 = scmp.eq.s32.totalorder %s14, 0
    %p97 = por %p95, %p96
    %p98 = scmp.ne.s32.totalorder %s90, %s92
    %p99 = scmp.eq.s32.totalorder %s19, 1
    %p100 = por %p98, %p99
    %p101 = scmp.ne.s32.totalorder %s92, %s93
    %p102 = scmp.eq.s32.totalorder %s19, 0
    %p103 = por %p101, %p102
    %p104 = scmp.ne.s32.totalorder %s92, %s93
    %p105 = scmp.eq.s32.totalorder %s20, 1
    %p106 = por %p104, %p105
    %p108 = scmp.ne.s32.totalorder %s93, %s107
    %p109 = scmp.eq.s32.totalorder %s20, 0
    %p110 = por %p108, %p109
    %s112 = sadd.s32 %s111, 1
    %p115 = scmp.eq.s32.totalorder %s14, 1
    %p116 = scmp.ne.s32.totalorder %s111, %s113
    %p117 = scmp.eq.s32.totalorder %s14, 0
    %p118 = por %p116, %p117
    %p119 = scmp.ne.s32.totalorder %s111, %s113
    %p120 = scmp.eq.s32.totalorder %s19, 1
    %p121 = por %p119, %p120
    %p122 = scmp.ne.s32.totalorder %s113, %s114
    %p123 = scmp.eq.s32.totalorder %s19, 0
    %p124 = por %p122, %p123
    %p125 = scmp.ne.s32.totalorder %s113, %s114
    %p126 = scmp.eq.s32.totalorder %s20, 1
    %p127 = por %p125, %p126
    %p129 = scmp.ne.s32.totalorder %s114, %s128
    %p130 = scmp.eq.s32.totalorder %s20, 0
    %p131 = por %p129, %p130
    %s133 = sadd.s32 %s132, 1
    %p136 = scmp.eq.s32.totalorder %s14, 1
    %p137 = scmp.ne.s32.totalorder %s132, %s134
    %p138 = scmp.eq.s32.totalorder %s14, 0
    %p139 = por %p137, %p138
    %p140 = scmp.ne.s32.totalorder %s132, %s134
    %p141 = scmp.eq.s32.totalorder %s19, 1
    %p142 = por %p140, %p141
    %p143 = scmp.ne.s32.totalorder %s134, %s135
    %p144 = scmp.eq.s32.totalorder %s19, 0
    %p145 = por %p143, %p144
    %p146 = scmp.ne.s32.totalorder %s134, %s135
    %p147 = scmp.eq.s32.totalorder %s20, 1
    %p148 = por %p146, %p147
    %p150 = scmp.ne.s32.totalorder %s135, %s149
    %p151 = scmp.eq.s32.totalorder %s20, 0
    %p152 = por %p150, %p151
    %s153 = ssub.s32 %s14, %s21
    %p154 = scmp.eq.s32.totalorder %s153, 0
    %s156 = sadd.s32 %s155, 1
    %s157 = scalar_select %p154, %s155, %s156
    %p160 = pneg %p154
    %p161 = scmp.eq.s32.totalorder %s14, 1
    %p162 = por %p160, %p161
    %p163 = scmp.ne.s32.totalorder %s155, %s158
    %p164 = scmp.eq.s32.totalorder %s14, 0
    %p165 = por %p163, %p164
    %p166 = scmp.ne.s32.totalorder %s155, %s158
    %p167 = scmp.eq.s32.totalorder %s19, 1
    %p168 = por %p166, %p167
    %p169 = scmp.ne.s32.totalorder %s158, %s159
    %p170 = scmp.eq.s32.totalorder %s19, 0
    %p171 = por %p169, %p170
    %p172 = scmp.ne.s32.totalorder %s158, %s159
    %p173 = scmp.eq.s32.totalorder %s20, 1
    %p174 = por %p172, %p173
    %p176 = scmp.ne.s32.totalorder %s159, %s175
    %p177 = scmp.eq.s32.totalorder %s20, 0
    %p178 = por %p176, %p177
    %p179 = scmp.le.s32.totalorder 1, %s14
    %p180 = scmp.lt.s32.totalorder %s14, 3
    %p181 = pnand %p179, %p180
    %p182 = pneg %p181
    // Predicated region
    $region9: #{pixel_attention.1} parent=5 // pred_check
      _
    $region10: #{pixel_attention.1} parent=5 // pred_check_branch
      %184 = sbr.rel (%p181) target = $region12
    $region11: #{pixel_attention.1} parent=5 // pred_region
      %s185 = ssub.s32 %s14, 1
      // Predicated region
      $region13: #{pixel_attention.1} parent=11 // pred_check
        %p186 = pneg %p61
      $region14: #{pixel_attention.1} parent=11 // pred_check_branch
        %188 = sbr.rel (%p186) target = $region16
      $region15: #{pixel_attention.1} parent=11 // pred_region
        _
      $region16: #{pixel_attention.1} parent=11 // pred_fallthru
        _
      // Predicated region
      $region17: #{pixel_attention.1} parent=11 // pred_check
        %p189 = pneg %p82
      $region18: #{pixel_attention.1} parent=11 // pred_check_branch
        %191 = sbr.rel (%p189) target = $region20
      $region19: #{pixel_attention.1} parent=11 // pred_region
        _
      $region20: #{pixel_attention.1} parent=11 // pred_fallthru
        _
      // Predicated region
      $region21: #{pixel_attention.1} parent=11 // pred_check
        %p192 = pneg %p103
      $region22: #{pixel_attention.1} parent=11 // pred_check_branch
        %194 = sbr.rel (%p192) target = $region24
      $region23: #{pixel_attention.1} parent=11 // pred_region
        _
      $region24: #{pixel_attention.1} parent=11 // pred_fallthru
        _
      // Predicated region
      $region25: #{pixel_attention.1} parent=11 // pred_check
        %p195 = pneg %p124
      $region26: #{pixel_attention.1} parent=11 // pred_check_branch
        %197 = sbr.rel (%p195) target = $region28
      $region27: #{pixel_attention.1} parent=11 // pred_region
        _
      $region28: #{pixel_attention.1} parent=11 // pred_fallthru
        _
      // Predicated region
      $region29: #{pixel_attention.1} parent=11 // pred_check
        %p198 = pneg %p145
      $region30: #{pixel_attention.1} parent=11 // pred_check_branch
        %200 = sbr.rel (%p198) target = $region32
      $region31: #{pixel_attention.1} parent=11 // pred_region
        _
      $region32: #{pixel_attention.1} parent=11 // pred_fallthru
        _
    $region12: #{pixel_attention.1} parent=5 // pred_fallthru
      _
    %p201 = scmp.lt.s32.totalorder %s14, 2
    // Predicated region
    $region33: #{pixel_attention.1} parent=5 // pred_check
      %p202 = pneg %p201
    $region34: #{pixel_attention.1} parent=5 // pred_check_branch
      %204 = sbr.rel (%p202) target = $region36
    $region35: #{pixel_attention.1} parent=5 // pred_region
      // Predicated region
      $region37: #{pixel_attention.1} parent=35 // pred_check
        %p205 = pneg %p34
      $region38: #{pixel_attention.1} parent=35 // pred_check_branch
        %207 = sbr.rel (%p205) target = $region40
      $region39: #{pixel_attention.1} parent=35 // pred_region
        %p208 = scmp.lt.s32.totalorder %s14, 1
        %s209 = scalar_select %p208, %s14, 1
        %s210 = smul.addr %s209, 2
        %s211 = smul.addr %s210, 4
        %s212 = scalar_lea.vmem %s0, %s211
      $region40: #{pixel_attention.1} parent=35 // pred_fallthru
        _
    $region36: #{pixel_attention.1} parent=5 // pred_fallthru
      _
    %p213 = scmp.le.s32.totalorder 1, %s14
    %p214 = scmp.lt.s32.totalorder %s14, 3
    %p215 = pnand %p213, %p214
    %p216 = pneg %p215
    // Predicated region
    $region41: #{pixel_attention.1} parent=5 // pred_check
      _
    $region42: #{pixel_attention.1} parent=5 // pred_check_branch
      %218 = sbr.rel (%p215) target = $region44
    $region43: #{pixel_attention.1} parent=5 // pred_region
      %s219 = ssub.s32 %s14, 1
      %p220 = scmp.lt.s32.totalorder %s19, 1
      %s221 = scalar_select %p220, %s19, 1
      %s222 = smul.addr %s221, 2
      %s223 = smul.addr %s222, 4
      %s224 = scalar_lea.vmem %s0, %s223
      %p225 = pneg %p40
      %p226 = pneg %p37
      %p227 = pneg %p61
      %p228 = pneg %p58
      %p229 = pneg %p82
      %p230 = pneg %p79
      %p231 = pneg %p103
      %p232 = pneg %p100
      %p233 = pneg %p124
      %p234 = pneg %p121
      %p235 = pneg %p145
      %p236 = pneg %p142
      %p237 = pneg %p171
      %p238 = pneg %p168
      %p239 = scmp.lt.s32.totalorder %s19, 1
      %s240 = scalar_select %p239, %s19, 1
      %s241 = smul.addr %s240, 2
      %s242 = scalar_lea.vmem %s6, %s241
      %p243 = scmp.lt.s32.totalorder %s19, 1
      %s244 = scalar_select %p243, %s19, 1
      %s245 = smul.addr %s244, 2
      %s246 = smul.addr %s245, 4
      %s247 = scalar_lea.vmem %s0, %s246
      %p248 = scmp.lt.s32.totalorder %s19, 1
      %s249 = scalar_select %p248, %s19, 1
      %s250 = smul.addr %s249, 2
      %s251 = scalar_lea.vmem %s6, %s250
      %v252 = vld [vmem:[%s247] sm:$0xff]
      %v253 = vld [vmem:[%s1] ss:$4 sm:$0x3]
      %s254 = scalar_lea.vmem %s1, 1
      %v255 = vld [vmem:[%s254] ss:$4 sm:$0x3]
      %s256 = scalar_lea.vmem %s1, 2
      %v257 = vld [vmem:[%s256] ss:$4 sm:$0x3]
      %s258 = scalar_lea.vmem %s1, 3
      %v259 = vld [vmem:[%s258] ss:$4 sm:$0x3]
      %v261 = vcombine.high %v252, %v252
      %263 = vrot.lane.b32.xlu0 %v252, 16
      %v264 = vpop.permute.xlu0 %263
      %265 = vrot.lane.b32.xlu0 %v261, 16
      %v266 = vpop.permute.xlu0 %265
      %v267 = vlaneseq
      %v268 = vand.u32 %v267, 127
      %vm269 = vcmp.lt.s32.totalorder %v268, 16
      %v270 = vsel %vm269, %v264, %v266
      %v271 = vsel %vm269, %v266, %v264
      %v273 = vlaneseq
      %v274 = vshrl.u32 %v273, 7
      %v275 = vsub.s32 0, %v274
      %v276 = vrot.slane %v253, %v275
      %v277 = vlaneseq
      %v278 = vshrl.u32 %v277, 7
      %v279 = vsub.s32 1, %v278
      %v280 = vrot.slane %v253, %v279
      %v283 = vmul.f32 %v271, %v276
      %v284 = vmul.f32 %v270, %v280
      %285 = vrot.lane.b32.xlu0 %v283, 1
      %v286 = vpop.permute.xlu0 %285
      %287 = vrot.lane.b32.xlu0 %v284, 1
      %v288 = vpop.permute.xlu0 %287
      %vm289 = vcmp.lt.s32.totalorder %v268, 1
      %v290 = vsel %vm289, %v286, %v288
      %v291 = vsel %vm289, %v288, %v286
      %v293 = vlaneseq
      %v294 = vshrl.u32 %v293, 7
      %v295 = vsub.s32 0, %v294
      %v296 = vrot.slane %v257, %v295
      %v297 = vlaneseq
      %v298 = vshrl.u32 %v297, 7
      %v299 = vsub.s32 1, %v298
      %v300 = vrot.slane %v257, %v299
      %v303 = vmul.f32 %v291, %v296
      %v304 = vmul.f32 %v290, %v300
      %v305 = vld [vmem:[%s2] sm:$0x3]
      %s306 = scalar_lea.vmem %s2, 2
      %v307 = vld [vmem:[%s306] sm:$0x3]
      %vm308 = vcmask 31744
      %v310 = vsel %vm308, %v307, 0
      %vm312 = vcmask 1043456
      %v314 = vsel %vm312, %v283, 0
      %v317 = vsel %vm312, %v284, 0
      %v319 = vand.u32 %v317, 4294901760
      %320 = vmatprep.subr.mxu0 %v319
      %v321 = vand.u32 %v314, 4294901760
      %322 = vmatpush1.msra.mxu0 %v321
      %323 = vmatprep.subr.mxu0 0.0
      %324 = vmatpush1.msra.mxu0 0.0
      %325 = vmatprep.subr.mxu0 0.0
      %326 = vmatpush1.msra.mxu0 0.0
      %327 = vmatprep.subr.mxu0 0.0
      %328 = vmatpush1.msra.mxu0 0.0
      %329 = vmatprep.subr.mxu0 0.0
      %330 = vmatpush1.msra.mxu0 0.0
      %331 = vmatprep.subr.mxu0 0.0
      %332 = vmatpush1.msra.mxu0 0.0
      %333 = vmatprep.subr.mxu0 0.0
      %334 = vmatpush1.msra.mxu0 0.0
      %335 = vmatprep.subr.mxu0 0.0
      %336 = vmatpush1.msra.mxu0 0.0
      %337 = vmatprep.subr.mxu0 0.0
      %338 = vmatpush1.msra.mxu0 0.0
      %339 = vmatprep.subr.mxu0 0.0
      %340 = vmatpush1.msra.mxu0 0.0
      %341 = vmatprep.subr.mxu0 0.0
      %342 = vmatpush1.msra.mxu0 0.0
      %343 = vmatprep.subr.mxu0 0.0
      %344 = vmatpush1.msra.mxu0 0.0
      %345 = vmatprep.subr.mxu0 0.0
      %346 = vmatpush1.msra.mxu0 0.0
      %347 = vmatprep.subr.mxu0 0.0
      %348 = vmatpush1.msra.mxu0 0.0
      %349 = vmatprep.subr.mxu0 0.0
      %350 = vmatpush1.msra.mxu0 0.0
      %351 = vmatprep.subr.mxu0 0.0
      %352 = vmatpush1.msra.mxu0 0.0
      %353 = vmatprep.subr.mxu0 0.0
      %354 = vmatpush1.msra.mxu0 0.0
      %355 = vmatprep.subr.mxu0 0.0
      %356 = vmatpush1.msra.mxu0 0.0
      %357 = vmatprep.subr.mxu0 0.0
      %358 = vmatpush1.msra.mxu0 0.0
      %359 = vmatprep.subr.mxu0 0.0
      %360 = vmatpush1.msra.mxu0 0.0
      %361 = vmatprep.subr.mxu0 0.0
      %362 = vmatpush1.msra.mxu0 0.0
      %363 = vmatprep.subr.mxu0 0.0
      %364 = vmatpush1.msra.mxu0 0.0
      %365 = vmatprep.subr.mxu0 0.0
      %366 = vmatpush1.msra.mxu0 0.0
      %367 = vmatprep.subr.mxu0 0.0
      %368 = vmatpush1.msra.mxu0 0.0
      %369 = vmatprep.subr.mxu0 0.0
      %370 = vmatpush1.msra.mxu0 0.0
      %371 = vmatprep.subr.mxu0 0.0
      %372 = vmatpush1.msra.mxu0 0.0
      %373 = vmatprep.subr.mxu0 0.0
      %374 = vmatpush1.msra.mxu0 0.0
      %375 = vmatprep.subr.mxu0 0.0
      %376 = vmatpush1.msra.mxu0 0.0
      %377 = vmatprep.subr.mxu0 0.0
      %378 = vmatpush1.msra.mxu0 0.0
      %379 = vmatprep.subr.mxu0 0.0
      %380 = vmatpush1.msra.mxu0 0.0
      %381 = vmatprep.subr.mxu0 0.0
      %382 = vmatpush1.msra.mxu0 0.0
      %383 = vmatprep.subr.mxu0 0.0
      %384 = vmatpush1.msra.mxu0 0.0
      %385 = vmatprep.mubr.f32.mxu0 0.0
      %v386 = vand.u32 %v310, 4294901760
      %v387 = vsub.f32 %v310, %v386
      %v388 = vand.u32 %v387, 4294901760
      %v389 = vsub.f32 %v387, %v388
      %v390 = vand.u32 %v389, 4294901760
      %391 = vmatmul.mubr.f32.gmra.mrb[0].mxu0 %v390
      %v392 = vpop.f32.mrb[0].mxu0
      %v393 = vadd.f32 0.0, %v392
      %v394 = vpop.f32.mrb[0].mxu0
      %v395 = vadd.f32 0.0, %v394
      %396 = vdwg.mxu0
      %v397 = vand.u32 %v317, 4294901760
      %v398 = vsub.f32 %v317, %v397
      %v399 = vand.u32 %v398, 4294901760
      %v400 = vsub.f32 %v398, %v399
      %v401 = vand.u32 %v400, 4294901760
      %402 = vmatprep.subr.mxu0 %v401
      %v403 = vand.u32 %v314, 4294901760
      %v404 = vsub.f32 %v314, %v403
      %v405 = vand.u32 %v404, 4294901760
      %v406 = vsub.f32 %v404, %v405
      %v407 = vand.u32 %v406, 4294901760
      %408 = vmatpush1.msra.mxu0 %v407
      %409 = vmatprep.subr.mxu0 0.0
      %410 = vmatpush1.msra.mxu0 0.0
      %411 = vmatprep.subr.mxu0 0.0
      %412 = vmatpush1.msra.mxu0 0.0
      %413 = vmatprep.subr.mxu0 0.0
      %414 = vmatpush1.msra.mxu0 0.0
      %415 = vmatprep.subr.mxu0 0.0
      %416 = vmatpush1.msra.mxu0 0.0
      %417 = vmatprep.subr.mxu0 0.0
      %418 = vmatpush1.msra.mxu0 0.0
      %419 = vmatprep.subr.mxu0 0.0
      %420 = vmatpush1.msra.mxu0 0.0
      %421 = vmatprep.subr.mxu0 0.0
      %422 = vmatpush1.msra.mxu0 0.0
      %423 = vmatprep.subr.mxu0 0.0
      %424 = vmatpush1.msra.mxu0 0.0
      %425 = vmatprep.subr.mxu0 0.0
      %426 = vmatpush1.msra.mxu0 0.0
      %427 = vmatprep.subr.mxu0 0.0
      %428 = vmatpush1.msra.mxu0 0.0
      %429 = vmatprep.subr.mxu0 0.0
      %430 = vmatpush1.msra.mxu0 0.0
      %431 = vmatprep.subr.mxu0 0.0
      %432 = vmatpush1.msra.mxu0 0.0
      %433 = vmatprep.subr.mxu0 0.0
      %434 = vmatpush1.msra.mxu0 0.0
      %435 = vmatprep.subr.mxu0 0.0
      %436 = vmatpush1.msra.mxu0 0.0
      %437 = vmatprep.subr.mxu0 0.0
      %438 = vmatpush1.msra.mxu0 0.0
      %439 = vmatprep.subr.mxu0 0.0
      %440 = vmatpush1.msra.mxu0 0.0
      %441 = vmatprep.subr.mxu0 0.0
      %442 = vmatpush1.msra.mxu0 0.0
      %443 = vmatprep.subr.mxu0 0.0
      %444 = vmatpush1.msra.mxu0 0.0
      %445 = vmatprep.subr.mxu0 0.0
      %446 = vmatpush1.msra.mxu0 0.0
      %447 = vmatprep.subr.mxu0 0.0
      %448 = vmatpush1.msra.mxu0 0.0
      %449 = vmatprep.subr.mxu0 0.0
      %450 = vmatpush1.msra.mxu0 0.0
      %451 = vmatprep.subr.mxu0 0.0
      %452 = vmatpush1.msra.mxu0 0.0
      %453 = vmatprep.subr.mxu0 0.0
      %454 = vmatpush1.msra.mxu0 0.0
      %455 = vmatprep.subr.mxu0 0.0
      %456 = vmatpush1.msra.mxu0 0.0
      %457 = vmatprep.subr.mxu0 0.0
      %458 = vmatpush1.msra.mxu0 0.0
      %459 = vmatprep.subr.mxu0 0.0
      %460 = vmatpush1.msra.mxu0 0.0
      %461 = vmatprep.subr.mxu0 0.0
      %462 = vmatpush1.msra.mxu0 0.0
      %463 = vmatprep.subr.mxu0 0.0
      %464 = vmatpush1.msra.mxu0 0.0
      %465 = vmatprep.subr.mxu0 0.0
      %466 = vmatpush1.msra.mxu0 0.0
      %467 = vmatprep.subr.mxu0 0.0
      %468 = vmatpush1.msra.mxu0 0.0
      %469 = vmatprep.subr.mxu0 0.0
      %470 = vmatpush1.msra.mxu0 0.0
      %471 = vmatprep.mubr.f32.mxu0 0.0
      %v472 = vand.u32 %v310, 4294901760
      %473 = vmatmul.mubr.f32.gmra.mrb[0].mxu0 %v472
      %v474 = vpop.f32.mrb[0].mxu0
      %v475 = vadd.f32 %v393, %v474
      %v476 = vpop.f32.mrb[0].mxu0
      %v477 = vadd.f32 %v395, %v476
      %478 = vdwg.mxu0
      %v479 = vand.u32 %v317, 4294901760
      %v480 = vsub.f32 %v317, %v479
      %481 = vmatprep.subr.mxu0 %v480
      %v482 = vand.u32 %v314, 4294901760
      %v483 = vsub.f32 %v314, %v482
      %484 = vmatpush1.msra.mxu0 %v483
      %485 = vmatprep.subr.mxu0 0.0
      %486 = vmatpush1.msra.mxu0 0.0
      %487 = vmatprep.subr.mxu0 0.0
      %488 = vmatpush1.msra.mxu0 0.0
      %489 = vmatprep.subr.mxu0 0.0
      %490 = vmatpush1.msra.mxu0 0.0
      %491 = vmatprep.subr.mxu0 0.0
      %492 = vmatpush1.msra.mxu0 0.0
      %493 = vmatprep.subr.mxu0 0.0
      %494 = vmatpush1.msra.mxu0 0.0
      %495 = vmatprep.subr.mxu0 0.0
      %496 = vmatpush1.msra.mxu0 0.0
      %497 = vmatprep.subr.mxu0 0.0
      %498 = vmatpush1.msra.mxu0 0.0
      %499 = vmatprep.subr.mxu0 0.0
      %500 = vmatpush1.msra.mxu0 0.0
      %501 = vmatprep.subr.mxu0 0.0
      %502 = vmatpush1.msra.mxu0 0.0
      %503 = vmatprep.subr.mxu0 0.0
      %504 = vmatpush1.msra.mxu0 0.0
      %505 = vmatprep.subr.mxu0 0.0
      %506 = vmatpush1.msra.mxu0 0.0
      %507 = vmatprep.subr.mxu0 0.0
      %508 = vmatpush1.msra.mxu0 0.0
      %509 = vmatprep.subr.mxu0 0.0
      %510 = vmatpush1.msra.mxu0 0.0
      %511 = vmatprep.subr.mxu0 0.0
      %512 = vmatpush1.msra.mxu0 0.0
      %513 = vmatprep.subr.mxu0 0.0
      %514 = vmatpush1.msra.mxu0 0.0
      %515 = vmatprep.subr.mxu0 0.0
      %516 = vmatpush1.msra.mxu0 0.0
      %517 = vmatprep.subr.mxu0 0.0
      %518 = vmatpush1.msra.mxu0 0.0
      %519 = vmatprep.subr.mxu0 0.0
      %520 = vmatpush1.msra.mxu0 0.0
      %521 = vmatprep.subr.mxu0 0.0
      %522 = vmatpush1.msra.mxu0 0.0
      %523 = vmatprep.subr.mxu0 0.0
      %524 = vmatpush1.msra.mxu0 0.0
      %525 = vmatprep.subr.mxu0 0.0
      %526 = vmatpush1.msra.mxu0 0.0
      %527 = vmatprep.subr.mxu0 0.0
      %528 = vmatpush1.msra.mxu0 0.0
      %529 = vmatprep.subr.mxu0 0.0
      %530 = vmatpush1.msra.mxu0 0.0
      %531 = vmatprep.subr.mxu0 0.0
      %532 = vmatpush1.msra.mxu0 0.0
      %533 = vmatprep.subr.mxu0 0.0
      %534 = vmatpush1.msra.mxu0 0.0
      %535 = vmatprep.subr.mxu0 0.0
      %536 = vmatpush1.msra.mxu0 0.0
      %537 = vmatprep.subr.mxu0 0.0
      %538 = vmatpush1.msra.mxu0 0.0
      %539 = vmatprep.subr.mxu0 0.0
      %540 = vmatpush1.msra.mxu0 0.0
      %541 = vmatprep.subr.mxu0 0.0
      %542 = vmatpush1.msra.mxu0 0.0
      %543 = vmatprep.subr.mxu0 0.0
      %544 = vmatpush1.msra.mxu0 0.0
      %545 = vmatprep.subr.mxu0 0.0
      %546 = vmatpush1.msra.mxu0 0.0
      %547 = vmatprep.mubr.f32.mxu0 0.0
      %v548 = vand.u32 %v310, 4294901760
      %v549 = vsub.f32 %v310, %v548
      %550 = vmatmul.mubr.f32.gmra.mrb[0].mxu0 %v549
      %v551 = vpop.f32.mrb[0].mxu0
      %v552 = vadd.f32 %v475, %v551
      %v553 = vpop.f32.mrb[0].mxu0
      %v554 = vadd.f32 %v477, %v553
      %555 = vdwg.mxu0
      %v556 = vand.u32 %v317, 4294901760
      %557 = vmatprep.subr.mxu0 %v556
      %v558 = vand.u32 %v314, 4294901760
      %559 = vmatpush1.msra.mxu0 %v558
      %560 = vmatprep.subr.mxu0 0.0
      %561 = vmatpush1.msra.mxu0 0.0
      %562 = vmatprep.subr.mxu0 0.0
      %563 = vmatpush1.msra.mxu0 0.0
      %564 = vmatprep.subr.mxu0 0.0
      %565 = vmatpush1.msra.mxu0 0.0
      %566 = vmatprep.subr.mxu0 0.0
      %567 = vmatpush1.msra.mxu0 0.0
      %568 = vmatprep.subr.mxu0 0.0
      %569 = vmatpush1.msra.mxu0 0.0
      %570 = vmatprep.subr.mxu0 0.0
      %571 = vmatpush1.msra.mxu0 0.0
      %572 = vmatprep.subr.mxu0 0.0
      %573 = vmatpush1.msra.mxu0 0.0
      %574 = vmatprep.subr.mxu0 0.0
      %575 = vmatpush1.msra.mxu0 0.0
      %576 = vmatprep.subr.mxu0 0.0
      %577 = vmatpush1.msra.mxu0 0.0
      %578 = vmatprep.subr.mxu0 0.0
      %579 = vmatpush1.msra.mxu0 0.0
      %580 = vmatprep.subr.mxu0 0.0
      %581 = vmatpush1.msra.mxu0 0.0
      %582 = vmatprep.subr.mxu0 0.0
      %583 = vmatpush1.msra.mxu0 0.0
      %584 = vmatprep.subr.mxu0 0.0
      %585 = vmatpush1.msra.mxu0 0.0
      %586 = vmatprep.subr.mxu0 0.0
      %587 = vmatpush1.msra.mxu0 0.0
      %588 = vmatprep.subr.mxu0 0.0
      %589 = vmatpush1.msra.mxu0 0.0
      %590 = vmatprep.subr.mxu0 0.0
      %591 = vmatpush1.msra.mxu0 0.0
      %592 = vmatprep.subr.mxu0 0.0
      %593 = vmatpush1.msra.mxu0 0.0
      %594 = vmatprep.subr.mxu0 0.0
      %595 = vmatpush1.msra.mxu0 0.0
      %596 = vmatprep.subr.mxu0 0.0
      %597 = vmatpush1.msra.mxu0 0.0
      %598 = vmatprep.subr.mxu0 0.0
      %599 = vmatpush1.msra.mxu0 0.0
      %600 = vmatprep.subr.mxu0 0.0
      %601 = vmatpush1.msra.mxu0 0.0
      %602 = vmatprep.subr.mxu0 0.0
      %603 = vmatpush1.msra.mxu0 0.0
      %604 = vmatprep.subr.mxu0 0.0
      %605 = vmatpush1.msra.mxu0 0.0
      %606 = vmatprep.subr.mxu0 0.0
      %607 = vmatpush1.msra.mxu0 0.0
      %608 = vmatprep.subr.mxu0 0.0
      %609 = vmatpush1.msra.mxu0 0.0
      %610 = vmatprep.subr.mxu0 0.0
      %611 = vmatpush1.msra.mxu0 0.0
      %612 = vmatprep.subr.mxu0 0.0
      %613 = vmatpush1.msra.mxu0 0.0
      %614 = vmatprep.subr.mxu0 0.0
      %615 = vmatpush1.msra.mxu0 0.0
      %616 = vmatprep.subr.mxu0 0.0
      %617 = vmatpush1.msra.mxu0 0.0
      %618 = vmatprep.subr.mxu0 0.0
      %619 = vmatpush1.msra.mxu0 0.0
      %620 = vmatprep.subr.mxu0 0.0
      %621 = vmatpush1.msra.mxu0 0.0
      %622 = vmatprep.mubr.f32.mxu0 0.0
      %v623 = vand.u32 %v310, 4294901760
      %v624 = vsub.f32 %v310, %v623
      %v625 = vand.u32 %v624, 4294901760
      %626 = vmatmul.mubr.f32.gmra.mrb[0].mxu0 %v625
      %v627 = vpop.f32.mrb[0].mxu0
      %v628 = vadd.f32 %v552, %v627
      %v629 = vpop.f32.mrb[0].mxu0
      %v630 = vadd.f32 %v554, %v629
      %631 = vdwg.mxu0
      %v632 = vand.u32 %v317, 4294901760
      %v633 = vsub.f32 %v317, %v632
      %v634 = vand.u32 %v633, 4294901760
      %635 = vmatprep.subr.mxu0 %v634
      %v636 = vand.u32 %v314, 4294901760
      %v637 = vsub.f32 %v314, %v636
      %v638 = vand.u32 %v637, 4294901760
      %639 = vmatpush1.msra.mxu0 %v638
      %640 = vmatprep.subr.mxu0 0.0
      %641 = vmatpush1.msra.mxu0 0.0
      %642 = vmatprep.subr.mxu0 0.0
      %643 = vmatpush1.msra.mxu0 0.0
      %644 = vmatprep.subr.mxu0 0.0
      %645 = vmatpush1.msra.mxu0 0.0
      %646 = vmatprep.subr.mxu0 0.0
      %647 = vmatpush1.msra.mxu0 0.0
      %648 = vmatprep.subr.mxu0 0.0
      %649 = vmatpush1.msra.mxu0 0.0
      %650 = vmatprep.subr.mxu0 0.0
      %651 = vmatpush1.msra.mxu0 0.0
      %652 = vmatprep.subr.mxu0 0.0
      %653 = vmatpush1.msra.mxu0 0.0
      %654 = vmatprep.subr.mxu0 0.0
      %655 = vmatpush1.msra.mxu0 0.0
      %656 = vmatprep.subr.mxu0 0.0
      %657 = vmatpush1.msra.mxu0 0.0
      %658 = vmatprep.subr.mxu0 0.0
      %659 = vmatpush1.msra.mxu0 0.0
      %660 = vmatprep.subr.mxu0 0.0
      %661 = vmatpush1.msra.mxu0 0.0
      %662 = vmatprep.subr.mxu0 0.0
      %663 = vmatpush1.msra.mxu0 0.0
      %664 = vmatprep.subr.mxu0 0.0
      %665 = vmatpush1.msra.mxu0 0.0
      %666 = vmatprep.subr.mxu0 0.0
      %667 = vmatpush1.msra.mxu0 0.0
      %668 = vmatprep.subr.mxu0 0.0
      %669 = vmatpush1.msra.mxu0 0.0
      %670 = vmatprep.subr.mxu0 0.0
      %671 = vmatpush1.msra.mxu0 0.0
      %672 = vmatprep.subr.mxu0 0.0
      %673 = vmatpush1.msra.mxu0 0.0
      %674 = vmatprep.subr.mxu0 0.0
      %675 = vmatpush1.msra.mxu0 0.0
      %676 = vmatprep.subr.mxu0 0.0
      %677 = vmatpush1.msra.mxu0 0.0
      %678 = vmatprep.subr.mxu0 0.0
      %679 = vmatpush1.msra.mxu0 0.0
      %680 = vmatprep.subr.mxu0 0.0
      %681 = vmatpush1.msra.mxu0 0.0
      %682 = vmatprep.subr.mxu0 0.0
      %683 = vmatpush1.msra.mxu0 0.0
      %684 = vmatprep.subr.mxu0 0.0
      %685 = vmatpush1.msra.mxu0 0.0
      %686 = vmatprep.subr.mxu0 0.0
      %687 = vmatpush1.msra.mxu0 0.0
      %688 = vmatprep.subr.mxu0 0.0
      %689 = vmatpush1.msra.mxu0 0.0
      %690 = vmatprep.subr.mxu0 0.0
      %691 = vmatpush1.msra.mxu0 0.0
      %692 = vmatprep.subr.mxu0 0.0
      %693 = vmatpush1.msra.mxu0 0.0
      %694 = vmatprep.subr.mxu0 0.0
      %695 = vmatpush1.msra.mxu0 0.0
      %696 = vmatprep.subr.mxu0 0.0
      %697 = vmatpush1.msra.mxu0 0.0
      %698 = vmatprep.subr.mxu0 0.0
      %699 = vmatpush1.msra.mxu0 0.0
      %700 = vmatprep.subr.mxu0 0.0
      %701 = vmatpush1.msra.mxu0 0.0
      %702 = vmatprep.mubr.f32.mxu0 0.0
      %v703 = vand.u32 %v310, 4294901760
      %704 = vmatmul.mubr.f32.gmra.mrb[0].mxu0 %v703
      %v705 = vpop.f32.mrb[0].mxu0
      %v706 = vadd.f32 %v628, %v705
      %v707 = vpop.f32.mrb[0].mxu0
      %v708 = vadd.f32 %v630, %v707
      %709 = vdwg.mxu0
      %v710 = vand.u32 %v317, 4294901760
      %711 = vmatprep.subr.mxu0 %v710
      %v712 = vand.u32 %v314, 4294901760
      %713 = vmatpush1.msra.mxu0 %v712
      %714 = vmatprep.subr.mxu0 0.0
      %715 = vmatpush1.msra.mxu0 0.0
      %716 = vmatprep.subr.mxu0 0.0
      %717 = vmatpush1.msra.mxu0 0.0
      %718 = vmatprep.subr.mxu0 0.0
      %719 = vmatpush1.msra.mxu0 0.0
      %720 = vmatprep.subr.mxu0 0.0
      %721 = vmatpush1.msra.mxu0 0.0
      %722 = vmatprep.subr.mxu0 0.0
      %723 = vmatpush1.msra.mxu0 0.0
      %724 = vmatprep.subr.mxu0 0.0
      %725 = vmatpush1.msra.mxu0 0.0
      %726 = vmatprep.subr.mxu0 0.0
      %727 = vmatpush1.msra.mxu0 0.0
      %728 = vmatprep.subr.mxu0 0.0
      %729 = vmatpush1.msra.mxu0 0.0
      %730 = vmatprep.subr.mxu0 0.0
      %731 = vmatpush1.msra.mxu0 0.0
      %732 = vmatprep.subr.mxu0 0.0
      %733 = vmatpush1.msra.mxu0 0.0
      %734 = vmatprep.subr.mxu0 0.0
      %735 = vmatpush1.msra.mxu0 0.0
      %736 = vmatprep.subr.mxu0 0.0
      %737 = vmatpush1.msra.mxu0 0.0
      %738 = vmatprep.subr.mxu0 0.0
      %739 = vmatpush1.msra.mxu0 0.0
      %740 = vmatprep.subr.mxu0 0.0
      %741 = vmatpush1.msra.mxu0 0.0
      %742 = vmatprep.subr.mxu0 0.0
      %743 = vmatpush1.msra.mxu0 0.0
      %744 = vmatprep.subr.mxu0 0.0
      %745 = vmatpush1.msra.mxu0 0.0
      %746 = vmatprep.subr.mxu0 0.0
      %747 = vmatpush1.msra.mxu0 0.0
      %748 = vmatprep.subr.mxu0 0.0
      %749 = vmatpush1.msra.mxu0 0.0
      %750 = vmatprep.subr.mxu0 0.0
      %751 = vmatpush1.msra.mxu0 0.0
      %752 = vmatprep.subr.mxu0 0.0
      %753 = vmatpush1.msra.mxu0 0.0
      %754 = vmatprep.subr.mxu0 0.0
      %755 = vmatpush1.msra.mxu0 0.0
      %756 = vmatprep.subr.mxu0 0.0
      %757 = vmatpush1.msra.mxu0 0.0
      %758 = vmatprep.subr.mxu0 0.0
      %759 = vmatpush1.msra.mxu0 0.0
      %760 = vmatprep.subr.mxu0 0.0
      %761 = vmatpush1.msra.mxu0 0.0
      %762 = vmatprep.subr.mxu0 0.0
      %763 = vmatpush1.msra.mxu0 0.0
      %764 = vmatprep.subr.mxu0 0.0
      %765 = vmatpush1.msra.mxu0 0.0
      %766 = vmatprep.subr.mxu0 0.0
      %767 = vmatpush1.msra.mxu0 0.0
      %768 = vmatprep.subr.mxu0 0.0
      %769 = vmatpush1.msra.mxu0 0.0
      %770 = vmatprep.subr.mxu0 0.0
      %771 = vmatpush1.msra.mxu0 0.0
      %772 = vmatprep.subr.mxu0 0.0
      %773 = vmatpush1.msra.mxu0 0.0
      %774 = vmatprep.subr.mxu0 0.0
      %775 = vmatpush1.msra.mxu0 0.0
      %776 = vmatprep.mubr.f32.mxu0 0.0
      %v777 = vand.u32 %v310, 4294901760
      %778 = vmatmul.mubr.f32.gmra.mrb[0].mxu0 %v777
      %v779 = vpop.f32.mrb[0].mxu0
      %v780 = vadd.f32 %v706, %v779
      %v781 = vpop.f32.mrb[0].mxu0
      %v782 = vadd.f32 %v708, %v781
      %783 = vdwg.mxu0
      %v785 = vsel %vm308, %v305, 0
      %v788 = vsel %vm312, %v303, 0
      %v791 = vsel %vm312, %v304, 0
      %v793 = vand.u32 %v791, 4294901760
      %794 = vmatprep.subr.mxu0 %v793
      %v795 = vand.u32 %v788, 4294901760
      %796 = vmatpush1.msra.mxu0 %v795
      %797 = vmatprep.subr.mxu0 0.0
      %798 = vmatpush1.msra.mxu0 0.0
      %799 = vmatprep.subr.mxu0 0.0
      %800 = vmatpush1.msra.mxu0 0.0
      %801 = vmatprep.subr.mxu0 0.0
      %802 = vmatpush1.msra.mxu0 0.0
      %803 = vmatprep.subr.mxu0 0.0
      %804 = vmatpush1.msra.mxu0 0.0
      %805 = vmatprep.subr.mxu0 0.0
      %806 = vmatpush1.msra.mxu0 0.0
      %807 = vmatprep.subr.mxu0 0.0
      %808 = vmatpush1.msra.mxu0 0.0
      %809 = vmatprep.subr.mxu0 0.0
      %810 = vmatpush1.msra.mxu0 0.0
      %811 = vmatprep.subr.mxu0 0.0
      %812 = vmatpush1.msra.mxu0 0.0
      %813 = vmatprep.subr.mxu0 0.0
      %814 = vmatpush1.msra.mxu0 0.0
      %815 = vmatprep.subr.mxu0 0.0
      %816 = vmatpush1.msra.mxu0 0.0
      %817 = vmatprep.subr.mxu0 0.0
      %818 = vmatpush1.msra.mxu0 0.0
      %819 = vmatprep.subr.mxu0 0.0
      %820 = vmatpush1.msra.mxu0 0.0
      %821 = vmatprep.subr.mxu0 0.0
      %822 = vmatpush1.msra.mxu0 0.0
      %823 = vmatprep.subr.mxu0 0.0
      %824 = vmatpush1.msra.mxu0 0.0
      %825 = vmatprep.subr.mxu0 0.0
      %826 = vmatpush1.msra.mxu0 0.0
      %827 = vmatprep.subr.mxu0 0.0
      %828 = vmatpush1.msra.mxu0 0.0
      %829 = vmatprep.subr.mxu0 0.0
      %830 = vmatpush1.msra.mxu0 0.0
      %831 = vmatprep.subr.mxu0 0.0
      %832 = vmatpush1.msra.mxu0 0.0
      %833 = vmatprep.subr.mxu0 0.0
      %834 = vmatpush1.msra.mxu0 0.0
      %835 = vmatprep.subr.mxu0 0.0
      %836 = vmatpush1.msra.mxu0 0.0
      %837 = vmatprep.subr.mxu0 0.0
      %838 = vmatpush1.msra.mxu0 0.0
      %839 = vmatprep.subr.mxu0 0.0
      %840 = vmatpush1.msra.mxu0 0.0
      %841 = vmatprep.subr.mxu0 0.0
      %842 = vmatpush1.msra.mxu0 0.0
      %843 = vmatprep.subr.mxu0 0.0
      %844 = vmatpush1.msra.mxu0 0.0
      %845 = vmatprep.subr.mxu0 0.0
      %846 = vmatpush1.msra.mxu0 0.0
      %847 = vmatprep.subr.mxu0 0.0
      %848 = vmatpush1.msra.mxu0 0.0
      %849 = vmatprep.subr.mxu0 0.0
      %850 = vmatpush1.msra.mxu0 0.0
      %851 = vmatprep.subr.mxu0 0.0
      %852 = vmatpush1.msra.mxu0 0.0
      %853 = vmatprep.subr.mxu0 0.0
      %854 = vmatpush1.msra.mxu0 0.0
      %855 = vmatprep.subr.mxu0 0.0
      %856 = vmatpush1.msra.mxu0 0.0
      %857 = vmatprep.subr.mxu0 0.0
      %858 = vmatpush1.msra.mxu0 0.0
      %859 = vmatprep.mubr.f32.mxu0 0.0
      %v860 = vand.u32 %v785, 4294901760
      %v861 = vsub.f32 %v785, %v860
      %v862 = vand.u32 %v861, 4294901760
      %v863 = vsub.f32 %v861, %v862
      %v864 = vand.u32 %v863, 4294901760
      %865 = vmatmul.mubr.f32.gmra.mrb[0].mxu0 %v864
      %v866 = vpop.f32.mrb[0].mxu0
      %v867 = vadd.f32 %v780, %v866
      %v868 = vpop.f32.mrb[0].mxu0
      %v869 = vadd.f32 %v782, %v868
      %870 = vdwg.mxu0
      %v871 = vand.u32 %v791, 4294901760
      %v872 = vsub.f32 %v791, %v871
      %v873 = vand.u32 %v872, 4294901760
      %v874 = vsub.f32 %v872, %v873
      %v875 = vand.u32 %v874, 4294901760
      %876 = vmatprep.subr.mxu0 %v875
      %v877 = vand.u32 %v788, 4294901760
      %v878 = vsub.f32 %v788, %v877
      %v879 = vand.u32 %v878, 4294901760
      %v880 = vsub.f32 %v878, %v879
      %v881 = vand.u32 %v880, 4294901760
      %882 = vmatpush1.msra.mxu0 %v881
      %883 = vmatprep.subr.mxu0 0.0
      %884 = vmatpush1.msra.mxu0 0.0
      %885 = vmatprep.subr.mxu0 0.0
      %886 = vmatpush1.msra.mxu0 0.0
      %887 = vmatprep.subr.mxu0 0.0
      %888 = vmatpush1.msra.mxu0 0.0
      %889 = vmatprep.subr.mxu0 0.0
      %890 = vmatpush1.msra.mxu0 0.0
      %891 = vmatprep.subr.mxu0 0.0
      %892 = vmatpush1.msra.mxu0 0.0
      %893 = vmatprep.subr.mxu0 0.0
      %894 = vmatpush1.msra.mxu0 0.0
      %895 = vmatprep.subr.mxu0 0.0
      %896 = vmatpush1.msra.mxu0 0.0
      %897 = vmatprep.subr.mxu0 0.0
      %898 = vmatpush1.msra.mxu0 0.0
      %899 = vmatprep.subr.mxu0 0.0
      %900 = vmatpush1.msra.mxu0 0.0
      %901 = vmatprep.subr.mxu0 0.0
      %902 = vmatpush1.msra.mxu0 0.0
      %903 = vmatprep.subr.mxu0 0.0
      %904 = vmatpush1.msra.mxu0 0.0
      %905 = vmatprep.subr.mxu0 0.0
      %906 = vmatpush1.msra.mxu0 0.0
      %907 = vmatprep.subr.mxu0 0.0
      %908 = vmatpush1.msra.mxu0 0.0
      %909 = vmatprep.subr.mxu0 0.0
      %910 = vmatpush1.msra.mxu0 0.0
      %911 = vmatprep.subr.mxu0 0.0
      %912 = vmatpush1.msra.mxu0 0.0
      %913 = vmatprep.subr.mxu0 0.0
      %914 = vmatpush1.msra.mxu0 0.0
      %915 = vmatprep.subr.mxu0 0.0
      %916 = vmatpush1.msra.mxu0 0.0
      %917 = vmatprep.subr.mxu0 0.0
      %918 = vmatpush1.msra.mxu0 0.0
      %919 = vmatprep.subr.mxu0 0.0
      %920 = vmatpush1.msra.mxu0 0.0
      %921 = vmatprep.subr.mxu0 0.0
      %922 = vmatpush1.msra.mxu0 0.0
      %923 = vmatprep.subr.mxu0 0.0
      %924 = vmatpush1.msra.mxu0 0.0
      %925 = vmatprep.subr.mxu0 0.0
      %926 = vmatpush1.msra.mxu0 0.0
      %927 = vmatprep.subr.mxu0 0.0
      %928 = vmatpush1.msra.mxu0 0.0
      %929 = vmatprep.subr.mxu0 0.0
      %930 = vmatpush1.msra.mxu0 0.0
      %931 = vmatprep.subr.mxu0 0.0
      %932 = vmatpush1.msra.mxu0 0.0
      %933 = vmatprep.subr.mxu0 0.0
      %934 = vmatpush1.msra.mxu0 0.0
      %935 = vmatprep.subr.mxu0 0.0
      %936 = vmatpush1.msra.mxu0 0.0
      %937 = vmatprep.subr.mxu0 0.0
      %938 = vmatpush1.msra.mxu0 0.0
      %939 = vmatprep.subr.mxu0 0.0
      %940 = vmatpush1.msra.mxu0 0.0
      %941 = vmatprep.subr.mxu0 0.0
      %942 = vmatpush1.msra.mxu0 0.0
      %943 = vmatprep.subr.mxu0 0.0
      %944 = vmatpush1.msra.mxu0 0.0
      %945 = vmatprep.mubr.f32.mxu0 0.0
      %v946 = vand.u32 %v785, 4294901760
      %947 = vmatmul.mubr.f32.gmra.mrb[0].mxu0 %v946
      %v948 = vpop.f32.mrb[0].mxu0
      %v949 = vadd.f32 %v867, %v948
      %v950 = vpop.f32.mrb[0].mxu0
      %v951 = vadd.f32 %v869, %v950
      %952 = vdwg.mxu0
      %v953 = vand.u32 %v791, 4294901760
      %v954 = vsub.f32 %v791, %v953
      %955 = vmatprep.subr.mxu0 %v954
      %v956 = vand.u32 %v788, 4294901760
      %v957 = vsub.f32 %v788, %v956
      %958 = vmatpush1.msra.mxu0 %v957
      %959 = vmatprep.subr.mxu0 0.0
      %960 = vmatpush1.msra.mxu0 0.0
      %961 = vmatprep.subr.mxu0 0.0
      %962 = vmatpush1.msra.mxu0 0.0
      %963 = vmatprep.subr.mxu0 0.0
      %964 = vmatpush1.msra.mxu0 0.0
      %965 = vmatprep.subr.mxu0 0.0
      %966 = vmatpush1.msra.mxu0 0.0
      %967 = vmatprep.subr.mxu0 0.0
      %968 = vmatpush1.msra.mxu0 0.0
      %969 = vmatprep.subr.mxu0 0.0
      %970 = vmatpush1.msra.mxu0 0.0
      %971 = vmatprep.subr.mxu0 0.0
      %972 = vmatpush1.msra.mxu0 0.0
      %973 = vmatprep.subr.mxu0 0.0
      %974 = vmatpush1.msra.mxu0 0.0
      %975 = vmatprep.subr.mxu0 0.0
      %976 = vmatpush1.msra.mxu0 0.0
      %977 = vmatprep.subr.mxu0 0.0
      %978 = vmatpush1.msra.mxu0 0.0
      %979 = vmatprep.subr.mxu0 0.0
      %980 = vmatpush1.msra.mxu0 0.0
      %981 = vmatprep.subr.mxu0 0.0
      %982 = vmatpush1.msra.mxu0 0.0
      %983 = vmatprep.subr.mxu0 0.0
      %984 = vmatpush1.msra.mxu0 0.0
      %985 = vmatprep.subr.mxu0 0.0
      %986 = vmatpush1.msra.mxu0 0.0
      %987 = vmatprep.subr.mxu0 0.0
      %988 = vmatpush1.msra.mxu0 0.0
      %989 = vmatprep.subr.mxu0 0.0
      %990 = vmatpush1.msra.mxu0 0.0
      %991 = vmatprep.subr.mxu0 0.0
      %992 = vmatpush1.msra.mxu0 0.0
      %993 = vmatprep.subr.mxu0 0.0
      %994 = vmatpush1.msra.mxu0 0.0
      %995 = vmatprep.subr.mxu0 0.0
      %996 = vmatpush1.msra.mxu0 0.0
      %997 = vmatprep.subr.mxu0 0.0
      %998 = vmatpush1.msra.mxu0 0.0
      %999 = vmatprep.subr.mxu0 0.0
      %1000 = vmatpush1.msra.mxu0 0.0
      %1001 = vmatprep.subr.mxu0 0.0
      %1002 = vmatpush1.msra.mxu0 0.0
      %1003 = vmatprep.subr.mxu0 0.0
      %1004 = vmatpush1.msra.mxu0 0.0
      %1005 = vmatprep.subr.mxu0 0.0
      %1006 = vmatpush1.msra.mxu0 0.0
      %1007 = vmatprep.subr.mxu0 0.0
      %1008 = vmatpush1.msra.mxu0 0.0
      %1009 = vmatprep.subr.mxu0 0.0
      %1010 = vmatpush1.msra.mxu0 0.0
      %1011 = vmatprep.subr.mxu0 0.0
      %1012 = vmatpush1.msra.mxu0 0.0
      %1013 = vmatprep.subr.mxu0 0.0
      %1014 = vmatpush1.msra.mxu0 0.0
      %1015 = vmatprep.subr.mxu0 0.0
      %1016 = vmatpush1.msra.mxu0 0.0
      %1017 = vmatprep.subr.mxu0 0.0
      %1018 = vmatpush1.msra.mxu0 0.0
      %1019 = vmatprep.subr.mxu0 0.0
      %1020 = vmatpush1.msra.mxu0 0.0
      %1021 = vmatprep.mubr.f32.mxu0 0.0
      %v1022 = vand.u32 %v785, 4294901760
      %v1023 = vsub.f32 %v785, %v1022
      %1024 = vmatmul.mubr.f32.gmra.mrb[0].mxu0 %v1023
      %v1025 = vpop.f32.mrb[0].mxu0
      %v1026 = vadd.f32 %v949, %v1025
      %v1027 = vpop.f32.mrb[0].mxu0
      %v1028 = vadd.f32 %v951, %v1027
      %1029 = vdwg.mxu0
      %v1030 = vand.u32 %v791, 4294901760
      %1031 = vmatprep.subr.mxu0 %v1030
      %v1032 = vand.u32 %v788, 4294901760
      %1033 = vmatpush1.msra.mxu0 %v1032
      %1034 = vmatprep.subr.mxu0 0.0
      %1035 = vmatpush1.msra.mxu0 0.0
      %1036 = vmatprep.subr.mxu0 0.0
      %1037 = vmatpush1.msra.mxu0 0.0
      %1038 = vmatprep.subr.mxu0 0.0
      %1039 = vmatpush1.msra.mxu0 0.0
      %1040 = vmatprep.subr.mxu0 0.0
      %1041 = vmatpush1.msra.mxu0 0.0
      %1042 = vmatprep.subr.mxu0 0.0
      %1043 = vmatpush1.msra.mxu0 0.0
      %1044 = vmatprep.subr.mxu0 0.0
      %1045 = vmatpush1.msra.mxu0 0.0
      %1046 = vmatprep.subr.mxu0 0.0
      %1047 = vmatpush1.msra.mxu0 0.0
      %1048 = vmatprep.subr.mxu0 0.0
      %1049 = vmatpush1.msra.mxu0 0.0
      %1050 = vmatprep.subr.mxu0 0.0
      %1051 = vmatpush1.msra.mxu0 0.0
      %1052 = vmatprep.subr.mxu0 0.0
      %1053 = vmatpush1.msra.mxu0 0.0
      %1054 = vmatprep.subr.mxu0 0.0
      %1055 = vmatpush1.msra.mxu0 0.0
      %1056 = vmatprep.subr.mxu0 0.0
      %1057 = vmatpush1.msra.mxu0 0.0
      %1058 = vmatprep.subr.mxu0 0.0
      %1059 = vmatpush1.msra.mxu0 0.0
      %1060 = vmatprep.subr.mxu0 0.0
      %1061 = vmatpush1.msra.mxu0 0.0
      %1062 = vmatprep.subr.mxu0 0.0
      %1063 = vmatpush1.msra.mxu0 0.0
      %1064 = vmatprep.subr.mxu0 0.0
      %1065 = vmatpush1.msra.mxu0 0.0
      %1066 = vmatprep.subr.mxu0 0.0
      %1067 = vmatpush1.msra.mxu0 0.0
      %1068 = vmatprep.subr.mxu0 0.0
      %1069 = vmatpush1.msra.mxu0 0.0
      %1070 = vmatprep.subr.mxu0 0.0
      %1071 = vmatpush1.msra.mxu0 0.0
      %1072 = vmatprep.subr.mxu0 0.0
      %1073 = vmatpush1.msra.mxu0 0.0
      %1074 = vmatprep.subr.mxu0 0.0
      %1075 = vmatpush1.msra.mxu0 0.0
      %1076 = vmatprep.subr.mxu0 0.0
      %1077 = vmatpush1.msra.mxu0 0.0
      %1078 = vmatprep.subr.mxu0 0.0
      %1079 = vmatpush1.msra.mxu0 0.0
      %1080 = vmatprep.subr.mxu0 0.0
      %1081 = vmatpush1.msra.mxu0 0.0
      %1082 = vmatprep.subr.mxu0 0.0
      %1083 = vmatpush1.msra.mxu0 0.0
      %1084 = vmatprep.subr.mxu0 0.0
      %1085 = vmatpush1.msra.mxu0 0.0
      %1086 = vmatprep.subr.mxu0 0.0
      %1087 = vmatpush1.msra.mxu0 0.0
      %1088 = vmatprep.subr.mxu0 0.0
      %1089 = vmatpush1.msra.mxu0 0.0
      %1090 = vmatprep.subr.mxu0 0.0
      %1091 = vmatpush1.msra.mxu0 0.0
      %1092 = vmatprep.subr.mxu0 0.0
      %1093 = vmatpush1.msra.mxu0 0.0
      %1094 = vmatprep.subr.mxu0 0.0
      %1095 = vmatpush1.msra.mxu0 0.0
      %1096 = vmatprep.mubr.f32.mxu0 0.0
      %v1097 = vand.u32 %v785, 4294901760
      %v1098 = vsub.f32 %v785, %v1097
      %v1099 = vand.u32 %v1098, 4294901760
      %1100 = vmatmul.mubr.f32.gmra.mrb[0].mxu0 %v1099
      %v1101 = vpop.f32.mrb[0].mxu0
      %v1102 = vadd.f32 %v1026, %v1101
      %v1103 = vpop.f32.mrb[0].mxu0
      %v1104 = vadd.f32 %v1028, %v1103
      %1105 = vdwg.mxu0
      %v1106 = vand.u32 %v791, 4294901760
      %v1107 = vsub.f32 %v791, %v1106
      %v1108 = vand.u32 %v1107, 4294901760
      %1109 = vmatprep.subr.mxu0 %v1108
      %v1110 = vand.u32 %v788, 4294901760
      %v1111 = vsub.f32 %v788, %v1110
      %v1112 = vand.u32 %v1111, 4294901760
      %1113 = vmatpush1.msra.mxu0 %v1112
      %1114 = vmatprep.subr.mxu0 0.0
      %1115 = vmatpush1.msra.mxu0 0.0
      %1116 = vmatprep.subr.mxu0 0.0
      %1117 = vmatpush1.msra.mxu0 0.0
      %1118 = vmatprep.subr.mxu0 0.0
      %1119 = vmatpush1.msra.mxu0 0.0
      %1120 = vmatprep.subr.mxu0 0.0
      %1121 = vmatpush1.msra.mxu0 0.0
      %1122 = vmatprep.subr.mxu0 0.0
      %1123 = vmatpush1.msra.mxu0 0.0
      %1124 = vmatprep.subr.mxu0 0.0
      %1125 = vmatpush1.msra.mxu0 0.0
      %1126 = vmatprep.subr.mxu0 0.0
      %1127 = vmatpush1.msra.mxu0 0.0
      %1128 = vmatprep.subr.mxu0 0.0
      %1129 = vmatpush1.msra.mxu0 0.0
      %1130 = vmatprep.subr.mxu0 0.0
      %1131 = vmatpush1.msra.mxu0 0.0
      %1132 = vmatprep.subr.mxu0 0.0
      %1133 = vmatpush1.msra.mxu0 0.0
      %1134 = vmatprep.subr.mxu0 0.0
      %1135 = vmatpush1.msra.mxu0 0.0
      %1136 = vmatprep.subr.mxu0 0.0
      %1137 = vmatpush1.msra.mxu0 0.0
      %1138 = vmatprep.subr.mxu0 0.0
      %1139 = vmatpush1.msra.mxu0 0.0
      %1140 = vmatprep.subr.mxu0 0.0
      %1141 = vmatpush1.msra.mxu0 0.0
      %1142 = vmatprep.subr.mxu0 0.0
      %1143 = vmatpush1.msra.mxu0 0.0
      %1144 = vmatprep.subr.mxu0 0.0
      %1145 = vmatpush1.msra.mxu0 0.0
      %1146 = vmatprep.subr.mxu0 0.0
      %1147 = vmatpush1.msra.mxu0 0.0
      %1148 = vmatprep.subr.mxu0 0.0
      %1149 = vmatpush1.msra.mxu0 0.0
      %1150 = vmatprep.subr.mxu0 0.0
      %1151 = vmatpush1.msra.mxu0 0.0
      %1152 = vmatprep.subr.mxu0 0.0
      %1153 = vmatpush1.msra.mxu0 0.0
      %1154 = vmatprep.subr.mxu0 0.0
      %1155 = vmatpush1.msra.mxu0 0.0
      %1156 = vmatprep.subr.mxu0 0.0
      %1157 = vmatpush1.msra.mxu0 0.0
      %1158 = vmatprep.subr.mxu0 0.0
      %1159 = vmatpush1.msra.mxu0 0.0
      %1160 = vmatprep.subr.mxu0 0.0
      %1161 = vmatpush1.msra.mxu0 0.0
      %1162 = vmatprep.subr.mxu0 0.0
      %1163 = vmatpush1.msra.mxu0 0.0
      %1164 = vmatprep.subr.mxu0 0.0
      %1165 = vmatpush1.msra.mxu0 0.0
      %1166 = vmatprep.subr.mxu0 0.0
      %1167 = vmatpush1.msra.mxu0 0.0
      %1168 = vmatprep.subr.mxu0 0.0
      %1169 = vmatpush1.msra.mxu0 0.0
      %1170 = vmatprep.subr.mxu0 0.0
      %1171 = vmatpush1.msra.mxu0 0.0
      %1172 = vmatprep.subr.mxu0 0.0
      %1173 = vmatpush1.msra.mxu0 0.0
      %1174 = vmatprep.subr.mxu0 0.0
      %1175 = vmatpush1.msra.mxu0 0.0
      %1176 = vmatprep.mubr.f32.mxu0 0.0
      %v1177 = vand.u32 %v785, 4294901760
      %1178 = vmatmul.mubr.f32.gmra.mrb[0].mxu0 %v1177
      %v1179 = vpop.f32.mrb[0].mxu0
      %v1180 = vadd.f32 %v1102, %v1179
      %v1181 = vpop.f32.mrb[0].mxu0
      %v1182 = vadd.f32 %v1104, %v1181
      %1183 = vdwg.mxu0
      %v1184 = vand.u32 %v791, 4294901760
      %1185 = vmatprep.subr.mxu0 %v1184
      %v1186 = vand.u32 %v788, 4294901760
      %1187 = vmatpush1.msra.mxu0 %v1186
      %1188 = vmatprep.subr.mxu0 0.0
      %1189 = vmatpush1.msra.mxu0 0.0
      %1190 = vmatprep.subr.mxu0 0.0
      %1191 = vmatpush1.msra.mxu0 0.0
      %1192 = vmatprep.subr.mxu0 0.0
      %1193 = vmatpush1.msra.mxu0 0.0
      %1194 = vmatprep.subr.mxu0 0.0
      %1195 = vmatpush1.msra.mxu0 0.0
      %1196 = vmatprep.subr.mxu0 0.0
      %1197 = vmatpush1.msra.mxu0 0.0
      %1198 = vmatprep.subr.mxu0 0.0
      %1199 = vmatpush1.msra.mxu0 0.0
      %1200 = vmatprep.subr.mxu0 0.0
      %1201 = vmatpush1.msra.mxu0 0.0
      %1202 = vmatprep.subr.mxu0 0.0
      %1203 = vmatpush1.msra.mxu0 0.0
      %1204 = vmatprep.subr.mxu0 0.0
      %1205 = vmatpush1.msra.mxu0 0.0
      %1206 = vmatprep.subr.mxu0 0.0
      %1207 = vmatpush1.msra.mxu0 0.0
      %1208 = vmatprep.subr.mxu0 0.0
      %1209 = vmatpush1.msra.mxu0 0.0
      %1210 = vmatprep.subr.mxu0 0.0
      %1211 = vmatpush1.msra.mxu0 0.0
      %1212 = vmatprep.subr.mxu0 0.0
      %1213 = vmatpush1.msra.mxu0 0.0
      %1214 = vmatprep.subr.mxu0 0.0
      %1215 = vmatpush1.msra.mxu0 0.0
      %1216 = vmatprep.subr.mxu0 0.0
      %1217 = vmatpush1.msra.mxu0 0.0
      %1218 = vmatprep.subr.mxu0 0.0
      %1219 = vmatpush1.msra.mxu0 0.0
      %1220 = vmatprep.subr.mxu0 0.0
      %1221 = vmatpush1.msra.mxu0 0.0
      %1222 = vmatprep.subr.mxu0 0.0
      %1223 = vmatpush1.msra.mxu0 0.0
      %1224 = vmatprep.subr.mxu0 0.0
      %1225 = vmatpush1.msra.mxu0 0.0
      %1226 = vmatprep.subr.mxu0 0.0
      %1227 = vmatpush1.msra.mxu0 0.0
      %1228 = vmatprep.subr.mxu0 0.0
      %1229 = vmatpush1.msra.mxu0 0.0
      %1230 = vmatprep.subr.mxu0 0.0
      %1231 = vmatpush1.msra.mxu0 0.0
      %1232 = vmatprep.subr.mxu0 0.0
      %1233 = vmatpush1.msra.mxu0 0.0
      %1234 = vmatprep.subr.mxu0 0.0
      %1235 = vmatpush1.msra.mxu0 0.0
      %1236 = vmatprep.subr.mxu0 0.0
      %1237 = vmatpush1.msra.mxu0 0.0
      %1238 = vmatprep.subr.mxu0 0.0
      %1239 = vmatpush1.msra.mxu0 0.0
      %1240 = vmatprep.subr.mxu0 0.0
      %1241 = vmatpush1.msra.mxu0 0.0
      %1242 = vmatprep.subr.mxu0 0.0
      %1243 = vmatpush1.msra.mxu0 0.0
      %1244 = vmatprep.subr.mxu0 0.0
      %1245 = vmatpush1.msra.mxu0 0.0
      %1246 = vmatprep.subr.mxu0 0.0
      %1247 = vmatpush1.msra.mxu0 0.0
      %1248 = vmatprep.subr.mxu0 0.0
      %1249 = vmatpush1.msra.mxu0 0.0
      %1250 = vmatprep.mubr.f32.mxu0 0.0
      %v1251 = vand.u32 %v785, 4294901760
      %1252 = vmatmul.mubr.f32.gmra.mrb[0].mxu0 %v1251
      %v1253 = vpop.f32.mrb[0].mxu0
      %v1254 = vadd.f32 %v1180, %v1253
      %v1255 = vpop.f32.mrb[0].mxu0
      %v1256 = vadd.f32 %v1182, %v1255
      %1257 = vdwg.mxu0
      %1258 = vrot.lane.b32.xlu0 %v283, 127
      %v1259 = vpop.permute.xlu0 %1258
      %1260 = vrot.lane.b32.xlu0 %v284, 127
      %v1261 = vpop.permute.xlu0 %1260
      %vm1262 = vcmp.lt.s32.totalorder %v268, 127
      %v1263 = vsel %vm1262, %v1259, %v1261
      %v1264 = vsel %vm1262, %v1261, %v1259
      %v1266 = vlaneseq
      %v1267 = vshrl.u32 %v1266, 7
      %v1268 = vsub.s32 0, %v1267
      %v1269 = vrot.slane %v259, %v1268
      %v1270 = vlaneseq
      %v1271 = vshrl.u32 %v1270, 7
      %v1272 = vsub.s32 1, %v1271
      %v1273 = vrot.slane %v259, %v1272
      %v1276 = vmul.f32 %v1263, %v1269
      %v1277 = vmul.f32 %v1264, %v1273
      %s1278 = scalar_lea.vmem %s2, 4
      %v1279 = vld [vmem:[%s1278] sm:$0x3]
      %v1281 = vsel %vm308, %v1279, 0
      %v1284 = vsel %vm312, %v1276, 0
      %v1287 = vsel %vm312, %v1277, 0
      %v1289 = vand.u32 %v1287, 4294901760
      %1290 = vmatprep.subr.mxu0 %v1289
      %v1291 = vand.u32 %v1284, 4294901760
      %1292 = vmatpush1.msra.mxu0 %v1291
      %1293 = vmatprep.subr.mxu0 0.0
      %1294 = vmatpush1.msra.mxu0 0.0
      %1295 = vmatprep.subr.mxu0 0.0
      %1296 = vmatpush1.msra.mxu0 0.0
      %1297 = vmatprep.subr.mxu0 0.0
      %1298 = vmatpush1.msra.mxu0 0.0
      %1299 = vmatprep.subr.mxu0 0.0
      %1300 = vmatpush1.msra.mxu0 0.0
      %1301 = vmatprep.subr.mxu0 0.0
      %1302 = vmatpush1.msra.mxu0 0.0
      %1303 = vmatprep.subr.mxu0 0.0
      %1304 = vmatpush1.msra.mxu0 0.0
      %1305 = vmatprep.subr.mxu0 0.0
      %1306 = vmatpush1.msra.mxu0 0.0
      %1307 = vmatprep.subr.mxu0 0.0
      %1308 = vmatpush1.msra.mxu0 0.0
      %1309 = vmatprep.subr.mxu0 0.0
      %1310 = vmatpush1.msra.mxu0 0.0
      %1311 = vmatprep.subr.mxu0 0.0
      %1312 = vmatpush1.msra.mxu0 0.0
      %1313 = vmatprep.subr.mxu0 0.0
      %1314 = vmatpush1.msra.mxu0 0.0
      %1315 = vmatprep.subr.mxu0 0.0
      %1316 = vmatpush1.msra.mxu0 0.0
      %1317 = vmatprep.subr.mxu0 0.0
      %1318 = vmatpush1.msra.mxu0 0.0
      %1319 = vmatprep.subr.mxu0 0.0
      %1320 = vmatpush1.msra.mxu0 0.0
      %1321 = vmatprep.subr.mxu0 0.0
      %1322 = vmatpush1.msra.mxu0 0.0
      %1323 = vmatprep.subr.mxu0 0.0
      %1324 = vmatpush1.msra.mxu0 0.0
      %1325 = vmatprep.subr.mxu0 0.0
      %1326 = vmatpush1.msra.mxu0 0.0
      %1327 = vmatprep.subr.mxu0 0.0
      %1328 = vmatpush1.msra.mxu0 0.0
      %1329 = vmatprep.subr.mxu0 0.0
      %1330 = vmatpush1.msra.mxu0 0.0
      %1331 = vmatprep.subr.mxu0 0.0
      %1332 = vmatpush1.msra.mxu0 0.0
      %1333 = vmatprep.subr.mxu0 0.0
      %1334 = vmatpush1.msra.mxu0 0.0
      %1335 = vmatprep.subr.mxu0 0.0
      %1336 = vmatpush1.msra.mxu0 0.0
      %1337 = vmatprep.subr.mxu0 0.0
      %1338 = vmatpush1.msra.mxu0 0.0
      %1339 = vmatprep.subr.mxu0 0.0
      %1340 = vmatpush1.msra.mxu0 0.0
      %1341 = vmatprep.subr.mxu0 0.0
      %1342 = vmatpush1.msra.mxu0 0.0
      %1343 = vmatprep.subr.mxu0 0.0
      %1344 = vmatpush1.msra.mxu0 0.0
      %1345 = vmatprep.subr.mxu0 0.0
      %1346 = vmatpush1.msra.mxu0 0.0
      %1347 = vmatprep.subr.mxu0 0.0
      %1348 = vmatpush1.msra.mxu0 0.0
      %1349 = vmatprep.subr.mxu0 0.0
      %1350 = vmatpush1.msra.mxu0 0.0
      %1351 = vmatprep.subr.mxu0 0.0
      %1352 = vmatpush1.msra.mxu0 0.0
      %1353 = vmatprep.subr.mxu0 0.0
      %1354 = vmatpush1.msra.mxu0 0.0
      %1355 = vmatprep.mubr.f32.mxu0 0.0
      %v1356 = vand.u32 %v1281, 4294901760
      %v1357 = vsub.f32 %v1281, %v1356
      %v1358 = vand.u32 %v1357, 4294901760
      %v1359 = vsub.f32 %v1357, %v1358
      %v1360 = vand.u32 %v1359, 4294901760
      %1361 = vmatmul.mubr.f32.gmra.mrb[0].mxu0 %v1360
      %v1362 = vpop.f32.mrb[0].mxu0
      %v1363 = vadd.f32 0.0, %v1362
      %v1364 = vpop.f32.mrb[0].mxu0
      %v1365 = vadd.f32 0.0, %v1364
      %1366 = vdwg.mxu0
      %v1367 = vand.u32 %v1287, 4294901760
      %v1368 = vsub.f32 %v1287, %v1367
      %v1369 = vand.u32 %v1368, 4294901760
      %v1370 = vsub.f32 %v1368, %v1369
      %v1371 = vand.u32 %v1370, 4294901760
      %1372 = vmatprep.subr.mxu0 %v1371
      %v1373 = vand.u32 %v1284, 4294901760
      %v1374 = vsub.f32 %v1284, %v1373
      %v1375 = vand.u32 %v1374, 4294901760
      %v1376 = vsub.f32 %v1374, %v1375
      %v1377 = vand.u32 %v1376, 4294901760
      %1378 = vmatpush1.msra.mxu0 %v1377
      %1379 = vmatprep.subr.mxu0 0.0
      %1380 = vmatpush1.msra.mxu0 0.0
      %1381 = vmatprep.subr.mxu0 0.0
      %1382 = vmatpush1.msra.mxu0 0.0
      %1383 = vmatprep.subr.mxu0 0.0
      %1384 = vmatpush1.msra.mxu0 0.0
      %1385 = vmatprep.subr.mxu0 0.0
      %1386 = vmatpush1.msra.mxu0 0.0
      %1387 = vmatprep.subr.mxu0 0.0
      %1388 = vmatpush1.msra.mxu0 0.0
      %1389 = vmatprep.subr.mxu0 0.0
      %1390 = vmatpush1.msra.mxu0 0.0
      %1391 = vmatprep.subr.mxu0 0.0
      %1392 = vmatpush1.msra.mxu0 0.0
      %1393 = vmatprep.subr.mxu0 0.0
      %1394 = vmatpush1.msra.mxu0 0.0
      %1395 = vmatprep.subr.mxu0 0.0
      %1396 = vmatpush1.msra.mxu0 0.0
      %1397 = vmatprep.subr.mxu0 0.0
      %1398 = vmatpush1.msra.mxu0 0.0
      %1399 = vmatprep.subr.mxu0 0.0
      %1400 = vmatpush1.msra.mxu0 0.0
      %1401 = vmatprep.subr.mxu0 0.0
      %1402 = vmatpush1.msra.mxu0 0.0
      %1403 = vmatprep.subr.mxu0 0.0
      %1404 = vmatpush1.msra.mxu0 0.0
      %1405 = vmatprep.subr.mxu0 0.0
      %1406 = vmatpush1.msra.mxu0 0.0
      %1407 = vmatprep.subr.mxu0 0.0
      %1408 = vmatpush1.msra.mxu0 0.0
      %1409 = vmatprep.subr.mxu0 0.0
      %1410 = vmatpush1.msra.mxu0 0.0
      %1411 = vmatprep.subr.mxu0 0.0
      %1412 = vmatpush1.msra.mxu0 0.0
      %1413 = vmatprep.subr.mxu0 0.0
      %1414 = vmatpush1.msra.mxu0 0.0
      %1415 = vmatprep.subr.mxu0 0.0
      %1416 = vmatpush1.msra.mxu0 0.0
      %1417 = vmatprep.subr.mxu0 0.0
      %1418 = vmatpush1.msra.mxu0 0.0
      %1419 = vmatprep.subr.mxu0 0.0
      %1420 = vmatpush1.msra.mxu0 0.0
      %1421 = vmatprep.subr.mxu0 0.0
      %1422 = vmatpush1.msra.mxu0 0.0
      %1423 = vmatprep.subr.mxu0 0.0
      %1424 = vmatpush1.msra.mxu0 0.0
      %1425 = vmatprep.subr.mxu0 0.0
      %1426 = vmatpush1.msra.mxu0 0.0
      %1427 = vmatprep.subr.mxu0 0.0
      %1428 = vmatpush1.msra.mxu0 0.0
      %1429 = vmatprep.subr.mxu0 0.0
      %1430 = vmatpush1.msra.mxu0 0.0
      %1431 = vmatprep.subr.mxu0 0.0
      %1432 = vmatpush1.msra.mxu0 0.0
      %1433 = vmatprep.subr.mxu0 0.0
      %1434 = vmatpush1.msra.mxu0 0.0
      %1435 = vmatprep.subr.mxu0 0.0
      %1436 = vmatpush1.msra.mxu0 0.0
      %1437 = vmatprep.subr.mxu0 0.0
      %1438 = vmatpush1.msra.mxu0 0.0
      %1439 = vmatprep.subr.mxu0 0.0
      %1440 = vmatpush1.msra.mxu0 0.0
      %1441 = vmatprep.mubr.f32.mxu0 0.0
      %v1442 = vand.u32 %v1281, 4294901760
      %1443 = vmatmul.mubr.f32.gmra.mrb[0].mxu0 %v1442
      %v1444 = vpop.f32.mrb[0].mxu0
      %v1445 = vadd.f32 %v1363, %v1444
      %v1446 = vpop.f32.mrb[0].mxu0
      %v1447 = vadd.f32 %v1365, %v1446
      %1448 = vdwg.mxu0
      %v1449 = vand.u32 %v1287, 4294901760
      %v1450 = vsub.f32 %v1287, %v1449
      %1451 = vmatprep.subr.mxu0 %v1450
      %v1452 = vand.u32 %v1284, 4294901760
      %v1453 = vsub.f32 %v1284, %v1452
      %1454 = vmatpush1.msra.mxu0 %v1453
      %1455 = vmatprep.subr.mxu0 0.0
      %1456 = vmatpush1.msra.mxu0 0.0
      %1457 = vmatprep.subr.mxu0 0.0
      %1458 = vmatpush1.msra.mxu0 0.0
      %1459 = vmatprep.subr.mxu0 0.0
      %1460 = vmatpush1.msra.mxu0 0.0
      %1461 = vmatprep.subr.mxu0 0.0
      %1462 = vmatpush1.msra.mxu0 0.0
      %1463 = vmatprep.subr.mxu0 0.0
      %1464 = vmatpush1.msra.mxu0 0.0
      %1465 = vmatprep.subr.mxu0 0.0
      %1466 = vmatpush1.msra.mxu0 0.0
      %1467 = vmatprep.subr.mxu0 0.0
      %1468 = vmatpush1.msra.mxu0 0.0
      %1469 = vmatprep.subr.mxu0 0.0
      %1470 = vmatpush1.msra.mxu0 0.0
      %1471 = vmatprep.subr.mxu0 0.0
      %1472 = vmatpush1.msra.mxu0 0.0
      %1473 = vmatprep.subr.mxu0 0.0
      %1474 = vmatpush1.msra.mxu0 0.0
      %1475 = vmatprep.subr.mxu0 0.0
      %1476 = vmatpush1.msra.mxu0 0.0
      %1477 = vmatprep.subr.mxu0 0.0
      %1478 = vmatpush1.msra.mxu0 0.0
      %1479 = vmatprep.subr.mxu0 0.0
      %1480 = vmatpush1.msra.mxu0 0.0
      %1481 = vmatprep.subr.mxu0 0.0
      %1482 = vmatpush1.msra.mxu0 0.0
      %1483 = vmatprep.subr.mxu0 0.0
      %1484 = vmatpush1.msra.mxu0 0.0
      %1485 = vmatprep.subr.mxu0 0.0
      %1486 = vmatpush1.msra.mxu0 0.0
      %1487 = vmatprep.subr.mxu0 0.0
      %1488 = vmatpush1.msra.mxu0 0.0
      %1489 = vmatprep.subr.mxu0 0.0
      %1490 = vmatpush1.msra.mxu0 0.0
      %1491 = vmatprep.subr.mxu0 0.0
      %1492 = vmatpush1.msra.mxu0 0.0
      %1493 = vmatprep.subr.mxu0 0.0
      %1494 = vmatpush1.msra.mxu0 0.0
      %1495 = vmatprep.subr.mxu0 0.0
      %1496 = vmatpush1.msra.mxu0 0.0
      %1497 = vmatprep.subr.mxu0 0.0
      %1498 = vmatpush1.msra.mxu0 0.0
      %1499 = vmatprep.subr.mxu0 0.0
      %1500 = vmatpush1.msra.mxu0 0.0
      %1501 = vmatprep.subr.mxu0 0.0
      %1502 = vmatpush1.msra.mxu0 0.0
      %1503 = vmatprep.subr.mxu0 0.0
      %1504 = vmatpush1.msra.mxu0 0.0
      %1505 = vmatprep.subr.mxu0 0.0
      %1506 = vmatpush1.msra.mxu0 0.0
      %1507 = vmatprep.subr.mxu0 0.0
      %1508 = vmatpush1.msra.mxu0 0.0
      %1509 = vmatprep.subr.mxu0 0.0
      %1510 = vmatpush1.msra.mxu0 0.0
      %1511 = vmatprep.subr.mxu0 0.0
      %1512 = vmatpush1.msra.mxu0 0.0
      %1513 = vmatprep.subr.mxu0 0.0
      %1514 = vmatpush1.msra.mxu0 0.0
      %1515 = vmatprep.subr.mxu0 0.0
      %1516 = vmatpush1.msra.mxu0 0.0
      %1517 = vmatprep.mubr.f32.mxu0 0.0
      %v1518 = vand.u32 %v1281, 4294901760
      %v1519 = vsub.f32 %v1281, %v1518
      %1520 = vmatmul.mubr.f32.gmra.mrb[0].mxu0 %v1519
      %v1521 = vpop.f32.mrb[0].mxu0
      %v1522 = vadd.f32 %v1445, %v1521
      %v1523 = vpop.f32.mrb[0].mxu0
      %v1524 = vadd.f32 %v1447, %v1523
      %1525 = vdwg.mxu0
      %v1526 = vand.u32 %v1287, 4294901760
      %1527 = vmatprep.subr.mxu0 %v1526
      %v1528 = vand.u32 %v1284, 4294901760
      %1529 = vmatpush1.msra.mxu0 %v1528
      %1530 = vmatprep.subr.mxu0 0.0
      %1531 = vmatpush1.msra.mxu0 0.0
      %1532 = vmatprep.subr.mxu0 0.0
      %1533 = vmatpush1.msra.mxu0 0.0
      %1534 = vmatprep.subr.mxu0 0.0
      %1535 = vmatpush1.msra.mxu0 0.0
      %1536 = vmatprep.subr.mxu0 0.0
      %1537 = vmatpush1.msra.mxu0 0.0
      %1538 = vmatprep.subr.mxu0 0.0
      %1539 = vmatpush1.msra.mxu0 0.0
      %1540 = vmatprep.subr.mxu0 0.0
      %1541 = vmatpush1.msra.mxu0 0.0
      %1542 = vmatprep.subr.mxu0 0.0
      %1543 = vmatpush1.msra.mxu0 0.0
      %1544 = vmatprep.subr.mxu0 0.0
      %1545 = vmatpush1.msra.mxu0 0.0
      %1546 = vmatprep.subr.mxu0 0.0
      %1547 = vmatpush1.msra.mxu0 0.0
      %1548 = vmatprep.subr.mxu0 0.0
      %1549 = vmatpush1.msra.mxu0 0.0
      %1550 = vmatprep.subr.mxu0 0.0
      %1551 = vmatpush1.msra.mxu0 0.0
      %1552 = vmatprep.subr.mxu0 0.0
      %1553 = vmatpush1.msra.mxu0 0.0
      %1554 = vmatprep.subr.mxu0 0.0
      %1555 = vmatpush1.msra.mxu0 0.0
      %1556 = vmatprep.subr.mxu0 0.0
      %1557 = vmatpush1.msra.mxu0 0.0
      %1558 = vmatprep.subr.mxu0 0.0
      %1559 = vmatpush1.msra.mxu0 0.0
      %1560 = vmatprep.subr.mxu0 0.0
      %1561 = vmatpush1.msra.mxu0 0.0
      %1562 = vmatprep.subr.mxu0 0.0
      %1563 = vmatpush1.msra.mxu0 0.0
      %1564 = vmatprep.subr.mxu0 0.0
      %1565 = vmatpush1.msra.mxu0 0.0
      %1566 = vmatprep.subr.mxu0 0.0
      %1567 = vmatpush1.msra.mxu0 0.0
      %1568 = vmatprep.subr.mxu0 0.0
      %1569 = vmatpush1.msra.mxu0 0.0
      %1570 = vmatprep.subr.mxu0 0.0
      %1571 = vmatpush1.msra.mxu0 0.0
      %1572 = vmatprep.subr.mxu0 0.0
      %1573 = vmatpush1.msra.mxu0 0.0
      %1574 = vmatprep.subr.mxu0 0.0
      %1575 = vmatpush1.msra.mxu0 0.0
      %1576 = vmatprep.subr.mxu0 0.0
      %1577 = vmatpush1.msra.mxu0 0.0
      %1578 = vmatprep.subr.mxu0 0.0
      %1579 = vmatpush1.msra.mxu0 0.0
      %1580 = vmatprep.subr.mxu0 0.0
      %1581 = vmatpush1.msra.mxu0 0.0
      %1582 = vmatprep.subr.mxu0 0.0
      %1583 = vmatpush1.msra.mxu0 0.0
      %1584 = vmatprep.subr.mxu0 0.0
      %1585 = vmatpush1.msra.mxu0 0.0
      %1586 = vmatprep.subr.mxu0 0.0
      %1587 = vmatpush1.msra.mxu0 0.0
      %1588 = vmatprep.subr.mxu0 0.0
      %1589 = vmatpush1.msra.mxu0 0.0
      %1590 = vmatprep.subr.mxu0 0.0
      %1591 = vmatpush1.msra.mxu0 0.0
      %1592 = vmatprep.mubr.f32.mxu0 0.0
      %v1593 = vand.u32 %v1281, 4294901760
      %v1594 = vsub.f32 %v1281, %v1593
      %v1595 = vand.u32 %v1594, 4294901760
      %1596 = vmatmul.mubr.f32.gmra.mrb[0].mxu0 %v1595
      %v1597 = vpop.f32.mrb[0].mxu0
      %v1598 = vadd.f32 %v1522, %v1597
      %v1599 = vpop.f32.mrb[0].mxu0
      %v1600 = vadd.f32 %v1524, %v1599
      %1601 = vdwg.mxu0
      %v1602 = vand.u32 %v1287, 4294901760
      %v1603 = vsub.f32 %v1287, %v1602
      %v1604 = vand.u32 %v1603, 4294901760
      %1605 = vmatprep.subr.mxu0 %v1604
      %v1606 = vand.u32 %v1284, 4294901760
      %v1607 = vsub.f32 %v1284, %v1606
      %v1608 = vand.u32 %v1607, 4294901760
      %1609 = vmatpush1.msra.mxu0 %v1608
      %1610 = vmatprep.subr.mxu0 0.0
      %1611 = vmatpush1.msra.mxu0 0.0
      %1612 = vmatprep.subr.mxu0 0.0
      %1613 = vmatpush1.msra.mxu0 0.0
      %1614 = vmatprep.subr.mxu0 0.0
      %1615 = vmatpush1.msra.mxu0 0.0
      %1616 = vmatprep.subr.mxu0 0.0
      %1617 = vmatpush1.msra.mxu0 0.0
      %1618 = vmatprep.subr.mxu0 0.0
      %1619 = vmatpush1.msra.mxu0 0.0
      %1620 = vmatprep.subr.mxu0 0.0
      %1621 = vmatpush1.msra.mxu0 0.0
      %1622 = vmatprep.subr.mxu0 0.0
      %1623 = vmatpush1.msra.mxu0 0.0
      %1624 = vmatprep.subr.mxu0 0.0
      %1625 = vmatpush1.msra.mxu0 0.0
      %1626 = vmatprep.subr.mxu0 0.0
      %1627 = vmatpush1.msra.mxu0 0.0
      %1628 = vmatprep.subr.mxu0 0.0
      %1629 = vmatpush1.msra.mxu0 0.0
      %1630 = vmatprep.subr.mxu0 0.0
      %1631 = vmatpush1.msra.mxu0 0.0
      %1632 = vmatprep.subr.mxu0 0.0
      %1633 = vmatpush1.msra.mxu0 0.0
      %1634 = vmatprep.subr.mxu0 0.0
      %1635 = vmatpush1.msra.mxu0 0.0
      %1636 = vmatprep.subr.mxu0 0.0
      %1637 = vmatpush1.msra.mxu0 0.0
      %1638 = vmatprep.subr.mxu0 0.0
      %1639 = vmatpush1.msra.mxu0 0.0
      %1640 = vmatprep.subr.mxu0 0.0
      %1641 = vmatpush1.msra.mxu0 0.0
      %1642 = vmatprep.subr.mxu0 0.0
      %1643 = vmatpush1.msra.mxu0 0.0
      %1644 = vmatprep.subr.mxu0 0.0
      %1645 = vmatpush1.msra.mxu0 0.0
      %1646 = vmatprep.subr.mxu0 0.0
      %1647 = vmatpush1.msra.mxu0 0.0
      %1648 = vmatprep.subr.mxu0 0.0
      %1649 = vmatpush1.msra.mxu0 0.0
      %1650 = vmatprep.subr.mxu0 0.0
      %1651 = vmatpush1.msra.mxu0 0.0
      %1652 = vmatprep.subr.mxu0 0.0
      %1653 = vmatpush1.msra.mxu0 0.0
      %1654 = vmatprep.subr.mxu0 0.0
      %1655 = vmatpush1.msra.mxu0 0.0
      %1656 = vmatprep.subr.mxu0 0.0
      %1657 = vmatpush1.msra.mxu0 0.0
      %1658 = vmatprep.subr.mxu0 0.0
      %1659 = vmatpush1.msra.mxu0 0.0
      %1660 = vmatprep.subr.mxu0 0.0
      %1661 = vmatpush1.msra.mxu0 0.0
      %1662 = vmatprep.subr.mxu0 0.0
      %1663 = vmatpush1.msra.mxu0 0.0
      %1664 = vmatprep.subr.mxu0 0.0
      %1665 = vmatpush1.msra.mxu0 0.0
      %1666 = vmatprep.subr.mxu0 0.0
      %1667 = vmatpush1.msra.mxu0 0.0
      %1668 = vmatprep.subr.mxu0 0.0
      %1669 = vmatpush1.msra.mxu0 0.0
      %1670 = vmatprep.subr.mxu0 0.0
      %1671 = vmatpush1.msra.mxu0 0.0
      %1672 = vmatprep.mubr.f32.mxu0 0.0
      %v1673 = vand.u32 %v1281, 4294901760
      %1674 = vmatmul.mubr.f32.gmra.mrb[0].mxu0 %v1673
      %v1675 = vpop.f32.mrb[0].mxu0
      %v1676 = vadd.f32 %v1598, %v1675
      %v1677 = vpop.f32.mrb[0].mxu0
      %v1678 = vadd.f32 %v1600, %v1677
      %1679 = vdwg.mxu0
      %v1680 = vand.u32 %v1287, 4294901760
      %1681 = vmatprep.subr.mxu0 %v1680
      %v1682 = vand.u32 %v1284, 4294901760
      %1683 = vmatpush1.msra.mxu0 %v1682
      %1684 = vmatprep.subr.mxu0 0.0
      %1685 = vmatpush1.msra.mxu0 0.0
      %1686 = vmatprep.subr.mxu0 0.0
      %1687 = vmatpush1.msra.mxu0 0.0
      %1688 = vmatprep.subr.mxu0 0.0
      %1689 = vmatpush1.msra.mxu0 0.0
      %1690 = vmatprep.subr.mxu0 0.0
      %1691 = vmatpush1.msra.mxu0 0.0
      %1692 = vmatprep.subr.mxu0 0.0
      %1693 = vmatpush1.msra.mxu0 0.0
      %1694 = vmatprep.subr.mxu0 0.0
      %1695 = vmatpush1.msra.mxu0 0.0
      %1696 = vmatprep.subr.mxu0 0.0
      %1697 = vmatpush1.msra.mxu0 0.0
      %1698 = vmatprep.subr.mxu0 0.0
      %1699 = vmatpush1.msra.mxu0 0.0
      %1700 = vmatprep.subr.mxu0 0.0
      %1701 = vmatpush1.msra.mxu0 0.0
      %1702 = vmatprep.subr.mxu0 0.0
      %1703 = vmatpush1.msra.mxu0 0.0
      %1704 = vmatprep.subr.mxu0 0.0
      %1705 = vmatpush1.msra.mxu0 0.0
      %1706 = vmatprep.subr.mxu0 0.0
      %1707 = vmatpush1.msra.mxu0 0.0
      %1708 = vmatprep.subr.mxu0 0.0
      %1709 = vmatpush1.msra.mxu0 0.0
      %1710 = vmatprep.subr.mxu0 0.0
      %1711 = vmatpush1.msra.mxu0 0.0
      %1712 = vmatprep.subr.mxu0 0.0
      %1713 = vmatpush1.msra.mxu0 0.0
      %1714 = vmatprep.subr.mxu0 0.0
      %1715 = vmatpush1.msra.mxu0 0.0
      %1716 = vmatprep.subr.mxu0 0.0
      %1717 = vmatpush1.msra.mxu0 0.0
      %1718 = vmatprep.subr.mxu0 0.0
      %1719 = vmatpush1.msra.mxu0 0.0
      %1720 = vmatprep.subr.mxu0 0.0
      %1721 = vmatpush1.msra.mxu0 0.0
      %1722 = vmatprep.subr.mxu0 0.0
      %1723 = vmatpush1.msra.mxu0 0.0
      %1724 = vmatprep.subr.mxu0 0.0
      %1725 = vmatpush1.msra.mxu0 0.0
      %1726 = vmatprep.subr.mxu0 0.0
      %1727 = vmatpush1.msra.mxu0 0.0
      %1728 = vmatprep.subr.mxu0 0.0
      %1729 = vmatpush1.msra.mxu0 0.0
      %1730 = vmatprep.subr.mxu0 0.0
      %1731 = vmatpush1.msra.mxu0 0.0
      %1732 = vmatprep.subr.mxu0 0.0
      %1733 = vmatpush1.msra.mxu0 0.0
      %1734 = vmatprep.subr.mxu0 0.0
      %1735 = vmatpush1.msra.mxu0 0.0
      %1736 = vmatprep.subr.mxu0 0.0
      %1737 = vmatpush1.msra.mxu0 0.0
      %1738 = vmatprep.subr.mxu0 0.0
      %1739 = vmatpush1.msra.mxu0 0.0
      %1740 = vmatprep.subr.mxu0 0.0
      %1741 = vmatpush1.msra.mxu0 0.0
      %1742 = vmatprep.subr.mxu0 0.0
      %1743 = vmatpush1.msra.mxu0 0.0
      %1744 = vmatprep.subr.mxu0 0.0
      %1745 = vmatpush1.msra.mxu0 0.0
      %1746 = vmatprep.mubr.f32.mxu0 0.0
      %v1747 = vand.u32 %v1281, 4294901760
      %1748 = vmatmul.mubr.f32.gmra.mrb[0].mxu0 %v1747
      %v1749 = vpop.f32.mrb[0].mxu0
      %v1750 = vadd.f32 %v1676, %v1749
      %v1751 = vpop.f32.mrb[0].mxu0
      %v1752 = vadd.f32 %v1678, %v1751
      %1753 = vdwg.mxu0
      %v1754 = vadd.f32 %v1254, %v1750
      %v1755 = vadd.f32 %v1256, %v1752
      %1756 = vrot.lane.b32.xlu0 %v252, 1
      %v1757 = vpop.permute.xlu0 %1756
      %1758 = vrot.lane.b32.xlu0 %v261, 1
      %v1759 = vpop.permute.xlu0 %1758
      %v1760 = vsel %vm289, %v1757, %v1759
      %v1761 = vsel %vm289, %v1759, %v1757
      %v1762 = vmul.f32 %v1761, %v296
      %v1763 = vmul.f32 %v1760, %v300
      %s1764 = scalar_lea.vmem %s2, 6
      %v1765 = vld [vmem:[%s1764] sm:$0x3]
      %v1767 = vsel %vm308, %v1765, 0
      %v1770 = vsel %vm312, %v1762, 0
      %v1773 = vsel %vm312, %v1763, 0
      %v1775 = vand.u32 %v1773, 4294901760
      %1776 = vmatprep.subr.mxu0 %v1775
      %v1777 = vand.u32 %v1770, 4294901760
      %1778 = vmatpush1.msra.mxu0 %v1777
      %1779 = vmatprep.subr.mxu0 0.0
      %1780 = vmatpush1.msra.mxu0 0.0
      %1781 = vmatprep.subr.mxu0 0.0
      %1782 = vmatpush1.msra.mxu0 0.0
      %1783 = vmatprep.subr.mxu0 0.0
      %1784 = vmatpush1.msra.mxu0 0.0
      %1785 = vmatprep.subr.mxu0 0.0
      %1786 = vmatpush1.msra.mxu0 0.0
      %1787 = vmatprep.subr.mxu0 0.0
      %1788 = vmatpush1.msra.mxu0 0.0
      %1789 = vmatprep.subr.mxu0 0.0
      %1790 = vmatpush1.msra.mxu0 0.0
      %1791 = vmatprep.subr.mxu0 0.0
      %1792 = vmatpush1.msra.mxu0 0.0
      %1793 = vmatprep.subr.mxu0 0.0
      %1794 = vmatpush1.msra.mxu0 0.0
      %1795 = vmatprep.subr.mxu0 0.0
      %1796 = vmatpush1.msra.mxu0 0.0
      %1797 = vmatprep.subr.mxu0 0.0
      %1798 = vmatpush1.msra.mxu0 0.0
      %1799 = vmatprep.subr.mxu0 0.0
      %1800 = vmatpush1.msra.mxu0 0.0
      %1801 = vmatprep.subr.mxu0 0.0
      %1802 = vmatpush1.msra.mxu0 0.0
      %1803 = vmatprep.subr.mxu0 0.0
      %1804 = vmatpush1.msra.mxu0 0.0
      %1805 = vmatprep.subr.mxu0 0.0
      %1806 = vmatpush1.msra.mxu0 0.0
      %1807 = vmatprep.subr.mxu0 0.0
      %1808 = vmatpush1.msra.mxu0 0.0
      %1809 = vmatprep.subr.mxu0 0.0
      %1810 = vmatpush1.msra.mxu0 0.0
      %1811 = vmatprep.subr.mxu0 0.0
      %1812 = vmatpush1.msra.mxu0 0.0
      %1813 = vmatprep.subr.mxu0 0.0
      %1814 = vmatpush1.msra.mxu0 0.0
      %1815 = vmatprep.subr.mxu0 0.0
      %1816 = vmatpush1.msra.mxu0 0.0
      %1817 = vmatprep.subr.mxu0 0.0
      %1818 = vmatpush1.msra.mxu0 0.0
      %1819 = vmatprep.subr.mxu0 0.0
      %1820 = vmatpush1.msra.mxu0 0.0
      %1821 = vmatprep.subr.mxu0 0.0
      %1822 = vmatpush1.msra.mxu0 0.0
      %1823 = vmatprep.subr.mxu0 0.0
      %1824 = vmatpush1.msra.mxu0 0.0
      %1825 = vmatprep.subr.mxu0 0.0
      %1826 = vmatpush1.msra.mxu0 0.0
      %1827 = vmatprep.subr.mxu0 0.0
      %1828 = vmatpush1.msra.mxu0 0.0
      %1829 = vmatprep.subr.mxu0 0.0
      %1830 = vmatpush1.msra.mxu0 0.0
      %1831 = vmatprep.subr.mxu0 0.0
      %1832 = vmatpush1.msra.mxu0 0.0
      %1833 = vmatprep.subr.mxu0 0.0
      %1834 = vmatpush1.msra.mxu0 0.0
      %1835 = vmatprep.subr.mxu0 0.0
      %1836 = vmatpush1.msra.mxu0 0.0
      %1837 = vmatprep.subr.mxu0 0.0
      %1838 = vmatpush1.msra.mxu0 0.0
      %1839 = vmatprep.subr.mxu0 0.0
      %1840 = vmatpush1.msra.mxu0 0.0
      %1841 = vmatprep.mubr.f32.mxu0 0.0
      %v1842 = vand.u32 %v1767, 4294901760
      %v1843 = vsub.f32 %v1767, %v1842
      %v1844 = vand.u32 %v1843, 4294901760
      %v1845 = vsub.f32 %v1843, %v1844
      %v1846 = vand.u32 %v1845, 4294901760
      %1847 = vmatmul.mubr.f32.gmra.mrb[0].mxu0 %v1846
      %v1848 = vpop.f32.mrb[0].mxu0
      %v1849 = vadd.f32 0.0, %v1848
      %v1850 = vpop.f32.mrb[0].mxu0
      %v1851 = vadd.f32 0.0, %v1850
      %1852 = vdwg.mxu0
      %v1853 = vand.u32 %v1773, 4294901760
      %v1854 = vsub.f32 %v1773, %v1853
      %v1855 = vand.u32 %v1854, 4294901760
      %v1856 = vsub.f32 %v1854, %v1855
      %v1857 = vand.u32 %v1856, 4294901760
      %1858 = vmatprep.subr.mxu0 %v1857
      %v1859 = vand.u32 %v1770, 4294901760
      %v1860 = vsub.f32 %v1770, %v1859
      %v1861 = vand.u32 %v1860, 4294901760
      %v1862 = vsub.f32 %v1860, %v1861
      %v1863 = vand.u32 %v1862, 4294901760
      %1864 = vmatpush1.msra.mxu0 %v1863
      %1865 = vmatprep.subr.mxu0 0.0
      %1866 = vmatpush1.msra.mxu0 0.0
      %1867 = vmatprep.subr.mxu0 0.0
      %1868 = vmatpush1.msra.mxu0 0.0
      %1869 = vmatprep.subr.mxu0 0.0
      %1870 = vmatpush1.msra.mxu0 0.0
      %1871 = vmatprep.subr.mxu0 0.0
      %1872 = vmatpush1.msra.mxu0 0.0
      %1873 = vmatprep.subr.mxu0 0.0
      %1874 = vmatpush1.msra.mxu0 0.0
      %1875 = vmatprep.subr.mxu0 0.0
      %1876 = vmatpush1.msra.mxu0 0.0
      %1877 = vmatprep.subr.mxu0 0.0
      %1878 = vmatpush1.msra.mxu0 0.0
      %1879 = vmatprep.subr.mxu0 0.0
      %1880 = vmatpush1.msra.mxu0 0.0
      %1881 = vmatprep.subr.mxu0 0.0
      %1882 = vmatpush1.msra.mxu0 0.0
      %1883 = vmatprep.subr.mxu0 0.0
      %1884 = vmatpush1.msra.mxu0 0.0
      %1885 = vmatprep.subr.mxu0 0.0
      %1886 = vmatpush1.msra.mxu0 0.0
      %1887 = vmatprep.subr.mxu0 0.0
      %1888 = vmatpush1.msra.mxu0 0.0
      %1889 = vmatprep.subr.mxu0 0.0
      %1890 = vmatpush1.msra.mxu0 0.0
      %1891 = vmatprep.subr.mxu0 0.0
      %1892 = vmatpush1.msra.mxu0 0.0
      %1893 = vmatprep.subr.mxu0 0.0
      %1894 = vmatpush1.msra.mxu0 0.0
      %1895 = vmatprep.subr.mxu0 0.0
      %1896 = vmatpush1.msra.mxu0 0.0
      %1897 = vmatprep.subr.mxu0 0.0
      %1898 = vmatpush1.msra.mxu0 0.0
      %1899 = vmatprep.subr.mxu0 0.0
      %1900 = vmatpush1.msra.mxu0 0.0
      %1901 = vmatprep.subr.mxu0 0.0
      %1902 = vmatpush1.msra.mxu0 0.0
      %1903 = vmatprep.subr.mxu0 0.0
      %1904 = vmatpush1.msra.mxu0 0.0
      %1905 = vmatprep.subr.mxu0 0.0
      %1906 = vmatpush1.msra.mxu0 0.0
      %1907 = vmatprep.subr.mxu0 0.0
      %1908 = vmatpush1.msra.mxu0 0.0
      %1909 = vmatprep.subr.mxu0 0.0
      %1910 = vmatpush1.msra.mxu0 0.0
      %1911 = vmatprep.subr.mxu0 0.0
      %1912 = vmatpush1.msra.mxu0 0.0
      %1913 = vmatprep.subr.mxu0 0.0
      %1914 = vmatpush1.msra.mxu0 0.0
      %1915 = vmatprep.subr.mxu0 0.0
      %1916 = vmatpush1.msra.mxu0 0.0
      %1917 = vmatprep.subr.mxu0 0.0
      %1918 = vmatpush1.msra.mxu0 0.0
      %1919 = vmatprep.subr.mxu0 0.0
      %1920 = vmatpush1.msra.mxu0 0.0
      %1921 = vmatprep.subr.mxu0 0.0
      %1922 = vmatpush1.msra.mxu0 0.0
      %1923 = vmatprep.subr.mxu0 0.0
      %1924 = vmatpush1.msra.mxu0 0.0
      %1925 = vmatprep.subr.mxu0 0.0
      %1926 = vmatpush1.msra.mxu0 0.0
      %1927 = vmatprep.mubr.f32.mxu0 0.0
      %v1928 = vand.u32 %v1767, 4294901760
      %1929 = vmatmul.mubr.f32.gmra.mrb[0].mxu0 %v1928
      %v1930 = vpop.f32.mrb[0].mxu0
      %v1931 = vadd.f32 %v1849, %v1930
      %v1932 = vpop.f32.mrb[0].mxu0
      %v1933 = vadd.f32 %v1851, %v1932
      %1934 = vdwg.mxu0
      %v1935 = vand.u32 %v1773, 4294901760
      %v1936 = vsub.f32 %v1773, %v1935
      %1937 = vmatprep.subr.mxu0 %v1936
      %v1938 = vand.u32 %v1770, 4294901760
      %v1939 = vsub.f32 %v1770, %v1938
      %1940 = vmatpush1.msra.mxu0 %v1939
      %1941 = vmatprep.subr.mxu0 0.0
      %1942 = vmatpush1.msra.mxu0 0.0
      %1943 = vmatprep.subr.mxu0 0.0
      %1944 = vmatpush1.msra.mxu0 0.0
      %1945 = vmatprep.subr.mxu0 0.0
      %1946 = vmatpush1.msra.mxu0 0.0
      %1947 = vmatprep.subr.mxu0 0.0
      %1948 = vmatpush1.msra.mxu0 0.0
      %1949 = vmatprep.subr.mxu0 0.0
      %1950 = vmatpush1.msra.mxu0 0.0
      %1951 = vmatprep.subr.mxu0 0.0
      %1952 = vmatpush1.msra.mxu0 0.0
      %1953 = vmatprep.subr.mxu0 0.0
      %1954 = vmatpush1.msra.mxu0 0.0
      %1955 = vmatprep.subr.mxu0 0.0
      %1956 = vmatpush1.msra.mxu0 0.0
      %1957 = vmatprep.subr.mxu0 0.0
      %1958 = vmatpush1.msra.mxu0 0.0
      %1959 = vmatprep.subr.mxu0 0.0
      %1960 = vmatpush1.msra.mxu0 0.0
      %1961 = vmatprep.subr.mxu0 0.0
      %1962 = vmatpush1.msra.mxu0 0.0
      %1963 = vmatprep.subr.mxu0 0.0
      %1964 = vmatpush1.msra.mxu0 0.0
      %1965 = vmatprep.subr.mxu0 0.0
      %1966 = vmatpush1.msra.mxu0 0.0
      %1967 = vmatprep.subr.mxu0 0.0
      %1968 = vmatpush1.msra.mxu0 0.0
      %1969 = vmatprep.subr.mxu0 0.0
      %1970 = vmatpush1.msra.mxu0 0.0
      %1971 = vmatprep.subr.mxu0 0.0
      %1972 = vmatpush1.msra.mxu0 0.0
      %1973 = vmatprep.subr.mxu0 0.0
      %1974 = vmatpush1.msra.mxu0 0.0
      %1975 = vmatprep.subr.mxu0 0.0
      %1976 = vmatpush1.msra.mxu0 0.0
      %1977 = vmatprep.subr.mxu0 0.0
      %1978 = vmatpush1.msra.mxu0 0.0
      %1979 = vmatprep.subr.mxu0 0.0
      %1980 = vmatpush1.msra.mxu0 0.0
      %1981 = vmatprep.subr.mxu0 0.0
      %1982 = vmatpush1.msra.mxu0 0.0
      %1983 = vmatprep.subr.mxu0 0.0
      %1984 = vmatpush1.msra.mxu0 0.0
      %1985 = vmatprep.subr.mxu0 0.0
      %1986 = vmatpush1.msra.mxu0 0.0
      %1987 = vmatprep.subr.mxu0 0.0
      %1988 = vmatpush1.msra.mxu0 0.0
      %1989 = vmatprep.subr.mxu0 0.0
      %1990 = vmatpush1.msra.mxu0 0.0
      %1991 = vmatprep.subr.mxu0 0.0
      %1992 = vmatpush1.msra.mxu0 0.0
      %1993 = vmatprep.subr.mxu0 0.0
      %1994 = vmatpush1.msra.mxu0 0.0
      %1995 = vmatprep.subr.mxu0 0.0
      %1996 = vmatpush1.msra.mxu0 0.0
      %1997 = vmatprep.subr.mxu0 0.0
      %1998 = vmatpush1.msra.mxu0 0.0
      %1999 = vmatprep.subr.mxu0 0.0
      %2000 = vmatpush1.msra.mxu0 0.0
      %2001 = vmatprep.subr.mxu0 0.0
      %2002 = vmatpush1.msra.mxu0 0.0
      %2003 = vmatprep.mubr.f32.mxu0 0.0
      %v2004 = vand.u32 %v1767, 4294901760
      %v2005 = vsub.f32 %v1767, %v2004
      %2006 = vmatmul.mubr.f32.gmra.mrb[0].mxu0 %v2005
      %v2007 = vpop.f32.mrb[0].mxu0
      %v2008 = vadd.f32 %v1931, %v2007
      %v2009 = vpop.f32.mrb[0].mxu0
      %v2010 = vadd.f32 %v1933, %v2009
      %2011 = vdwg.mxu0
      %v2012 = vand.u32 %v1773, 4294901760
      %2013 = vmatprep.subr.mxu0 %v2012
      %v2014 = vand.u32 %v1770, 4294901760
      %2015 = vmatpush1.msra.mxu0 %v2014
      %2016 = vmatprep.subr.mxu0 0.0
      %2017 = vmatpush1.msra.mxu0 0.0
      %2018 = vmatprep.subr.mxu0 0.0
      %2019 = vmatpush1.msra.mxu0 0.0
      %2020 = vmatprep.subr.mxu0 0.0
      %2021 = vmatpush1.msra.mxu0 0.0
      %2022 = vmatprep.subr.mxu0 0.0
      %2023 = vmatpush1.msra.mxu0 0.0
      %2024 = vmatprep.subr.mxu0 0.0
      %2025 = vmatpush1.msra.mxu0 0.0
      %2026 = vmatprep.subr.mxu0 0.0
      %2027 = vmatpush1.msra.mxu0 0.0
      %2028 = vmatprep.subr.mxu0 0.0
      %2029 = vmatpush1.msra.mxu0 0.0
      %2030 = vmatprep.subr.mxu0 0.0
      %2031 = vmatpush1.msra.mxu0 0.0
      %2032 = vmatprep.subr.mxu0 0.0
      %2033 = vmatpush1.msra.mxu0 0.0
      %2034 = vmatprep.subr.mxu0 0.0
      %2035 = vmatpush1.msra.mxu0 0.0
      %2036 = vmatprep.subr.mxu0 0.0
      %2037 = vmatpush1.msra.mxu0 0.0
      %2038 = vmatprep.subr.mxu0 0.0
      %2039 = vmatpush1.msra.mxu0 0.0
      %2040 = vmatprep.subr.mxu0 0.0
      %2041 = vmatpush1.msra.mxu0 0.0
      %2042 = vmatprep.subr.mxu0 0.0
      %2043 = vmatpush1.msra.mxu0 0.0
      %2044 = vmatprep.subr.mxu0 0.0
      %2045 = vmatpush1.msra.mxu0 0.0
      %2046 = vmatprep.subr.mxu0 0.0
      %2047 = vmatpush1.msra.mxu0 0.0
      %2048 = vmatprep.subr.mxu0 0.0
      %2049 = vmatpush1.msra.mxu0 0.0
      %2050 = vmatprep.subr.mxu0 0.0
      %2051 = vmatpush1.msra.mxu0 0.0
      %2052 = vmatprep.subr.mxu0 0.0
      %2053 = vmatpush1.msra.mxu0 0.0
      %2054 = vmatprep.subr.mxu0 0.0
      %2055 = vmatpush1.msra.mxu0 0.0
      %2056 = vmatprep.subr.mxu0 0.0
      %2057 = vmatpush1.msra.mxu0 0.0
      %2058 = vmatprep.subr.mxu0 0.0
      %2059 = vmatpush1.msra.mxu0 0.0
      %2060 = vmatprep.subr.mxu0 0.0
      %2061 = vmatpush1.msra.mxu0 0.0
      %2062 = vmatprep.subr.mxu0 0.0
      %2063 = vmatpush1.msra.mxu0 0.0
      %2064 = vmatprep.subr.mxu0 0.0
      %2065 = vmatpush1.msra.mxu0 0.0
      %2066 = vmatprep.subr.mxu0 0.0
      %2067 = vmatpush1.msra.mxu0 0.0
      %2068 = vmatprep.subr.mxu0 0.0
      %2069 = vmatpush1.msra.mxu0 0.0
      %2070 = vmatprep.subr.mxu0 0.0
      %2071 = vmatpush1.msra.mxu0 0.0
      %2072 = vmatprep.subr.mxu0 0.0
      %2073 = vmatpush1.msra.mxu0 0.0
      %2074 = vmatprep.subr.mxu0 0.0
      %2075 = vmatpush1.msra.mxu0 0.0
      %2076 = vmatprep.subr.mxu0 0.0
      %2077 = vmatpush1.msra.mxu0 0.0
      %2078 = vmatprep.mubr.f32.mxu0 0.0
      %v2079 = vand.u32 %v1767, 4294901760
      %v2080 = vsub.f32 %v1767, %v2079
      %v2081 = vand.u32 %v2080, 4294901760
      %2082 = vmatmul.mubr.f32.gmra.mrb[0].mxu0 %v2081
      %v2083 = vpop.f32.mrb[0].mxu0
      %v2084 = vadd.f32 %v2008, %v2083
      %v2085 = vpop.f32.mrb[0].mxu0
      %v2086 = vadd.f32 %v2010, %v2085
      %2087 = vdwg.mxu0
      %v2088 = vand.u32 %v1773, 4294901760
      %v2089 = vsub.f32 %v1773, %v2088
      %v2090 = vand.u32 %v2089, 4294901760
      %2091 = vmatprep.subr.mxu0 %v2090
      %v2092 = vand.u32 %v1770, 4294901760
      %v2093 = vsub.f32 %v1770, %v2092
      %v2094 = vand.u32 %v2093, 4294901760
      %2095 = vmatpush1.msra.mxu0 %v2094
      %2096 = vmatprep.subr.mxu0 0.0
      %2097 = vmatpush1.msra.mxu0 0.0
      %2098 = vmatprep.subr.mxu0 0.0
      %2099 = vmatpush1.msra.mxu0 0.0
      %2100 = vmatprep.subr.mxu0 0.0
      %2101 = vmatpush1.msra.mxu0 0.0
      %2102 = vmatprep.subr.mxu0 0.0
      %2103 = vmatpush1.msra.mxu0 0.0
      %2104 = vmatprep.subr.mxu0 0.0
      %2105 = vmatpush1.msra.mxu0 0.0
      %2106 = vmatprep.subr.mxu0 0.0
      %2107 = vmatpush1.msra.mxu0 0.0
      %2108 = vmatprep.subr.mxu0 0.0
      %2109 = vmatpush1.msra.mxu0 0.0
      %2110 = vmatprep.subr.mxu0 0.0
      %2111 = vmatpush1.msra.mxu0 0.0
      %2112 = vmatprep.subr.mxu0 0.0
      %2113 = vmatpush1.msra.mxu0 0.0
      %2114 = vmatprep.subr.mxu0 0.0
      %2115 = vmatpush1.msra.mxu0 0.0
      %2116 = vmatprep.subr.mxu0 0.0
      %2117 = vmatpush1.msra.mxu0 0.0
      %2118 = vmatprep.subr.mxu0 0.0
      %2119 = vmatpush1.msra.mxu0 0.0
      %2120 = vmatprep.subr.mxu0 0.0
      %2121 = vmatpush1.msra.mxu0 0.0
      %2122 = vmatprep.subr.mxu0 0.0
      %2123 = vmatpush1.msra.mxu0 0.0
      %2124 = vmatprep.subr.mxu0 0.0
      %2125 = vmatpush1.msra.mxu0 0.0
      %2126 = vmatprep.subr.mxu0 0.0
      %2127 = vmatpush1.msra.mxu0 0.0
      %2128 = vmatprep.subr.mxu0 0.0
      %2129 = vmatpush1.msra.mxu0 0.0
      %2130 = vmatprep.subr.mxu0 0.0
      %2131 = vmatpush1.msra.mxu0 0.0
      %2132 = vmatprep.subr.mxu0 0.0
      %2133 = vmatpush1.msra.mxu0 0.0
      %2134 = vmatprep.subr.mxu0 0.0
      %2135 = vmatpush1.msra.mxu0 0.0
      %2136 = vmatprep.subr.mxu0 0.0
      %2137 = vmatpush1.msra.mxu0 0.0
      %2138 = vmatprep.subr.mxu0 0.0
      %2139 = vmatpush1.msra.mxu0 0.0
      %2140 = vmatprep.subr.mxu0 0.0
      %2141 = vmatpush1.msra.mxu0 0.0
      %2142 = vmatprep.subr.mxu0 0.0
      %2143 = vmatpush1.msra.mxu0 0.0
      %2144 = vmatprep.subr.mxu0 0.0
      %2145 = vmatpush1.msra.mxu0 0.0
      %2146 = vmatprep.subr.mxu0 0.0
      %2147 = vmatpush1.msra.mxu0 0.0
      %2148 = vmatprep.subr.mxu0 0.0
      %2149 = vmatpush1.msra.mxu0 0.0
      %2150 = vmatprep.subr.mxu0 0.0
      %2151 = vmatpush1.msra.mxu0 0.0
      %2152 = vmatprep.subr.mxu0 0.0
      %2153 = vmatpush1.msra.mxu0 0.0
      %2154 = vmatprep.subr.mxu0 0.0
      %2155 = vmatpush1.msra.mxu0 0.0
      %2156 = vmatprep.subr.mxu0 0.0
      %2157 = vmatpush1.msra.mxu0 0.0
      %2158 = vmatprep.mubr.f32.mxu0 0.0
      %v2159 = vand.u32 %v1767, 4294901760
      %2160 = vmatmul.mubr.f32.gmra.mrb[0].mxu0 %v2159
      %v2161 = vpop.f32.mrb[0].mxu0
      %v2162 = vadd.f32 %v2084, %v2161
      %v2163 = vpop.f32.mrb[0].mxu0
      %v2164 = vadd.f32 %v2086, %v2163
      %2165 = vdwg.mxu0
      %v2166 = vand.u32 %v1773, 4294901760
      %2167 = vmatprep.subr.mxu0 %v2166
      %v2168 = vand.u32 %v1770, 4294901760
      %2169 = vmatpush1.msra.mxu0 %v2168
      %2170 = vmatprep.subr.mxu0 0.0
      %2171 = vmatpush1.msra.mxu0 0.0
      %2172 = vmatprep.subr.mxu0 0.0
      %2173 = vmatpush1.msra.mxu0 0.0
      %2174 = vmatprep.subr.mxu0 0.0
      %2175 = vmatpush1.msra.mxu0 0.0
      %2176 = vmatprep.subr.mxu0 0.0
      %2177 = vmatpush1.msra.mxu0 0.0
      %2178 = vmatprep.subr.mxu0 0.0
      %2179 = vmatpush1.msra.mxu0 0.0
      %2180 = vmatprep.subr.mxu0 0.0
      %2181 = vmatpush1.msra.mxu0 0.0
      %2182 = vmatprep.subr.mxu0 0.0
      %2183 = vmatpush1.msra.mxu0 0.0
      %2184 = vmatprep.subr.mxu0 0.0
      %2185 = vmatpush1.msra.mxu0 0.0
      %2186 = vmatprep.subr.mxu0 0.0
      %2187 = vmatpush1.msra.mxu0 0.0
      %2188 = vmatprep.subr.mxu0 0.0
      %2189 = vmatpush1.msra.mxu0 0.0
      %2190 = vmatprep.subr.mxu0 0.0
      %2191 = vmatpush1.msra.mxu0 0.0
      %2192 = vmatprep.subr.mxu0 0.0
      %2193 = vmatpush1.msra.mxu0 0.0
      %2194 = vmatprep.subr.mxu0 0.0
      %2195 = vmatpush1.msra.mxu0 0.0
      %2196 = vmatprep.subr.mxu0 0.0
      %2197 = vmatpush1.msra.mxu0 0.0
      %2198 = vmatprep.subr.mxu0 0.0
      %2199 = vmatpush1.msra.mxu0 0.0
      %2200 = vmatprep.subr.mxu0 0.0
      %2201 = vmatpush1.msra.mxu0 0.0
      %2202 = vmatprep.subr.mxu0 0.0
      %2203 = vmatpush1.msra.mxu0 0.0
      %2204 = vmatprep.subr.mxu0 0.0
      %2205 = vmatpush1.msra.mxu0 0.0
      %2206 = vmatprep.subr.mxu0 0.0
      %2207 = vmatpush1.msra.mxu0 0.0
      %2208 = vmatprep.subr.mxu0 0.0
      %2209 = vmatpush1.msra.mxu0 0.0
      %2210 = vmatprep.subr.mxu0 0.0
      %2211 = vmatpush1.msra.mxu0 0.0
      %2212 = vmatprep.subr.mxu0 0.0
      %2213 = vmatpush1.msra.mxu0 0.0
      %2214 = vmatprep.subr.mxu0 0.0
      %2215 = vmatpush1.msra.mxu0 0.0
      %2216 = vmatprep.subr.mxu0 0.0
      %2217 = vmatpush1.msra.mxu0 0.0
      %2218 = vmatprep.subr.mxu0 0.0
      %2219 = vmatpush1.msra.mxu0 0.0
      %2220 = vmatprep.subr.mxu0 0.0
      %2221 = vmatpush1.msra.mxu0 0.0
      %2222 = vmatprep.subr.mxu0 0.0
      %2223 = vmatpush1.msra.mxu0 0.0
      %2224 = vmatprep.subr.mxu0 0.0
      %2225 = vmatpush1.msra.mxu0 0.0
      %2226 = vmatprep.subr.mxu0 0.0
      %2227 = vmatpush1.msra.mxu0 0.0
      %2228 = vmatprep.subr.mxu0 0.0
      %2229 = vmatpush1.msra.mxu0 0.0
      %2230 = vmatprep.subr.mxu0 0.0
      %2231 = vmatpush1.msra.mxu0 0.0
      %2232 = vmatprep.mubr.f32.mxu0 0.0
      %v2233 = vand.u32 %v1767, 4294901760
      %2234 = vmatmul.mubr.f32.gmra.mrb[0].mxu0 %v2233
      %v2235 = vpop.f32.mrb[0].mxu0
      %v2236 = vadd.f32 %v2162, %v2235
      %v2237 = vpop.f32.mrb[0].mxu0
      %v2238 = vadd.f32 %v2164, %v2237
      %2239 = vdwg.mxu0
      %v2240 = vadd.f32 %v1754, %v2236
      %v2241 = vadd.f32 %v1755, %v2238
      %s2242 = scalar_lea.vmem %s2, 8
      %v2243 = vld [vmem:[%s2242] sm:$0x3]
      %v2245 = vsel %vm308, %v2243, 0
      %v2247 = vsel %vm312, %v252, 0
      %v2249 = vsel %vm312, %v261, 0
      %v2251 = vand.u32 %v2249, 4294901760
      %2252 = vmatprep.subr.mxu0 %v2251
      %v2253 = vand.u32 %v2247, 4294901760
      %2254 = vmatpush1.msra.mxu0 %v2253
      %2255 = vmatprep.subr.mxu0 0.0
      %2256 = vmatpush1.msra.mxu0 0.0
      %2257 = vmatprep.subr.mxu0 0.0
      %2258 = vmatpush1.msra.mxu0 0.0
      %2259 = vmatprep.subr.mxu0 0.0
      %2260 = vmatpush1.msra.mxu0 0.0
      %2261 = vmatprep.subr.mxu0 0.0
      %2262 = vmatpush1.msra.mxu0 0.0
      %2263 = vmatprep.subr.mxu0 0.0
      %2264 = vmatpush1.msra.mxu0 0.0
      %2265 = vmatprep.subr.mxu0 0.0
      %2266 = vmatpush1.msra.mxu0 0.0
      %2267 = vmatprep.subr.mxu0 0.0
      %2268 = vmatpush1.msra.mxu0 0.0
      %2269 = vmatprep.subr.mxu0 0.0
      %2270 = vmatpush1.msra.mxu0 0.0
      %2271 = vmatprep.subr.mxu0 0.0
      %2272 = vmatpush1.msra.mxu0 0.0
      %2273 = vmatprep.subr.mxu0 0.0
      %2274 = vmatpush1.msra.mxu0 0.0
      %2275 = vmatprep.subr.mxu0 0.0
      %2276 = vmatpush1.msra.mxu0 0.0
      %2277 = vmatprep.subr.mxu0 0.0
      %2278 = vmatpush1.msra.mxu0 0.0
      %2279 = vmatprep.subr.mxu0 0.0
      %2280 = vmatpush1.msra.mxu0 0.0
      %2281 = vmatprep.subr.mxu0 0.0
      %2282 = vmatpush1.msra.mxu0 0.0
      %2283 = vmatprep.subr.mxu0 0.0
      %2284 = vmatpush1.msra.mxu0 0.0
      %2285 = vmatprep.subr.mxu0 0.0
      %2286 = vmatpush1.msra.mxu0 0.0
      %2287 = vmatprep.subr.mxu0 0.0
      %2288 = vmatpush1.msra.mxu0 0.0
      %2289 = vmatprep.subr.mxu0 0.0
      %2290 = vmatpush1.msra.mxu0 0.0
      %2291 = vmatprep.subr.mxu0 0.0
      %2292 = vmatpush1.msra.mxu0 0.0
      %2293 = vmatprep.subr.mxu0 0.0
      %2294 = vmatpush1.msra.mxu0 0.0
      %2295 = vmatprep.subr.mxu0 0.0
      %2296 = vmatpush1.msra.mxu0 0.0
      %2297 = vmatprep.subr.mxu0 0.0
      %2298 = vmatpush1.msra.mxu0 0.0
      %2299 = vmatprep.subr.mxu0 0.0
      %2300 = vmatpush1.msra.mxu0 0.0
      %2301 = vmatprep.subr.mxu0 0.0
      %2302 = vmatpush1.msra.mxu0 0.0
      %2303 = vmatprep.subr.mxu0 0.0
      %2304 = vmatpush1.msra.mxu0 0.0
      %2305 = vmatprep.subr.mxu0 0.0
      %2306 = vmatpush1.msra.mxu0 0.0
      %2307 = vmatprep.subr.mxu0 0.0
      %2308 = vmatpush1.msra.mxu0 0.0
      %2309 = vmatprep.subr.mxu0 0.0
      %2310 = vmatpush1.msra.mxu0 0.0
      %2311 = vmatprep.subr.mxu0 0.0
      %2312 = vmatpush1.msra.mxu0 0.0
      %2313 = vmatprep.subr.mxu0 0.0
      %2314 = vmatpush1.msra.mxu0 0.0
      %2315 = vmatprep.subr.mxu0 0.0
      %2316 = vmatpush1.msra.mxu0 0.0
      %2317 = vmatprep.mubr.f32.mxu0 0.0
      %v2318 = vand.u32 %v2245, 4294901760
      %v2319 = vsub.f32 %v2245, %v2318
      %v2320 = vand.u32 %v2319, 4294901760
      %v2321 = vsub.f32 %v2319, %v2320
      %v2322 = vand.u32 %v2321, 4294901760
      %2323 = vmatmul.mubr.f32.gmra.mrb[0].mxu0 %v2322
      %v2324 = vpop.f32.mrb[0].mxu0
      %v2325 = vadd.f32 0.0, %v2324
      %v2326 = vpop.f32.mrb[0].mxu0
      %v2327 = vadd.f32 0.0, %v2326
      %2328 = vdwg.mxu0
      %v2329 = vand.u32 %v2249, 4294901760
      %v2330 = vsub.f32 %v2249, %v2329
      %v2331 = vand.u32 %v2330, 4294901760
      %v2332 = vsub.f32 %v2330, %v2331
      %v2333 = vand.u32 %v2332, 4294901760
      %2334 = vmatprep.subr.mxu0 %v2333
      %v2335 = vand.u32 %v2247, 4294901760
      %v2336 = vsub.f32 %v2247, %v2335
      %v2337 = vand.u32 %v2336, 4294901760
      %v2338 = vsub.f32 %v2336, %v2337
      %v2339 = vand.u32 %v2338, 4294901760
      %2340 = vmatpush1.msra.mxu0 %v2339
      %2341 = vmatprep.subr.mxu0 0.0
      %2342 = vmatpush1.msra.mxu0 0.0
      %2343 = vmatprep.subr.mxu0 0.0
      %2344 = vmatpush1.msra.mxu0 0.0
      %2345 = vmatprep.subr.mxu0 0.0
      %2346 = vmatpush1.msra.mxu0 0.0
      %2347 = vmatprep.subr.mxu0 0.0
      %2348 = vmatpush1.msra.mxu0 0.0
      %2349 = vmatprep.subr.mxu0 0.0
      %2350 = vmatpush1.msra.mxu0 0.0
      %2351 = vmatprep.subr.mxu0 0.0
      %2352 = vmatpush1.msra.mxu0 0.0
      %2353 = vmatprep.subr.mxu0 0.0
      %2354 = vmatpush1.msra.mxu0 0.0
      %2355 = vmatprep.subr.mxu0 0.0
      %2356 = vmatpush1.msra.mxu0 0.0
      %2357 = vmatprep.subr.mxu0 0.0
      %2358 = vmatpush1.msra.mxu0 0.0
      %2359 = vmatprep.subr.mxu0 0.0
      %2360 = vmatpush1.msra.mxu0 0.0
      %2361 = vmatprep.subr.mxu0 0.0
      %2362 = vmatpush1.msra.mxu0 0.0
      %2363 = vmatprep.subr.mxu0 0.0
      %2364 = vmatpush1.msra.mxu0 0.0
      %2365 = vmatprep.subr.mxu0 0.0
      %2366 = vmatpush1.msra.mxu0 0.0
      %2367 = vmatprep.subr.mxu0 0.0
      %2368 = vmatpush1.msra.mxu0 0.0
      %2369 = vmatprep.subr.mxu0 0.0
      %2370 = vmatpush1.msra.mxu0 0.0
      %2371 = vmatprep.subr.mxu0 0.0
      %2372 = vmatpush1.msra.mxu0 0.0
      %2373 = vmatprep.subr.mxu0 0.0
      %2374 = vmatpush1.msra.mxu0 0.0
      %2375 = vmatprep.subr.mxu0 0.0
      %2376 = vmatpush1.msra.mxu0 0.0
      %2377 = vmatprep.subr.mxu0 0.0
      %2378 = vmatpush1.msra.mxu0 0.0
      %2379 = vmatprep.subr.mxu0 0.0
      %2380 = vmatpush1.msra.mxu0 0.0
      %2381 = vmatprep.subr.mxu0 0.0
      %2382 = vmatpush1.msra.mxu0 0.0
      %2383 = vmatprep.subr.mxu0 0.0
      %2384 = vmatpush1.msra.mxu0 0.0
      %2385 = vmatprep.subr.mxu0 0.0
      %2386 = vmatpush1.msra.mxu0 0.0
      %2387 = vmatprep.subr.mxu0 0.0
      %2388 = vmatpush1.msra.mxu0 0.0
      %2389 = vmatprep.subr.mxu0 0.0
      %2390 = vmatpush1.msra.mxu0 0.0
      %2391 = vmatprep.subr.mxu0 0.0
      %2392 = vmatpush1.msra.mxu0 0.0
      %2393 = vmatprep.subr.mxu0 0.0
      %2394 = vmatpush1.msra.mxu0 0.0
      %2395 = vmatprep.subr.mxu0 0.0
      %2396 = vmatpush1.msra.mxu0 0.0
      %2397 = vmatprep.subr.mxu0 0.0
      %2398 = vmatpush1.msra.mxu0 0.0
      %2399 = vmatprep.subr.mxu0 0.0
      %2400 = vmatpush1.msra.mxu0 0.0
      %2401 = vmatprep.subr.mxu0 0.0
      %2402 = vmatpush1.msra.mxu0 0.0
      %2403 = vmatprep.mubr.f32.mxu0 0.0
      %v2404 = vand.u32 %v2245, 4294901760
      %2405 = vmatmul.mubr.f32.gmra.mrb[0].mxu0 %v2404
      %v2406 = vpop.f32.mrb[0].mxu0
      %v2407 = vadd.f32 %v2325, %v2406
      %v2408 = vpop.f32.mrb[0].mxu0
      %v2409 = vadd.f32 %v2327, %v2408
      %2410 = vdwg.mxu0
      %v2411 = vand.u32 %v2249, 4294901760
      %v2412 = vsub.f32 %v2249, %v2411
      %2413 = vmatprep.subr.mxu0 %v2412
      %v2414 = vand.u32 %v2247, 4294901760
      %v2415 = vsub.f32 %v2247, %v2414
      %2416 = vmatpush1.msra.mxu0 %v2415
      %2417 = vmatprep.subr.mxu0 0.0
      %2418 = vmatpush1.msra.mxu0 0.0
      %2419 = vmatprep.subr.mxu0 0.0
      %2420 = vmatpush1.msra.mxu0 0.0
      %2421 = vmatprep.subr.mxu0 0.0
      %2422 = vmatpush1.msra.mxu0 0.0
      %2423 = vmatprep.subr.mxu0 0.0
      %2424 = vmatpush1.msra.mxu0 0.0
      %2425 = vmatprep.subr.mxu0 0.0
      %2426 = vmatpush1.msra.mxu0 0.0
      %2427 = vmatprep.subr.mxu0 0.0
      %2428 = vmatpush1.msra.mxu0 0.0
      %2429 = vmatprep.subr.mxu0 0.0
      %2430 = vmatpush1.msra.mxu0 0.0
      %2431 = vmatprep.subr.mxu0 0.0
      %2432 = vmatpush1.msra.mxu0 0.0
      %2433 = vmatprep.subr.mxu0 0.0
      %2434 = vmatpush1.msra.mxu0 0.0
      %2435 = vmatprep.subr.mxu0 0.0
      %2436 = vmatpush1.msra.mxu0 0.0
      %2437 = vmatprep.subr.mxu0 0.0
      %2438 = vmatpush1.msra.mxu0 0.0
      %2439 = vmatprep.subr.mxu0 0.0
      %2440 = vmatpush1.msra.mxu0 0.0
      %2441 = vmatprep.subr.mxu0 0.0
      %2442 = vmatpush1.msra.mxu0 0.0
      %2443 = vmatprep.subr.mxu0 0.0
      %2444 = vmatpush1.msra.mxu0 0.0
      %2445 = vmatprep.subr.mxu0 0.0
      %2446 = vmatpush1.msra.mxu0 0.0
      %2447 = vmatprep.subr.mxu0 0.0
      %2448 = vmatpush1.msra.mxu0 0.0
      %2449 = vmatprep.subr.mxu0 0.0
      %2450 = vmatpush1.msra.mxu0 0.0
      %2451 = vmatprep.subr.mxu0 0.0
      %2452 = vmatpush1.msra.mxu0 0.0
      %2453 = vmatprep.subr.mxu0 0.0
      %2454 = vmatpush1.msra.mxu0 0.0
      %2455 = vmatprep.subr.mxu0 0.0
      %2456 = vmatpush1.msra.mxu0 0.0
      %2457 = vmatprep.subr.mxu0 0.0
      %2458 = vmatpush1.msra.mxu0 0.0
      %2459 = vmatprep.subr.mxu0 0.0
      %2460 = vmatpush1.msra.mxu0 0.0
      %2461 = vmatprep.subr.mxu0 0.0
      %2462 = vmatpush1.msra.mxu0 0.0
      %2463 = vmatprep.subr.mxu0 0.0
      %2464 = vmatpush1.msra.mxu0 0.0
      %2465 = vmatprep.subr.mxu0 0.0
      %2466 = vmatpush1.msra.mxu0 0.0
      %2467 = vmatprep.subr.mxu0 0.0
      %2468 = vmatpush1.msra.mxu0 0.0
      %2469 = vmatprep.subr.mxu0 0.0
      %2470 = vmatpush1.msra.mxu0 0.0
      %2471 = vmatprep.subr.mxu0 0.0
      %2472 = vmatpush1.msra.mxu0 0.0
      %2473 = vmatprep.subr.mxu0 0.0
      %2474 = vmatpush1.msra.mxu0 0.0
      %2475 = vmatprep.subr.mxu0 0.0
      %2476 = vmatpush1.msra.mxu0 0.0
      %2477 = vmatprep.subr.mxu0 0.0
      %2478 = vmatpush1.msra.mxu0 0.0
      %2479 = vmatprep.mubr.f32.mxu0 0.0
      %v2480 = vand.u32 %v2245, 4294901760
      %v2481 = vsub.f32 %v2245, %v2480
      %2482 = vmatmul.mubr.f32.gmra.mrb[0].mxu0 %v2481
      %v2483 = vpop.f32.mrb[0].mxu0
      %v2484 = vadd.f32 %v2407, %v2483
      %v2485 = vpop.f32.mrb[0].mxu0
      %v2486 = vadd.f32 %v2409, %v2485
      %2487 = vdwg.mxu0
      %v2488 = vand.u32 %v2249, 4294901760
      %2489 = vmatprep.subr.mxu0 %v2488
      %v2490 = vand.u32 %v2247, 4294901760
      %2491 = vmatpush1.msra.mxu0 %v2490
      %2492 = vmatprep.subr.mxu0 0.0
      %2493 = vmatpush1.msra.mxu0 0.0
      %2494 = vmatprep.subr.mxu0 0.0
      %2495 = vmatpush1.msra.mxu0 0.0
      %2496 = vmatprep.subr.mxu0 0.0
      %2497 = vmatpush1.msra.mxu0 0.0
      %2498 = vmatprep.subr.mxu0 0.0
      %2499 = vmatpush1.msra.mxu0 0.0
      %2500 = vmatprep.subr.mxu0 0.0
      %2501 = vmatpush1.msra.mxu0 0.0
      %2502 = vmatprep.subr.mxu0 0.0
      %2503 = vmatpush1.msra.mxu0 0.0
      %2504 = vmatprep.subr.mxu0 0.0
      %2505 = vmatpush1.msra.mxu0 0.0
      %2506 = vmatprep.subr.mxu0 0.0
      %2507 = vmatpush1.msra.mxu0 0.0
      %2508 = vmatprep.subr.mxu0 0.0
      %2509 = vmatpush1.msra.mxu0 0.0
      %2510 = vmatprep.subr.mxu0 0.0
      %2511 = vmatpush1.msra.mxu0 0.0
      %2512 = vmatprep.subr.mxu0 0.0
      %2513 = vmatpush1.msra.mxu0 0.0
      %2514 = vmatprep.subr.mxu0 0.0
      %2515 = vmatpush1.msra.mxu0 0.0
      %2516 = vmatprep.subr.mxu0 0.0
      %2517 = vmatpush1.msra.mxu0 0.0
      %2518 = vmatprep.subr.mxu0 0.0
      %2519 = vmatpush1.msra.mxu0 0.0
      %2520 = vmatprep.subr.mxu0 0.0
      %2521 = vmatpush1.msra.mxu0 0.0
      %2522 = vmatprep.subr.mxu0 0.0
      %2523 = vmatpush1.msra.mxu0 0.0
      %2524 = vmatprep.subr.mxu0 0.0
      %2525 = vmatpush1.msra.mxu0 0.0
      %2526 = vmatprep.subr.mxu0 0.0
      %2527 = vmatpush1.msra.mxu0 0.0
      %2528 = vmatprep.subr.mxu0 0.0
      %2529 = vmatpush1.msra.mxu0 0.0
      %2530 = vmatprep.subr.mxu0 0.0
      %2531 = vmatpush1.msra.mxu0 0.0
      %2532 = vmatprep.subr.mxu0 0.0
      %2533 = vmatpush1.msra.mxu0 0.0
      %2534 = vmatprep.subr.mxu0 0.0
      %2535 = vmatpush1.msra.mxu0 0.0
      %2536 = vmatprep.subr.mxu0 0.0
      %2537 = vmatpush1.msra.mxu0 0.0
      %2538 = vmatprep.subr.mxu0 0.0
      %2539 = vmatpush1.msra.mxu0 0.0
      %2540 = vmatprep.subr.mxu0 0.0
      %2541 = vmatpush1.msra.mxu0 0.0
      %2542 = vmatprep.subr.mxu0 0.0
      %2543 = vmatpush1.msra.mxu0 0.0
      %2544 = vmatprep.subr.mxu0 0.0
      %2545 = vmatpush1.msra.mxu0 0.0
      %2546 = vmatprep.subr.mxu0 0.0
      %2547 = vmatpush1.msra.mxu0 0.0
      %2548 = vmatprep.subr.mxu0 0.0
      %2549 = vmatpush1.msra.mxu0 0.0
      %2550 = vmatprep.subr.mxu0 0.0
      %2551 = vmatpush1.msra.mxu0 0.0
      %2552 = vmatprep.subr.mxu0 0.0
      %2553 = vmatpush1.msra.mxu0 0.0
      %2554 = vmatprep.mubr.f32.mxu0 0.0
      %v2555 = vand.u32 %v2245, 4294901760
      %v2556 = vsub.f32 %v2245, %v2555
      %v2557 = vand.u32 %v2556, 4294901760
      %2558 = vmatmul.mubr.f32.gmra.mrb[0].mxu0 %v2557
      %v2559 = vpop.f32.mrb[0].mxu0
      %v2560 = vadd.f32 %v2484, %v2559
      %v2561 = vpop.f32.mrb[0].mxu0
      %v2562 = vadd.f32 %v2486, %v2561
      %2563 = vdwg.mxu0
      %v2564 = vand.u32 %v2249, 4294901760
      %v2565 = vsub.f32 %v2249, %v2564
      %v2566 = vand.u32 %v2565, 4294901760
      %2567 = vmatprep.subr.mxu0 %v2566
      %v2568 = vand.u32 %v2247, 4294901760
      %v2569 = vsub.f32 %v2247, %v2568
      %v2570 = vand.u32 %v2569, 4294901760
      %2571 = vmatpush1.msra.mxu0 %v2570
      %2572 = vmatprep.subr.mxu0 0.0
      %2573 = vmatpush1.msra.mxu0 0.0
      %2574 = vmatprep.subr.mxu0 0.0
      %2575 = vmatpush1.msra.mxu0 0.0
      %2576 = vmatprep.subr.mxu0 0.0
      %2577 = vmatpush1.msra.mxu0 0.0
      %2578 = vmatprep.subr.mxu0 0.0
      %2579 = vmatpush1.msra.mxu0 0.0
      %2580 = vmatprep.subr.mxu0 0.0
      %2581 = vmatpush1.msra.mxu0 0.0
      %2582 = vmatprep.subr.mxu0 0.0
      %2583 = vmatpush1.msra.mxu0 0.0
      %2584 = vmatprep.subr.mxu0 0.0
      %2585 = vmatpush1.msra.mxu0 0.0
      %2586 = vmatprep.subr.mxu0 0.0
      %2587 = vmatpush1.msra.mxu0 0.0
      %2588 = vmatprep.subr.mxu0 0.0
      %2589 = vmatpush1.msra.mxu0 0.0
      %2590 = vmatprep.subr.mxu0 0.0
      %2591 = vmatpush1.msra.mxu0 0.0
      %2592 = vmatprep.subr.mxu0 0.0
      %2593 = vmatpush1.msra.mxu0 0.0
      %2594 = vmatprep.subr.mxu0 0.0
      %2595 = vmatpush1.msra.mxu0 0.0
      %2596 = vmatprep.subr.mxu0 0.0
      %2597 = vmatpush1.msra.mxu0 0.0
      %2598 = vmatprep.subr.mxu0 0.0
      %2599 = vmatpush1.msra.mxu0 0.0
      %2600 = vmatprep.subr.mxu0 0.0
      %2601 = vmatpush1.msra.mxu0 0.0
      %2602 = vmatprep.subr.mxu0 0.0
      %2603 = vmatpush1.msra.mxu0 0.0
      %2604 = vmatprep.subr.mxu0 0.0
      %2605 = vmatpush1.msra.mxu0 0.0
      %2606 = vmatprep.subr.mxu0 0.0
      %2607 = vmatpush1.msra.mxu0 0.0
      %2608 = vmatprep.subr.mxu0 0.0
      %2609 = vmatpush1.msra.mxu0 0.0
      %2610 = vmatprep.subr.mxu0 0.0
      %2611 = vmatpush1.msra.mxu0 0.0
      %2612 = vmatprep.subr.mxu0 0.0
      %2613 = vmatpush1.msra.mxu0 0.0
      %2614 = vmatprep.subr.mxu0 0.0
      %2615 = vmatpush1.msra.mxu0 0.0
      %2616 = vmatprep.subr.mxu0 0.0
      %2617 = vmatpush1.msra.mxu0 0.0
      %2618 = vmatprep.subr.mxu0 0.0
      %2619 = vmatpush1.msra.mxu0 0.0
      %2620 = vmatprep.subr.mxu0 0.0
      %2621 = vmatpush1.msra.mxu0 0.0
      %2622 = vmatprep.subr.mxu0 0.0
      %2623 = vmatpush1.msra.mxu0 0.0
      %2624 = vmatprep.subr.mxu0 0.0
      %2625 = vmatpush1.msra.mxu0 0.0
      %2626 = vmatprep.subr.mxu0 0.0
      %2627 = vmatpush1.msra.mxu0 0.0
      %2628 = vmatprep.subr.mxu0 0.0
      %2629 = vmatpush1.msra.mxu0 0.0
      %2630 = vmatprep.subr.mxu0 0.0
      %2631 = vmatpush1.msra.mxu0 0.0
      %2632 = vmatprep.subr.mxu0 0.0
      %2633 = vmatpush1.msra.mxu0 0.0
      %2634 = vmatprep.mubr.f32.mxu0 0.0
      %v2635 = vand.u32 %v2245, 4294901760
      %2636 = vmatmul.mubr.f32.gmra.mrb[0].mxu0 %v2635
      %v2637 = vpop.f32.mrb[0].mxu0
      %v2638 = vadd.f32 %v2560, %v2637
      %v2639 = vpop.f32.mrb[0].mxu0
      %v2640 = vadd.f32 %v2562, %v2639
      %2641 = vdwg.mxu0
      %v2642 = vand.u32 %v2249, 4294901760
      %2643 = vmatprep.subr.mxu0 %v2642
      %v2644 = vand.u32 %v2247, 4294901760
      %2645 = vmatpush1.msra.mxu0 %v2644
      %2646 = vmatprep.subr.mxu0 0.0
      %2647 = vmatpush1.msra.mxu0 0.0
      %2648 = vmatprep.subr.mxu0 0.0
      %2649 = vmatpush1.msra.mxu0 0.0
      %2650 = vmatprep.subr.mxu0 0.0
      %2651 = vmatpush1.msra.mxu0 0.0
      %2652 = vmatprep.subr.mxu0 0.0
      %2653 = vmatpush1.msra.mxu0 0.0
      %2654 = vmatprep.subr.mxu0 0.0
      %2655 = vmatpush1.msra.mxu0 0.0
      %2656 = vmatprep.subr.mxu0 0.0
      %2657 = vmatpush1.msra.mxu0 0.0
      %2658 = vmatprep.subr.mxu0 0.0
      %2659 = vmatpush1.msra.mxu0 0.0
      %2660 = vmatprep.subr.mxu0 0.0
      %2661 = vmatpush1.msra.mxu0 0.0
      %2662 = vmatprep.subr.mxu0 0.0
      %2663 = vmatpush1.msra.mxu0 0.0
      %2664 = vmatprep.subr.mxu0 0.0
      %2665 = vmatpush1.msra.mxu0 0.0
      %2666 = vmatprep.subr.mxu0 0.0
      %2667 = vmatpush1.msra.mxu0 0.0
      %2668 = vmatprep.subr.mxu0 0.0
      %2669 = vmatpush1.msra.mxu0 0.0
      %2670 = vmatprep.subr.mxu0 0.0
      %2671 = vmatpush1.msra.mxu0 0.0
      %2672 = vmatprep.subr.mxu0 0.0
      %2673 = vmatpush1.msra.mxu0 0.0
      %2674 = vmatprep.subr.mxu0 0.0
      %2675 = vmatpush1.msra.mxu0 0.0
      %2676 = vmatprep.subr.mxu0 0.0
      %2677 = vmatpush1.msra.mxu0 0.0
      %2678 = vmatprep.subr.mxu0 0.0
      %2679 = vmatpush1.msra.mxu0 0.0
      %2680 = vmatprep.subr.mxu0 0.0
      %2681 = vmatpush1.msra.mxu0 0.0
      %2682 = vmatprep.subr.mxu0 0.0
      %2683 = vmatpush1.msra.mxu0 0.0
      %2684 = vmatprep.subr.mxu0 0.0
      %2685 = vmatpush1.msra.mxu0 0.0
      %2686 = vmatprep.subr.mxu0 0.0
      %2687 = vmatpush1.msra.mxu0 0.0
      %2688 = vmatprep.subr.mxu0 0.0
      %2689 = vmatpush1.msra.mxu0 0.0
      %2690 = vmatprep.subr.mxu0 0.0
      %2691 = vmatpush1.msra.mxu0 0.0
      %2692 = vmatprep.subr.mxu0 0.0
      %2693 = vmatpush1.msra.mxu0 0.0
      %2694 = vmatprep.subr.mxu0 0.0
      %2695 = vmatpush1.msra.mxu0 0.0
      %2696 = vmatprep.subr.mxu0 0.0
      %2697 = vmatpush1.msra.mxu0 0.0
      %2698 = vmatprep.subr.mxu0 0.0
      %2699 = vmatpush1.msra.mxu0 0.0
      %2700 = vmatprep.subr.mxu0 0.0
      %2701 = vmatpush1.msra.mxu0 0.0
      %2702 = vmatprep.subr.mxu0 0.0
      %2703 = vmatpush1.msra.mxu0 0.0
      %2704 = vmatprep.subr.mxu0 0.0
      %2705 = vmatpush1.msra.mxu0 0.0
      %2706 = vmatprep.subr.mxu0 0.0
      %2707 = vmatpush1.msra.mxu0 0.0
      %2708 = vmatprep.mubr.f32.mxu0 0.0
      %v2709 = vand.u32 %v2245, 4294901760
      %2710 = vmatmul.mubr.f32.gmra.mrb[0].mxu0 %v2709
      %v2711 = vpop.f32.mrb[0].mxu0
      %v2712 = vadd.f32 %v2638, %v2711
      %v2713 = vpop.f32.mrb[0].mxu0
      %v2714 = vadd.f32 %v2640, %v2713
      %2715 = vdwg.mxu0
      %v2716 = vadd.f32 %v2240, %v2712
      %v2717 = vadd.f32 %v2241, %v2714
      %2718 = vrot.lane.b32.xlu0 %v252, 127
      %v2719 = vpop.permute.xlu0 %2718
      %2720 = vrot.lane.b32.xlu0 %v261, 127
      %v2721 = vpop.permute.xlu0 %2720
      %v2722 = vsel %vm1262, %v2719, %v2721
      %v2723 = vsel %vm1262, %v2721, %v2719
      %v2724 = vmul.f32 %v2722, %v1269
      %v2725 = vmul.f32 %v2723, %v1273
      %s2726 = scalar_lea.vmem %s2, 10
      %v2727 = vld [vmem:[%s2726] sm:$0x3]
      %v2729 = vsel %vm308, %v2727, 0
      %v2732 = vsel %vm312, %v2724, 0
      %v2735 = vsel %vm312, %v2725, 0
      %v2737 = vand.u32 %v2735, 4294901760
      %2738 = vmatprep.subr.mxu0 %v2737
      %v2739 = vand.u32 %v2732, 4294901760
      %2740 = vmatpush1.msra.mxu0 %v2739
      %2741 = vmatprep.subr.mxu0 0.0
      %2742 = vmatpush1.msra.mxu0 0.0
      %2743 = vmatprep.subr.mxu0 0.0
      %2744 = vmatpush1.msra.mxu0 0.0
      %2745 = vmatprep.subr.mxu0 0.0
      %2746 = vmatpush1.msra.mxu0 0.0
      %2747 = vmatprep.subr.mxu0 0.0
      %2748 = vmatpush1.msra.mxu0 0.0
      %2749 = vmatprep.subr.mxu0 0.0
      %2750 = vmatpush1.msra.mxu0 0.0
      %2751 = vmatprep.subr.mxu0 0.0
      %2752 = vmatpush1.msra.mxu0 0.0
      %2753 = vmatprep.subr.mxu0 0.0
      %2754 = vmatpush1.msra.mxu0 0.0
      %2755 = vmatprep.subr.mxu0 0.0
      %2756 = vmatpush1.msra.mxu0 0.0
      %2757 = vmatprep.subr.mxu0 0.0
      %2758 = vmatpush1.msra.mxu0 0.0
      %2759 = vmatprep.subr.mxu0 0.0
      %2760 = vmatpush1.msra.mxu0 0.0
      %2761 = vmatprep.subr.mxu0 0.0
      %2762 = vmatpush1.msra.mxu0 0.0
      %2763 = vmatprep.subr.mxu0 0.0
      %2764 = vmatpush1.msra.mxu0 0.0
      %2765 = vmatprep.subr.mxu0 0.0
      %2766 = vmatpush1.msra.mxu0 0.0
      %2767 = vmatprep.subr.mxu0 0.0
      %2768 = vmatpush1.msra.mxu0 0.0
      %2769 = vmatprep.subr.mxu0 0.0
      %2770 = vmatpush1.msra.mxu0 0.0
      %2771 = vmatprep.subr.mxu0 0.0
      %2772 = vmatpush1.msra.mxu0 0.0
      %2773 = vmatprep.subr.mxu0 0.0
      %2774 = vmatpush1.msra.mxu0 0.0
      %2775 = vmatprep.subr.mxu0 0.0
      %2776 = vmatpush1.msra.mxu0 0.0
      %2777 = vmatprep.subr.mxu0 0.0
      %2778 = vmatpush1.msra.mxu0 0.0
      %2779 = vmatprep.subr.mxu0 0.0
      %2780 = vmatpush1.msra.mxu0 0.0
      %2781 = vmatprep.subr.mxu0 0.0
      %2782 = vmatpush1.msra.mxu0 0.0
      %2783 = vmatprep.subr.mxu0 0.0
      %2784 = vmatpush1.msra.mxu0 0.0
      %2785 = vmatprep.subr.mxu0 0.0
      %2786 = vmatpush1.msra.mxu0 0.0
      %2787 = vmatprep.subr.mxu0 0.0
      %2788 = vmatpush1.msra.mxu0 0.0
      %2789 = vmatprep.subr.mxu0 0.0
      %2790 = vmatpush1.msra.mxu0 0.0
      %2791 = vmatprep.subr.mxu0 0.0
      %2792 = vmatpush1.msra.mxu0 0.0
      %2793 = vmatprep.subr.mxu0 0.0
      %2794 = vmatpush1.msra.mxu0 0.0
      %2795 = vmatprep.subr.mxu0 0.0
      %2796 = vmatpush1.msra.mxu0 0.0
      %2797 = vmatprep.subr.mxu0 0.0
      %2798 = vmatpush1.msra.mxu0 0.0
      %2799 = vmatprep.subr.mxu0 0.0
      %2800 = vmatpush1.msra.mxu0 0.0
      %2801 = vmatprep.subr.mxu0 0.0
      %2802 = vmatpush1.msra.mxu0 0.0
      %2803 = vmatprep.mubr.f32.mxu0 0.0
      %v2804 = vand.u32 %v2729, 4294901760
      %v2805 = vsub.f32 %v2729, %v2804
      %v2806 = vand.u32 %v2805, 4294901760
      %v2807 = vsub.f32 %v2805, %v2806
      %v2808 = vand.u32 %v2807, 4294901760
      %2809 = vmatmul.mubr.f32.gmra.mrb[0].mxu0 %v2808
      %v2810 = vpop.f32.mrb[0].mxu0
      %v2811 = vadd.f32 0.0, %v2810
      %v2812 = vpop.f32.mrb[0].mxu0
      %v2813 = vadd.f32 0.0, %v2812
      %2814 = vdwg.mxu0
      %v2815 = vand.u32 %v2735, 4294901760
      %v2816 = vsub.f32 %v2735, %v2815
      %v2817 = vand.u32 %v2816, 4294901760
      %v2818 = vsub.f32 %v2816, %v2817
      %v2819 = vand.u32 %v2818, 4294901760
      %2820 = vmatprep.subr.mxu0 %v2819
      %v2821 = vand.u32 %v2732, 4294901760
      %v2822 = vsub.f32 %v2732, %v2821
      %v2823 = vand.u32 %v2822, 4294901760
      %v2824 = vsub.f32 %v2822, %v2823
      %v2825 = vand.u32 %v2824, 4294901760
      %2826 = vmatpush1.msra.mxu0 %v2825
      %2827 = vmatprep.subr.mxu0 0.0
      %2828 = vmatpush1.msra.mxu0 0.0
      %2829 = vmatprep.subr.mxu0 0.0
      %2830 = vmatpush1.msra.mxu0 0.0
      %2831 = vmatprep.subr.mxu0 0.0
      %2832 = vmatpush1.msra.mxu0 0.0
      %2833 = vmatprep.subr.mxu0 0.0
      %2834 = vmatpush1.msra.mxu0 0.0
      %2835 = vmatprep.subr.mxu0 0.0
      %2836 = vmatpush1.msra.mxu0 0.0
      %2837 = vmatprep.subr.mxu0 0.0
      %2838 = vmatpush1.msra.mxu0 0.0
      %2839 = vmatprep.subr.mxu0 0.0
      %2840 = vmatpush1.msra.mxu0 0.0
      %2841 = vmatprep.subr.mxu0 0.0
      %2842 = vmatpush1.msra.mxu0 0.0
      %2843 = vmatprep.subr.mxu0 0.0
      %2844 = vmatpush1.msra.mxu0 0.0
      %2845 = vmatprep.subr.mxu0 0.0
      %2846 = vmatpush1.msra.mxu0 0.0
      %2847 = vmatprep.subr.mxu0 0.0
      %2848 = vmatpush1.msra.mxu0 0.0
      %2849 = vmatprep.subr.mxu0 0.0
      %2850 = vmatpush1.msra.mxu0 0.0
      %2851 = vmatprep.subr.mxu0 0.0
      %2852 = vmatpush1.msra.mxu0 0.0
      %2853 = vmatprep.subr.mxu0 0.0
      %2854 = vmatpush1.msra.mxu0 0.0
      %2855 = vmatprep.subr.mxu0 0.0
      %2856 = vmatpush1.msra.mxu0 0.0
      %2857 = vmatprep.subr.mxu0 0.0
      %2858 = vmatpush1.msra.mxu0 0.0
      %2859 = vmatprep.subr.mxu0 0.0
      %2860 = vmatpush1.msra.mxu0 0.0
      %2861 = vmatprep.subr.mxu0 0.0
      %2862 = vmatpush1.msra.mxu0 0.0
      %2863 = vmatprep.subr.mxu0 0.0
      %2864 = vmatpush1.msra.mxu0 0.0
      %2865 = vmatprep.subr.mxu0 0.0
      %2866 = vmatpush1.msra.mxu0 0.0
      %2867 = vmatprep.subr.mxu0 0.0
      %2868 = vmatpush1.msra.mxu0 0.0
      %2869 = vmatprep.subr.mxu0 0.0
      %2870 = vmatpush1.msra.mxu0 0.0
      %2871 = vmatprep.subr.mxu0 0.0
      %2872 = vmatpush1.msra.mxu0 0.0
      %2873 = vmatprep.subr.mxu0 0.0
      %2874 = vmatpush1.msra.mxu0 0.0
      %2875 = vmatprep.subr.mxu0 0.0
      %2876 = vmatpush1.msra.mxu0 0.0
      %2877 = vmatprep.subr.mxu0 0.0
      %2878 = vmatpush1.msra.mxu0 0.0
      %2879 = vmatprep.subr.mxu0 0.0
      %2880 = vmatpush1.msra.mxu0 0.0
      %2881 = vmatprep.subr.mxu0 0.0
      %2882 = vmatpush1.msra.mxu0 0.0
      %2883 = vmatprep.subr.mxu0 0.0
      %2884 = vmatpush1.msra.mxu0 0.0
      %2885 = vmatprep.subr.mxu0 0.0
      %2886 = vmatpush1.msra.mxu0 0.0
      %2887 = vmatprep.subr.mxu0 0.0
      %2888 = vmatpush1.msra.mxu0 0.0
      %2889 = vmatprep.mubr.f32.mxu0 0.0
      %v2890 = vand.u32 %v2729, 4294901760
      %2891 = vmatmul.mubr.f32.gmra.mrb[0].mxu0 %v2890
      %v2892 = vpop.f32.mrb[0].mxu0
      %v2893 = vadd.f32 %v2811, %v2892
      %v2894 = vpop.f32.mrb[0].mxu0
      %v2895 = vadd.f32 %v2813, %v2894
      %2896 = vdwg.mxu0
      %v2897 = vand.u32 %v2735, 4294901760
      %v2898 = vsub.f32 %v2735, %v2897
      %2899 = vmatprep.subr.mxu0 %v2898
      %v2900 = vand.u32 %v2732, 4294901760
      %v2901 = vsub.f32 %v2732, %v2900
      %2902 = vmatpush1.msra.mxu0 %v2901
      %2903 = vmatprep.subr.mxu0 0.0
      %2904 = vmatpush1.msra.mxu0 0.0
      %2905 = vmatprep.subr.mxu0 0.0
      %2906 = vmatpush1.msra.mxu0 0.0
      %2907 = vmatprep.subr.mxu0 0.0
      %2908 = vmatpush1.msra.mxu0 0.0
      %2909 = vmatprep.subr.mxu0 0.0
      %2910 = vmatpush1.msra.mxu0 0.0
      %2911 = vmatprep.subr.mxu0 0.0
      %2912 = vmatpush1.msra.mxu0 0.0
      %2913 = vmatprep.subr.mxu0 0.0
      %2914 = vmatpush1.msra.mxu0 0.0
      %2915 = vmatprep.subr.mxu0 0.0
      %2916 = vmatpush1.msra.mxu0 0.0
      %2917 = vmatprep.subr.mxu0 0.0
      %2918 = vmatpush1.msra.mxu0 0.0
      %2919 = vmatprep.subr.mxu0 0.0
      %2920 = vmatpush1.msra.mxu0 0.0
      %2921 = vmatprep.subr.mxu0 0.0
      %2922 = vmatpush1.msra.mxu0 0.0
      %2923 = vmatprep.subr.mxu0 0.0
      %2924 = vmatpush1.msra.mxu0 0.0
      %2925 = vmatprep.subr.mxu0 0.0
      %2926 = vmatpush1.msra.mxu0 0.0
      %2927 = vmatprep.subr.mxu0 0.0
      %2928 = vmatpush1.msra.mxu0 0.0
      %2929 = vmatprep.subr.mxu0 0.0
      %2930 = vmatpush1.msra.mxu0 0.0
      %2931 = vmatprep.subr.mxu0 0.0
      %2932 = vmatpush1.msra.mxu0 0.0
      %2933 = vmatprep.subr.mxu0 0.0
      %2934 = vmatpush1.msra.mxu0 0.0
      %2935 = vmatprep.subr.mxu0 0.0
      %2936 = vmatpush1.msra.mxu0 0.0
      %2937 = vmatprep.subr.mxu0 0.0
      %2938 = vmatpush1.msra.mxu0 0.0
      %2939 = vmatprep.subr.mxu0 0.0
      %2940 = vmatpush1.msra.mxu0 0.0
      %2941 = vmatprep.subr.mxu0 0.0
      %2942 = vmatpush1.msra.mxu0 0.0
      %2943 = vmatprep.subr.mxu0 0.0
      %2944 = vmatpush1.msra.mxu0 0.0
      %2945 = vmatprep.subr.mxu0 0.0
      %2946 = vmatpush1.msra.mxu0 0.0
      %2947 = vmatprep.subr.mxu0 0.0
      %2948 = vmatpush1.msra.mxu0 0.0
      %2949 = vmatprep.subr.mxu0 0.0
      %2950 = vmatpush1.msra.mxu0 0.0
      %2951 = vmatprep.subr.mxu0 0.0
      %2952 = vmatpush1.msra.mxu0 0.0
      %2953 = vmatprep.subr.mxu0 0.0
      %2954 = vmatpush1.msra.mxu0 0.0
      %2955 = vmatprep.subr.mxu0 0.0
      %2956 = vmatpush1.msra.mxu0 0.0
      %2957 = vmatprep.subr.mxu0 0.0
      %2958 = vmatpush1.msra.mxu0 0.0
      %2959 = vmatprep.subr.mxu0 0.0
      %2960 = vmatpush1.msra.mxu0 0.0
      %2961 = vmatprep.subr.mxu0 0.0
      %2962 = vmatpush1.msra.mxu0 0.0
      %2963 = vmatprep.subr.mxu0 0.0
      %2964 = vmatpush1.msra.mxu0 0.0
      %2965 = vmatprep.mubr.f32.mxu0 0.0
      %v2966 = vand.u32 %v2729, 4294901760
      %v2967 = vsub.f32 %v2729, %v2966
      %2968 = vmatmul.mubr.f32.gmra.mrb[0].mxu0 %v2967
      %v2969 = vpop.f32.mrb[0].mxu0
      %v2970 = vadd.f32 %v2893, %v2969
      %v2971 = vpop.f32.mrb[0].mxu0
      %v2972 = vadd.f32 %v2895, %v2971
      %2973 = vdwg.mxu0
      %v2974 = vand.u32 %v2735, 4294901760
      %2975 = vmatprep.subr.mxu0 %v2974
      %v2976 = vand.u32 %v2732, 4294901760
      %2977 = vmatpush1.msra.mxu0 %v2976
      %2978 = vmatprep.subr.mxu0 0.0
      %2979 = vmatpush1.msra.mxu0 0.0
      %2980 = vmatprep.subr.mxu0 0.0
      %2981 = vmatpush1.msra.mxu0 0.0
      %2982 = vmatprep.subr.mxu0 0.0
      %2983 = vmatpush1.msra.mxu0 0.0
      %2984 = vmatprep.subr.mxu0 0.0
      %2985 = vmatpush1.msra.mxu0 0.0
      %2986 = vmatprep.subr.mxu0 0.0
      %2987 = vmatpush1.msra.mxu0 0.0
      %2988 = vmatprep.subr.mxu0 0.0
      %2989 = vmatpush1.msra.mxu0 0.0
      %2990 = vmatprep.subr.mxu0 0.0
      %2991 = vmatpush1.msra.mxu0 0.0
      %2992 = vmatprep.subr.mxu0 0.0
      %2993 = vmatpush1.msra.mxu0 0.0
      %2994 = vmatprep.subr.mxu0 0.0
      %2995 = vmatpush1.msra.mxu0 0.0
      %2996 = vmatprep.subr.mxu0 0.0
      %2997 = vmatpush1.msra.mxu0 0.0
      %2998 = vmatprep.subr.mxu0 0.0
      %2999 = vmatpush1.msra.mxu0 0.0
      %3000 = vmatprep.subr.mxu0 0.0
      %3001 = vmatpush1.msra.mxu0 0.0
      %3002 = vmatprep.subr.mxu0 0.0
      %3003 = vmatpush1.msra.mxu0 0.0
      %3004 = vmatprep.subr.mxu0 0.0
      %3005 = vmatpush1.msra.mxu0 0.0
      %3006 = vmatprep.subr.mxu0 0.0
      %3007 = vmatpush1.msra.mxu0 0.0
      %3008 = vmatprep.subr.mxu0 0.0
      %3009 = vmatpush1.msra.mxu0 0.0
      %3010 = vmatprep.subr.mxu0 0.0
      %3011 = vmatpush1.msra.mxu0 0.0
      %3012 = vmatprep.subr.mxu0 0.0
      %3013 = vmatpush1.msra.mxu0 0.0
      %3014 = vmatprep.subr.mxu0 0.0
      %3015 = vmatpush1.msra.mxu0 0.0
      %3016 = vmatprep.subr.mxu0 0.0
      %3017 = vmatpush1.msra.mxu0 0.0
      %3018 = vmatprep.subr.mxu0 0.0
      %3019 = vmatpush1.msra.mxu0 0.0
      %3020 = vmatprep.subr.mxu0 0.0
      %3021 = vmatpush1.msra.mxu0 0.0
      %3022 = vmatprep.subr.mxu0 0.0
      %3023 = vmatpush1.msra.mxu0 0.0
      %3024 = vmatprep.subr.mxu0 0.0
      %3025 = vmatpush1.msra.mxu0 0.0
      %3026 = vmatprep.subr.mxu0 0.0
      %3027 = vmatpush1.msra.mxu0 0.0
      %3028 = vmatprep.subr.mxu0 0.0
      %3029 = vmatpush1.msra.mxu0 0.0
      %3030 = vmatprep.subr.mxu0 0.0
      %3031 = vmatpush1.msra.mxu0 0.0
      %3032 = vmatprep.subr.mxu0 0.0
      %3033 = vmatpush1.msra.mxu0 0.0
      %3034 = vmatprep.subr.mxu0 0.0
      %3035 = vmatpush1.msra.mxu0 0.0
      %3036 = vmatprep.subr.mxu0 0.0
      %3037 = vmatpush1.msra.mxu0 0.0
      %3038 = vmatprep.subr.mxu0 0.0
      %3039 = vmatpush1.msra.mxu0 0.0
      %3040 = vmatprep.mubr.f32.mxu0 0.0
      %v3041 = vand.u32 %v2729, 4294901760
      %v3042 = vsub.f32 %v2729, %v3041
      %v3043 = vand.u32 %v3042, 4294901760
      %3044 = vmatmul.mubr.f32.gmra.mrb[0].mxu0 %v3043
      %v3045 = vpop.f32.mrb[0].mxu0
      %v3046 = vadd.f32 %v2970, %v3045
      %v3047 = vpop.f32.mrb[0].mxu0
      %v3048 = vadd.f32 %v2972, %v3047
      %3049 = vdwg.mxu0
      %v3050 = vand.u32 %v2735, 4294901760
      %v3051 = vsub.f32 %v2735, %v3050
      %v3052 = vand.u32 %v3051, 4294901760
      %3053 = vmatprep.subr.mxu0 %v3052
      %v3054 = vand.u32 %v2732, 4294901760
      %v3055 = vsub.f32 %v2732, %v3054
      %v3056 = vand.u32 %v3055, 4294901760
      %3057 = vmatpush1.msra.mxu0 %v3056
      %3058 = vmatprep.subr.mxu0 0.0
      %3059 = vmatpush1.msra.mxu0 0.0
      %3060 = vmatprep.subr.mxu0 0.0
      %3061 = vmatpush1.msra.mxu0 0.0
      %3062 = vmatprep.subr.mxu0 0.0
      %3063 = vmatpush1.msra.mxu0 0.0
      %3064 = vmatprep.subr.mxu0 0.0
      %3065 = vmatpush1.msra.mxu0 0.0
      %3066 = vmatprep.subr.mxu0 0.0
      %3067 = vmatpush1.msra.mxu0 0.0
      %3068 = vmatprep.subr.mxu0 0.0
      %3069 = vmatpush1.msra.mxu0 0.0
      %3070 = vmatprep.subr.mxu0 0.0
      %3071 = vmatpush1.msra.mxu0 0.0
      %3072 = vmatprep.subr.mxu0 0.0
      %3073 = vmatpush1.msra.mxu0 0.0
      %3074 = vmatprep.subr.mxu0 0.0
      %3075 = vmatpush1.msra.mxu0 0.0
      %3076 = vmatprep.subr.mxu0 0.0
      %3077 = vmatpush1.msra.mxu0 0.0
      %3078 = vmatprep.subr.mxu0 0.0
      %3079 = vmatpush1.msra.mxu0 0.0
      %3080 = vmatprep.subr.mxu0 0.0
      %3081 = vmatpush1.msra.mxu0 0.0
      %3082 = vmatprep.subr.mxu0 0.0
      %3083 = vmatpush1.msra.mxu0 0.0
      %3084 = vmatprep.subr.mxu0 0.0
      %3085 = vmatpush1.msra.mxu0 0.0
      %3086 = vmatprep.subr.mxu0 0.0
      %3087 = vmatpush1.msra.mxu0 0.0
      %3088 = vmatprep.subr.mxu0 0.0
      %3089 = vmatpush1.msra.mxu0 0.0
      %3090 = vmatprep.subr.mxu0 0.0
      %3091 = vmatpush1.msra.mxu0 0.0
      %3092 = vmatprep.subr.mxu0 0.0
      %3093 = vmatpush1.msra.mxu0 0.0
      %3094 = vmatprep.subr.mxu0 0.0
      %3095 = vmatpush1.msra.mxu0 0.0
      %3096 = vmatprep.subr.mxu0 0.0
      %3097 = vmatpush1.msra.mxu0 0.0
      %3098 = vmatprep.subr.mxu0 0.0
      %3099 = vmatpush1.msra.mxu0 0.0
      %3100 = vmatprep.subr.mxu0 0.0
      %3101 = vmatpush1.msra.mxu0 0.0
      %3102 = vmatprep.subr.mxu0 0.0
      %3103 = vmatpush1.msra.mxu0 0.0
      %3104 = vmatprep.subr.mxu0 0.0
      %3105 = vmatpush1.msra.mxu0 0.0
      %3106 = vmatprep.subr.mxu0 0.0
      %3107 = vmatpush1.msra.mxu0 0.0
      %3108 = vmatprep.subr.mxu0 0.0
      %3109 = vmatpush1.msra.mxu0 0.0
      %3110 = vmatprep.subr.mxu0 0.0
      %3111 = vmatpush1.msra.mxu0 0.0
      %3112 = vmatprep.subr.mxu0 0.0
      %3113 = vmatpush1.msra.mxu0 0.0
      %3114 = vmatprep.subr.mxu0 0.0
      %3115 = vmatpush1.msra.mxu0 0.0
      %3116 = vmatprep.subr.mxu0 0.0
      %3117 = vmatpush1.msra.mxu0 0.0
      %3118 = vmatprep.subr.mxu0 0.0
      %3119 = vmatpush1.msra.mxu0 0.0
      %3120 = vmatprep.mubr.f32.mxu0 0.0
      %v3121 = vand.u32 %v2729, 4294901760
      %3122 = vmatmul.mubr.f32.gmra.mrb[0].mxu0 %v3121
      %v3123 = vpop.f32.mrb[0].mxu0
      %v3124 = vadd.f32 %v3046, %v3123
      %v3125 = vpop.f32.mrb[0].mxu0
      %v3126 = vadd.f32 %v3048, %v3125
      %3127 = vdwg.mxu0
      %v3128 = vand.u32 %v2735, 4294901760
      %3129 = vmatprep.subr.mxu0 %v3128
      %v3130 = vand.u32 %v2732, 4294901760
      %3131 = vmatpush1.msra.mxu0 %v3130
      %3132 = vmatprep.subr.mxu0 0.0
      %3133 = vmatpush1.msra.mxu0 0.0
      %3134 = vmatprep.subr.mxu0 0.0
      %3135 = vmatpush1.msra.mxu0 0.0
      %3136 = vmatprep.subr.mxu0 0.0
      %3137 = vmatpush1.msra.mxu0 0.0
      %3138 = vmatprep.subr.mxu0 0.0
      %3139 = vmatpush1.msra.mxu0 0.0
      %3140 = vmatprep.subr.mxu0 0.0
      %3141 = vmatpush1.msra.mxu0 0.0
      %3142 = vmatprep.subr.mxu0 0.0
      %3143 = vmatpush1.msra.mxu0 0.0
      %3144 = vmatprep.subr.mxu0 0.0
      %3145 = vmatpush1.msra.mxu0 0.0
      %3146 = vmatprep.subr.mxu0 0.0
      %3147 = vmatpush1.msra.mxu0 0.0
      %3148 = vmatprep.subr.mxu0 0.0
      %3149 = vmatpush1.msra.mxu0 0.0
      %3150 = vmatprep.subr.mxu0 0.0
      %3151 = vmatpush1.msra.mxu0 0.0
      %3152 = vmatprep.subr.mxu0 0.0
      %3153 = vmatpush1.msra.mxu0 0.0
      %3154 = vmatprep.subr.mxu0 0.0
      %3155 = vmatpush1.msra.mxu0 0.0
      %3156 = vmatprep.subr.mxu0 0.0
      %3157 = vmatpush1.msra.mxu0 0.0
      %3158 = vmatprep.subr.mxu0 0.0
      %3159 = vmatpush1.msra.mxu0 0.0
      %3160 = vmatprep.subr.mxu0 0.0
      %3161 = vmatpush1.msra.mxu0 0.0
      %3162 = vmatprep.subr.mxu0 0.0
      %3163 = vmatpush1.msra.mxu0 0.0
      %3164 = vmatprep.subr.mxu0 0.0
      %3165 = vmatpush1.msra.mxu0 0.0
      %3166 = vmatprep.subr.mxu0 0.0
      %3167 = vmatpush1.msra.mxu0 0.0
      %3168 = vmatprep.subr.mxu0 0.0
      %3169 = vmatpush1.msra.mxu0 0.0
      %3170 = vmatprep.subr.mxu0 0.0
      %3171 = vmatpush1.msra.mxu0 0.0
      %3172 = vmatprep.subr.mxu0 0.0
      %3173 = vmatpush1.msra.mxu0 0.0
      %3174 = vmatprep.subr.mxu0 0.0
      %3175 = vmatpush1.msra.mxu0 0.0
      %3176 = vmatprep.subr.mxu0 0.0
      %3177 = vmatpush1.msra.mxu0 0.0
      %3178 = vmatprep.subr.mxu0 0.0
      %3179 = vmatpush1.msra.mxu0 0.0
      %3180 = vmatprep.subr.mxu0 0.0
      %3181 = vmatpush1.msra.mxu0 0.0
      %3182 = vmatprep.subr.mxu0 0.0
      %3183 = vmatpush1.msra.mxu0 0.0
      %3184 = vmatprep.subr.mxu0 0.0
      %3185 = vmatpush1.msra.mxu0 0.0
      %3186 = vmatprep.subr.mxu0 0.0
      %3187 = vmatpush1.msra.mxu0 0.0
      %3188 = vmatprep.subr.mxu0 0.0
      %3189 = vmatpush1.msra.mxu0 0.0
      %3190 = vmatprep.subr.mxu0 0.0
      %3191 = vmatpush1.msra.mxu0 0.0
      %3192 = vmatprep.subr.mxu0 0.0
      %3193 = vmatpush1.msra.mxu0 0.0
      %3194 = vmatprep.mubr.f32.mxu0 0.0
      %v3195 = vand.u32 %v2729, 4294901760
      %3196 = vmatmul.mubr.f32.gmra.mrb[0].mxu0 %v3195
      %v3197 = vpop.f32.mrb[0].mxu0
      %v3198 = vadd.f32 %v3124, %v3197
      %v3199 = vpop.f32.mrb[0].mxu0
      %v3200 = vadd.f32 %v3126, %v3199
      %3201 = vdwg.mxu0
      %v3202 = vadd.f32 %v2716, %v3198
      %v3203 = vadd.f32 %v2717, %v3200
      %3204 = vrot.lane.b32.xlu0 %v252, 112
      %v3205 = vpop.permute.xlu0 %3204
      %3206 = vrot.lane.b32.xlu0 %v261, 112
      %v3207 = vpop.permute.xlu0 %3206
      %vm3208 = vcmp.lt.s32.totalorder %v268, 112
      %v3209 = vsel %vm3208, %v3205, %v3207
      %v3210 = vsel %vm3208, %v3207, %v3205
      %v3212 = vlaneseq
      %v3213 = vshrl.u32 %v3212, 7
      %v3214 = vsub.s32 0, %v3213
      %v3215 = vrot.slane %v255, %v3214
      %v3216 = vlaneseq
      %v3217 = vshrl.u32 %v3216, 7
      %v3218 = vsub.s32 1, %v3217
      %v3219 = vrot.slane %v255, %v3218
      %v3222 = vmul.f32 %v3209, %v3215
      %v3223 = vmul.f32 %v3210, %v3219
      %3224 = vrot.lane.b32.xlu0 %v3222, 1
      %v3225 = vpop.permute.xlu0 %3224
      %3226 = vrot.lane.b32.xlu0 %v3223, 1
      %v3227 = vpop.permute.xlu0 %3226
      %v3228 = vsel %vm289, %v3225, %v3227
      %v3229 = vsel %vm289, %v3227, %v3225
      %v3230 = vmul.f32 %v3229, %v296
      %v3231 = vmul.f32 %v3228, %v300
      %s3232 = scalar_lea.vmem %s2, 12
      %v3233 = vld [vmem:[%s3232] sm:$0x3]
      %v3235 = vsel %vm308, %v3233, 0
      %v3238 = vsel %vm312, %v3230, 0
      %v3241 = vsel %vm312, %v3231, 0
      %v3243 = vand.u32 %v3241, 4294901760
      %3244 = vmatprep.subr.mxu0 %v3243
      %v3245 = vand.u32 %v3238, 4294901760
      %3246 = vmatpush1.msra.mxu0 %v3245
      %3247 = vmatprep.subr.mxu0 0.0
      %3248 = vmatpush1.msra.mxu0 0.0
      %3249 = vmatprep.subr.mxu0 0.0
      %3250 = vmatpush1.msra.mxu0 0.0
      %3251 = vmatprep.subr.mxu0 0.0
      %3252 = vmatpush1.msra.mxu0 0.0
      %3253 = vmatprep.subr.mxu0 0.0
      %3254 = vmatpush1.msra.mxu0 0.0
      %3255 = vmatprep.subr.mxu0 0.0
      %3256 = vmatpush1.msra.mxu0 0.0
      %3257 = vmatprep.subr.mxu0 0.0
      %3258 = vmatpush1.msra.mxu0 0.0
      %3259 = vmatprep.subr.mxu0 0.0
      %3260 = vmatpush1.msra.mxu0 0.0
      %3261 = vmatprep.subr.mxu0 0.0
      %3262 = vmatpush1.msra.mxu0 0.0
      %3263 = vmatprep.subr.mxu0 0.0
      %3264 = vmatpush1.msra.mxu0 0.0
      %3265 = vmatprep.subr.mxu0 0.0
      %3266 = vmatpush1.msra.mxu0 0.0
      %3267 = vmatprep.subr.mxu0 0.0
      %3268 = vmatpush1.msra.mxu0 0.0
      %3269 = vmatprep.subr.mxu0 0.0
      %3270 = vmatpush1.msra.mxu0 0.0
      %3271 = vmatprep.subr.mxu0 0.0
      %3272 = vmatpush1.msra.mxu0 0.0
      %3273 = vmatprep.subr.mxu0 0.0
      %3274 = vmatpush1.msra.mxu0 0.0
      %3275 = vmatprep.subr.mxu0 0.0
      %3276 = vmatpush1.msra.mxu0 0.0
      %3277 = vmatprep.subr.mxu0 0.0
      %3278 = vmatpush1.msra.mxu0 0.0
      %3279 = vmatprep.subr.mxu0 0.0
      %3280 = vmatpush1.msra.mxu0 0.0
      %3281 = vmatprep.subr.mxu0 0.0
      %3282 = vmatpush1.msra.mxu0 0.0
      %3283 = vmatprep.subr.mxu0 0.0
      %3284 = vmatpush1.msra.mxu0 0.0
      %3285 = vmatprep.subr.mxu0 0.0
      %3286 = vmatpush1.msra.mxu0 0.0
      %3287 = vmatprep.subr.mxu0 0.0
      %3288 = vmatpush1.msra.mxu0 0.0
      %3289 = vmatprep.subr.mxu0 0.0
      %3290 = vmatpush1.msra.mxu0 0.0
      %3291 = vmatprep.subr.mxu0 0.0
      %3292 = vmatpush1.msra.mxu0 0.0
      %3293 = vmatprep.subr.mxu0 0.0
      %3294 = vmatpush1.msra.mxu0 0.0
      %3295 = vmatprep.subr.mxu0 0.0
      %3296 = vmatpush1.msra.mxu0 0.0
      %3297 = vmatprep.subr.mxu0 0.0
      %3298 = vmatpush1.msra.mxu0 0.0
      %3299 = vmatprep.subr.mxu0 0.0
      %3300 = vmatpush1.msra.mxu0 0.0
      %3301 = vmatprep.subr.mxu0 0.0
      %3302 = vmatpush1.msra.mxu0 0.0
      %3303 = vmatprep.subr.mxu0 0.0
      %3304 = vmatpush1.msra.mxu0 0.0
      %3305 = vmatprep.subr.mxu0 0.0
      %3306 = vmatpush1.msra.mxu0 0.0
      %3307 = vmatprep.subr.mxu0 0.0
      %3308 = vmatpush1.msra.mxu0 0.0
      %3309 = vmatprep.mubr.f32.mxu0 0.0
      %v3310 = vand.u32 %v3235, 4294901760
      %v3311 = vsub.f32 %v3235, %v3310
      %v3312 = vand.u32 %v3311, 4294901760
      %v3313 = vsub.f32 %v3311, %v3312
      %v3314 = vand.u32 %v3313, 4294901760
      %3315 = vmatmul.mubr.f32.gmra.mrb[0].mxu0 %v3314
      %v3316 = vpop.f32.mrb[0].mxu0
      %v3317 = vadd.f32 0.0, %v3316
      %v3318 = vpop.f32.mrb[0].mxu0
      %v3319 = vadd.f32 0.0, %v3318
      %3320 = vdwg.mxu0
      %v3321 = vand.u32 %v3241, 4294901760
      %v3322 = vsub.f32 %v3241, %v3321
      %v3323 = vand.u32 %v3322, 4294901760
      %v3324 = vsub.f32 %v3322, %v3323
      %v3325 = vand.u32 %v3324, 4294901760
      %3326 = vmatprep.subr.mxu0 %v3325
      %v3327 = vand.u32 %v3238, 4294901760
      %v3328 = vsub.f32 %v3238, %v3327
      %v3329 = vand.u32 %v3328, 4294901760
      %v3330 = vsub.f32 %v3328, %v3329
      %v3331 = vand.u32 %v3330, 4294901760
      %3332 = vmatpush1.msra.mxu0 %v3331
      %3333 = vmatprep.subr.mxu0 0.0
      %3334 = vmatpush1.msra.mxu0 0.0
      %3335 = vmatprep.subr.mxu0 0.0
      %3336 = vmatpush1.msra.mxu0 0.0
      %3337 = vmatprep.subr.mxu0 0.0
      %3338 = vmatpush1.msra.mxu0 0.0
      %3339 = vmatprep.subr.mxu0 0.0
      %3340 = vmatpush1.msra.mxu0 0.0
      %3341 = vmatprep.subr.mxu0 0.0
      %3342 = vmatpush1.msra.mxu0 0.0
      %3343 = vmatprep.subr.mxu0 0.0
      %3344 = vmatpush1.msra.mxu0 0.0
      %3345 = vmatprep.subr.mxu0 0.0
      %3346 = vmatpush1.msra.mxu0 0.0
      %3347 = vmatprep.subr.mxu0 0.0
      %3348 = vmatpush1.msra.mxu0 0.0
      %3349 = vmatprep.subr.mxu0 0.0
      %3350 = vmatpush1.msra.mxu0 0.0
      %3351 = vmatprep.subr.mxu0 0.0
      %3352 = vmatpush1.msra.mxu0 0.0
      %3353 = vmatprep.subr.mxu0 0.0
      %3354 = vmatpush1.msra.mxu0 0.0
      %3355 = vmatprep.subr.mxu0 0.0
      %3356 = vmatpush1.msra.mxu0 0.0
      %3357 = vmatprep.subr.mxu0 0.0
      %3358 = vmatpush1.msra.mxu0 0.0
      %3359 = vmatprep.subr.mxu0 0.0
      %3360 = vmatpush1.msra.mxu0 0.0
      %3361 = vmatprep.subr.mxu0 0.0
      %3362 = vmatpush1.msra.mxu0 0.0
      %3363 = vmatprep.subr.mxu0 0.0
      %3364 = vmatpush1.msra.mxu0 0.0
      %3365 = vmatprep.subr.mxu0 0.0
      %3366 = vmatpush1.msra.mxu0 0.0
      %3367 = vmatprep.subr.mxu0 0.0
      %3368 = vmatpush1.msra.mxu0 0.0
      %3369 = vmatprep.subr.mxu0 0.0
      %3370 = vmatpush1.msra.mxu0 0.0
      %3371 = vmatprep.subr.mxu0 0.0
      %3372 = vmatpush1.msra.mxu0 0.0
      %3373 = vmatprep.subr.mxu0 0.0
      %3374 = vmatpush1.msra.mxu0 0.0
      %3375 = vmatprep.subr.mxu0 0.0
      %3376 = vmatpush1.msra.mxu0 0.0
      %3377 = vmatprep.subr.mxu0 0.0
      %3378 = vmatpush1.msra.mxu0 0.0
      %3379 = vmatprep.subr.mxu0 0.0
      %3380 = vmatpush1.msra.mxu0 0.0
      %3381 = vmatprep.subr.mxu0 0.0
      %3382 = vmatpush1.msra.mxu0 0.0
      %3383 = vmatprep.subr.mxu0 0.0
      %3384 = vmatpush1.msra.mxu0 0.0
      %3385 = vmatprep.subr.mxu0 0.0
      %3386 = vmatpush1.msra.mxu0 0.0
      %3387 = vmatprep.subr.mxu0 0.0
      %3388 = vmatpush1.msra.mxu0 0.0
      %3389 = vmatprep.subr.mxu0 0.0
      %3390 = vmatpush1.msra.mxu0 0.0
      %3391 = vmatprep.subr.mxu0 0.0
      %3392 = vmatpush1.msra.mxu0 0.0
      %3393 = vmatprep.subr.mxu0 0.0
      %3394 = vmatpush1.msra.mxu0 0.0
      %3395 = vmatprep.mubr.f32.mxu0 0.0
      %v3396 = vand.u32 %v3235, 4294901760
      %3397 = vmatmul.mubr.f32.gmra.mrb[0].mxu0 %v3396
      %v3398 = vpop.f32.mrb[0].mxu0
      %v3399 = vadd.f32 %v3317, %v3398
      %v3400 = vpop.f32.mrb[0].mxu0
      %v3401 = vadd.f32 %v3319, %v3400
      %3402 = vdwg.mxu0
      %v3403 = vand.u32 %v3241, 4294901760
      %v3404 = vsub.f32 %v3241, %v3403
      %3405 = vmatprep.subr.mxu0 %v3404
      %v3406 = vand.u32 %v3238, 4294901760
      %v3407 = vsub.f32 %v3238, %v3406
      %3408 = vmatpush1.msra.mxu0 %v3407
      %3409 = vmatprep.subr.mxu0 0.0
      %3410 = vmatpush1.msra.mxu0 0.0
      %3411 = vmatprep.subr.mxu0 0.0
      %3412 = vmatpush1.msra.mxu0 0.0
      %3413 = vmatprep.subr.mxu0 0.0
      %3414 = vmatpush1.msra.mxu0 0.0
      %3415 = vmatprep.subr.mxu0 0.0
      %3416 = vmatpush1.msra.mxu0 0.0
      %3417 = vmatprep.subr.mxu0 0.0
      %3418 = vmatpush1.msra.mxu0 0.0
      %3419 = vmatprep.subr.mxu0 0.0
      %3420 = vmatpush1.msra.mxu0 0.0
      %3421 = vmatprep.subr.mxu0 0.0
      %3422 = vmatpush1.msra.mxu0 0.0
      %3423 = vmatprep.subr.mxu0 0.0
      %3424 = vmatpush1.msra.mxu0 0.0
      %3425 = vmatprep.subr.mxu0 0.0
      %3426 = vmatpush1.msra.mxu0 0.0
      %3427 = vmatprep.subr.mxu0 0.0
      %3428 = vmatpush1.msra.mxu0 0.0
      %3429 = vmatprep.subr.mxu0 0.0
      %3430 = vmatpush1.msra.mxu0 0.0
      %3431 = vmatprep.subr.mxu0 0.0
      %3432 = vmatpush1.msra.mxu0 0.0
      %3433 = vmatprep.subr.mxu0 0.0
      %3434 = vmatpush1.msra.mxu0 0.0
      %3435 = vmatprep.subr.mxu0 0.0
      %3436 = vmatpush1.msra.mxu0 0.0
      %3437 = vmatprep.subr.mxu0 0.0
      %3438 = vmatpush1.msra.mxu0 0.0
      %3439 = vmatprep.subr.mxu0 0.0
      %3440 = vmatpush1.msra.mxu0 0.0
      %3441 = vmatprep.subr.mxu0 0.0
      %3442 = vmatpush1.msra.mxu0 0.0
      %3443 = vmatprep.subr.mxu0 0.0
      %3444 = vmatpush1.msra.mxu0 0.0
      %3445 = vmatprep.subr.mxu0 0.0
      %3446 = vmatpush1.msra.mxu0 0.0
      %3447 = vmatprep.subr.mxu0 0.0
      %3448 = vmatpush1.msra.mxu0 0.0
      %3449 = vmatprep.subr.mxu0 0.0
      %3450 = vmatpush1.msra.mxu0 0.0
      %3451 = vmatprep.subr.mxu0 0.0
      %3452 = vmatpush1.msra.mxu0 0.0
      %3453 = vmatprep.subr.mxu0 0.0
      %3454 = vmatpush1.msra.mxu0 0.0
      %3455 = vmatprep.subr.mxu0 0.0
      %3456 = vmatpush1.msra.mxu0 0.0
      %3457 = vmatprep.subr.mxu0 0.0
      %3458 = vmatpush1.msra.mxu0 0.0
      %3459 = vmatprep.subr.mxu0 0.0
      %3460 = vmatpush1.msra.mxu0 0.0
      %3461 = vmatprep.subr.mxu0 0.0
      %3462 = vmatpush1.msra.mxu0 0.0
      %3463 = vmatprep.subr.mxu0 0.0
      %3464 = vmatpush1.msra.mxu0 0.0
      %3465 = vmatprep.subr.mxu0 0.0
      %3466 = vmatpush1.msra.mxu0 0.0
      %3467 = vmatprep.subr.mxu0 0.0
      %3468 = vmatpush1.msra.mxu0 0.0
      %3469 = vmatprep.subr.mxu0 0.0
      %3470 = vmatpush1.msra.mxu0 0.0
      %3471 = vmatprep.mubr.f32.mxu0 0.0
      %v3472 = vand.u32 %v3235, 4294901760
      %v3473 = vsub.f32 %v3235, %v3472
      %3474 = vmatmul.mubr.f32.gmra.mrb[0].mxu0 %v3473
      %v3475 = vpop.f32.mrb[0].mxu0
      %v3476 = vadd.f32 %v3399, %v3475
      %v3477 = vpop.f32.mrb[0].mxu0
      %v3478 = vadd.f32 %v3401, %v3477
      %3479 = vdwg.mxu0
      %v3480 = vand.u32 %v3241, 4294901760
      %3481 = vmatprep.subr.mxu0 %v3480
      %v3482 = vand.u32 %v3238, 4294901760
      %3483 = vmatpush1.msra.mxu0 %v3482
      %3484 = vmatprep.subr.mxu0 0.0
      %3485 = vmatpush1.msra.mxu0 0.0
      %3486 = vmatprep.subr.mxu0 0.0
      %3487 = vmatpush1.msra.mxu0 0.0
      %3488 = vmatprep.subr.mxu0 0.0
      %3489 = vmatpush1.msra.mxu0 0.0
      %3490 = vmatprep.subr.mxu0 0.0
      %3491 = vmatpush1.msra.mxu0 0.0
      %3492 = vmatprep.subr.mxu0 0.0
      %3493 = vmatpush1.msra.mxu0 0.0
      %3494 = vmatprep.subr.mxu0 0.0
      %3495 = vmatpush1.msra.mxu0 0.0
      %3496 = vmatprep.subr.mxu0 0.0
      %3497 = vmatpush1.msra.mxu0 0.0
      %3498 = vmatprep.subr.mxu0 0.0
      %3499 = vmatpush1.msra.mxu0 0.0
      %3500 = vmatprep.subr.mxu0 0.0
      %3501 = vmatpush1.msra.mxu0 0.0
      %3502 = vmatprep.subr.mxu0 0.0
      %3503 = vmatpush1.msra.mxu0 0.0
      %3504 = vmatprep.subr.mxu0 0.0
      %3505 = vmatpush1.msra.mxu0 0.0
      %3506 = vmatprep.subr.mxu0 0.0
      %3507 = vmatpush1.msra.mxu0 0.0
      %3508 = vmatprep.subr.mxu0 0.0
      %3509 = vmatpush1.msra.mxu0 0.0
      %3510 = vmatprep.subr.mxu0 0.0
      %3511 = vmatpush1.msra.mxu0 0.0
      %3512 = vmatprep.subr.mxu0 0.0
      %3513 = vmatpush1.msra.mxu0 0.0
      %3514 = vmatprep.subr.mxu0 0.0
      %3515 = vmatpush1.msra.mxu0 0.0
      %3516 = vmatprep.subr.mxu0 0.0
      %3517 = vmatpush1.msra.mxu0 0.0
      %3518 = vmatprep.subr.mxu0 0.0
      %3519 = vmatpush1.msra.mxu0 0.0
      %3520 = vmatprep.subr.mxu0 0.0
      %3521 = vmatpush1.msra.mxu0 0.0
      %3522 = vmatprep.subr.mxu0 0.0
      %3523 = vmatpush1.msra.mxu0 0.0
      %3524 = vmatprep.subr.mxu0 0.0
      %3525 = vmatpush1.msra.mxu0 0.0
      %3526 = vmatprep.subr.mxu0 0.0
      %3527 = vmatpush1.msra.mxu0 0.0
      %3528 = vmatprep.subr.mxu0 0.0
      %3529 = vmatpush1.msra.mxu0 0.0
      %3530 = vmatprep.subr.mxu0 0.0
      %3531 = vmatpush1.msra.mxu0 0.0
      %3532 = vmatprep.subr.mxu0 0.0
      %3533 = vmatpush1.msra.mxu0 0.0
      %3534 = vmatprep.subr.mxu0 0.0
      %3535 = vmatpush1.msra.mxu0 0.0
      %3536 = vmatprep.subr.mxu0 0.0
      %3537 = vmatpush1.msra.mxu0 0.0
      %3538 = vmatprep.subr.mxu0 0.0
      %3539 = vmatpush1.msra.mxu0 0.0
      %3540 = vmatprep.subr.mxu0 0.0
      %3541 = vmatpush1.msra.mxu0 0.0
      %3542 = vmatprep.subr.mxu0 0.0
      %3543 = vmatpush1.msra.mxu0 0.0
      %3544 = vmatprep.subr.mxu0 0.0
      %3545 = vmatpush1.msra.mxu0 0.0
      %3546 = vmatprep.mubr.f32.mxu0 0.0
      %v3547 = vand.u32 %v3235, 4294901760
      %v3548 = vsub.f32 %v3235, %v3547
      %v3549 = vand.u32 %v3548, 4294901760
      %3550 = vmatmul.mubr.f32.gmra.mrb[0].mxu0 %v3549
      %v3551 = vpop.f32.mrb[0].mxu0
      %v3552 = vadd.f32 %v3476, %v3551
      %v3553 = vpop.f32.mrb[0].mxu0
      %v3554 = vadd.f32 %v3478, %v3553
      %3555 = vdwg.mxu0
      %v3556 = vand.u32 %v3241, 4294901760
      %v3557 = vsub.f32 %v3241, %v3556
      %v3558 = vand.u32 %v3557, 4294901760
      %3559 = vmatprep.subr.mxu0 %v3558
      %v3560 = vand.u32 %v3238, 4294901760
      %v3561 = vsub.f32 %v3238, %v3560
      %v3562 = vand.u32 %v3561, 4294901760
      %3563 = vmatpush1.msra.mxu0 %v3562
      %3564 = vmatprep.subr.mxu0 0.0
      %3565 = vmatpush1.msra.mxu0 0.0
      %3566 = vmatprep.subr.mxu0 0.0
      %3567 = vmatpush1.msra.mxu0 0.0
      %3568 = vmatprep.subr.mxu0 0.0
      %3569 = vmatpush1.msra.mxu0 0.0
      %3570 = vmatprep.subr.mxu0 0.0
      %3571 = vmatpush1.msra.mxu0 0.0
      %3572 = vmatprep.subr.mxu0 0.0
      %3573 = vmatpush1.msra.mxu0 0.0
      %3574 = vmatprep.subr.mxu0 0.0
      %3575 = vmatpush1.msra.mxu0 0.0
      %3576 = vmatprep.subr.mxu0 0.0
      %3577 = vmatpush1.msra.mxu0 0.0
      %3578 = vmatprep.subr.mxu0 0.0
      %3579 = vmatpush1.msra.mxu0 0.0
      %3580 = vmatprep.subr.mxu0 0.0
      %3581 = vmatpush1.msra.mxu0 0.0
      %3582 = vmatprep.subr.mxu0 0.0
      %3583 = vmatpush1.msra.mxu0 0.0
      %3584 = vmatprep.subr.mxu0 0.0
      %3585 = vmatpush1.msra.mxu0 0.0
      %3586 = vmatprep.subr.mxu0 0.0
      %3587 = vmatpush1.msra.mxu0 0.0
      %3588 = vmatprep.subr.mxu0 0.0
      %3589 = vmatpush1.msra.mxu0 0.0
      %3590 = vmatprep.subr.mxu0 0.0
      %3591 = vmatpush1.msra.mxu0 0.0
      %3592 = vmatprep.subr.mxu0 0.0
      %3593 = vmatpush1.msra.mxu0 0.0
      %3594 = vmatprep.subr.mxu0 0.0
      %3595 = vmatpush1.msra.mxu0 0.0
      %3596 = vmatprep.subr.mxu0 0.0
      %3597 = vmatpush1.msra.mxu0 0.0
      %3598 = vmatprep.subr.mxu0 0.0
      %3599 = vmatpush1.msra.mxu0 0.0
      %3600 = vmatprep.subr.mxu0 0.0
      %3601 = vmatpush1.msra.mxu0 0.0
      %3602 = vmatprep.subr.mxu0 0.0
      %3603 = vmatpush1.msra.mxu0 0.0
      %3604 = vmatprep.subr.mxu0 0.0
      %3605 = vmatpush1.msra.mxu0 0.0
      %3606 = vmatprep.subr.mxu0 0.0
      %3607 = vmatpush1.msra.mxu0 0.0
      %3608 = vmatprep.subr.mxu0 0.0
      %3609 = vmatpush1.msra.mxu0 0.0
      %3610 = vmatprep.subr.mxu0 0.0
      %3611 = vmatpush1.msra.mxu0 0.0
      %3612 = vmatprep.subr.mxu0 0.0
      %3613 = vmatpush1.msra.mxu0 0.0
      %3614 = vmatprep.subr.mxu0 0.0
      %3615 = vmatpush1.msra.mxu0 0.0
      %3616 = vmatprep.subr.mxu0 0.0
      %3617 = vmatpush1.msra.mxu0 0.0
      %3618 = vmatprep.subr.mxu0 0.0
      %3619 = vmatpush1.msra.mxu0 0.0
      %3620 = vmatprep.subr.mxu0 0.0
      %3621 = vmatpush1.msra.mxu0 0.0
      %3622 = vmatprep.subr.mxu0 0.0
      %3623 = vmatpush1.msra.mxu0 0.0
      %3624 = vmatprep.subr.mxu0 0.0
      %3625 = vmatpush1.msra.mxu0 0.0
      %3626 = vmatprep.mubr.f32.mxu0 0.0
      %v3627 = vand.u32 %v3235, 4294901760
      %3628 = vmatmul.mubr.f32.gmra.mrb[0].mxu0 %v3627
      %v3629 = vpop.f32.mrb[0].mxu0
      %v3630 = vadd.f32 %v3552, %v3629
      %v3631 = vpop.f32.mrb[0].mxu0
      %v3632 = vadd.f32 %v3554, %v3631
      %3633 = vdwg.mxu0
      %v3634 = vand.u32 %v3241, 4294901760
      %3635 = vmatprep.subr.mxu0 %v3634
      %v3636 = vand.u32 %v3238, 4294901760
      %3637 = vmatpush1.msra.mxu0 %v3636
      %3638 = vmatprep.subr.mxu0 0.0
      %3639 = vmatpush1.msra.mxu0 0.0
      %3640 = vmatprep.subr.mxu0 0.0
      %3641 = vmatpush1.msra.mxu0 0.0
      %3642 = vmatprep.subr.mxu0 0.0
      %3643 = vmatpush1.msra.mxu0 0.0
      %3644 = vmatprep.subr.mxu0 0.0
      %3645 = vmatpush1.msra.mxu0 0.0
      %3646 = vmatprep.subr.mxu0 0.0
      %3647 = vmatpush1.msra.mxu0 0.0
      %3648 = vmatprep.subr.mxu0 0.0
      %3649 = vmatpush1.msra.mxu0 0.0
      %3650 = vmatprep.subr.mxu0 0.0
      %3651 = vmatpush1.msra.mxu0 0.0
      %3652 = vmatprep.subr.mxu0 0.0
      %3653 = vmatpush1.msra.mxu0 0.0
      %3654 = vmatprep.subr.mxu0 0.0
      %3655 = vmatpush1.msra.mxu0 0.0
      %3656 = vmatprep.subr.mxu0 0.0
      %3657 = vmatpush1.msra.mxu0 0.0
      %3658 = vmatprep.subr.mxu0 0.0
      %3659 = vmatpush1.msra.mxu0 0.0
      %3660 = vmatprep.subr.mxu0 0.0
      %3661 = vmatpush1.msra.mxu0 0.0
      %3662 = vmatprep.subr.mxu0 0.0
      %3663 = vmatpush1.msra.mxu0 0.0
      %3664 = vmatprep.subr.mxu0 0.0
      %3665 = vmatpush1.msra.mxu0 0.0
      %3666 = vmatprep.subr.mxu0 0.0
      %3667 = vmatpush1.msra.mxu0 0.0
      %3668 = vmatprep.subr.mxu0 0.0
      %3669 = vmatpush1.msra.mxu0 0.0
      %3670 = vmatprep.subr.mxu0 0.0
      %3671 = vmatpush1.msra.mxu0 0.0
      %3672 = vmatprep.subr.mxu0 0.0
      %3673 = vmatpush1.msra.mxu0 0.0
      %3674 = vmatprep.subr.mxu0 0.0
      %3675 = vmatpush1.msra.mxu0 0.0
      %3676 = vmatprep.subr.mxu0 0.0
      %3677 = vmatpush1.msra.mxu0 0.0
      %3678 = vmatprep.subr.mxu0 0.0
      %3679 = vmatpush1.msra.mxu0 0.0
      %3680 = vmatprep.subr.mxu0 0.0
      %3681 = vmatpush1.msra.mxu0 0.0
      %3682 = vmatprep.subr.mxu0 0.0
      %3683 = vmatpush1.msra.mxu0 0.0
      %3684 = vmatprep.subr.mxu0 0.0
      %3685 = vmatpush1.msra.mxu0 0.0
      %3686 = vmatprep.subr.mxu0 0.0
      %3687 = vmatpush1.msra.mxu0 0.0
      %3688 = vmatprep.subr.mxu0 0.0
      %3689 = vmatpush1.msra.mxu0 0.0
      %3690 = vmatprep.subr.mxu0 0.0
      %3691 = vmatpush1.msra.mxu0 0.0
      %3692 = vmatprep.subr.mxu0 0.0
      %3693 = vmatpush1.msra.mxu0 0.0
      %3694 = vmatprep.subr.mxu0 0.0
      %3695 = vmatpush1.msra.mxu0 0.0
      %3696 = vmatprep.subr.mxu0 0.0
      %3697 = vmatpush1.msra.mxu0 0.0
      %3698 = vmatprep.subr.mxu0 0.0
      %3699 = vmatpush1.msra.mxu0 0.0
      %3700 = vmatprep.mubr.f32.mxu0 0.0
      %v3701 = vand.u32 %v3235, 4294901760
      %3702 = vmatmul.mubr.f32.gmra.mrb[0].mxu0 %v3701
      %v3703 = vpop.f32.mrb[0].mxu0
      %v3704 = vadd.f32 %v3630, %v3703
      %v3705 = vpop.f32.mrb[0].mxu0
      %v3706 = vadd.f32 %v3632, %v3705
      %3707 = vdwg.mxu0
      %v3708 = vadd.f32 %v3202, %v3704
      %v3709 = vadd.f32 %v3203, %v3706
      %s3710 = scalar_lea.vmem %s2, 14
      %v3711 = vld [vmem:[%s3710] sm:$0x3]
      %v3713 = vsel %vm308, %v3711, 0
      %v3716 = vsel %vm312, %v3222, 0
      %v3719 = vsel %vm312, %v3223, 0
      %v3721 = vand.u32 %v3719, 4294901760
      %3722 = vmatprep.subr.mxu0 %v3721
      %v3723 = vand.u32 %v3716, 4294901760
      %3724 = vmatpush1.msra.mxu0 %v3723
      %3725 = vmatprep.subr.mxu0 0.0
      %3726 = vmatpush1.msra.mxu0 0.0
      %3727 = vmatprep.subr.mxu0 0.0
      %3728 = vmatpush1.msra.mxu0 0.0
      %3729 = vmatprep.subr.mxu0 0.0
      %3730 = vmatpush1.msra.mxu0 0.0
      %3731 = vmatprep.subr.mxu0 0.0
      %3732 = vmatpush1.msra.mxu0 0.0
      %3733 = vmatprep.subr.mxu0 0.0
      %3734 = vmatpush1.msra.mxu0 0.0
      %3735 = vmatprep.subr.mxu0 0.0
      %3736 = vmatpush1.msra.mxu0 0.0
      %3737 = vmatprep.subr.mxu0 0.0
      %3738 = vmatpush1.msra.mxu0 0.0
      %3739 = vmatprep.subr.mxu0 0.0
      %3740 = vmatpush1.msra.mxu0 0.0
      %3741 = vmatprep.subr.mxu0 0.0
      %3742 = vmatpush1.msra.mxu0 0.0
      %3743 = vmatprep.subr.mxu0 0.0
      %3744 = vmatpush1.msra.mxu0 0.0
      %3745 = vmatprep.subr.mxu0 0.0
      %3746 = vmatpush1.msra.mxu0 0.0
      %3747 = vmatprep.subr.mxu0 0.0
      %3748 = vmatpush1.msra.mxu0 0.0
      %3749 = vmatprep.subr.mxu0 0.0
      %3750 = vmatpush1.msra.mxu0 0.0
      %3751 = vmatprep.subr.mxu0 0.0
      %3752 = vmatpush1.msra.mxu0 0.0
      %3753 = vmatprep.subr.mxu0 0.0
      %3754 = vmatpush1.msra.mxu0 0.0
      %3755 = vmatprep.subr.mxu0 0.0
      %3756 = vmatpush1.msra.mxu0 0.0
      %3757 = vmatprep.subr.mxu0 0.0
      %3758 = vmatpush1.msra.mxu0 0.0
      %3759 = vmatprep.subr.mxu0 0.0
      %3760 = vmatpush1.msra.mxu0 0.0
      %3761 = vmatprep.subr.mxu0 0.0
      %3762 = vmatpush1.msra.mxu0 0.0
      %3763 = vmatprep.subr.mxu0 0.0
      %3764 = vmatpush1.msra.mxu0 0.0
      %3765 = vmatprep.subr.mxu0 0.0
      %3766 = vmatpush1.msra.mxu0 0.0
      %3767 = vmatprep.subr.mxu0 0.0
      %3768 = vmatpush1.msra.mxu0 0.0
      %3769 = vmatprep.subr.mxu0 0.0
      %3770 = vmatpush1.msra.mxu0 0.0
      %3771 = vmatprep.subr.mxu0 0.0
      %3772 = vmatpush1.msra.mxu0 0.0
      %3773 = vmatprep.subr.mxu0 0.0
      %3774 = vmatpush1.msra.mxu0 0.0
      %3775 = vmatprep.subr.mxu0 0.0
      %3776 = vmatpush1.msra.mxu0 0.0
      %3777 = vmatprep.subr.mxu0 0.0
      %3778 = vmatpush1.msra.mxu0 0.0
      %3779 = vmatprep.subr.mxu0 0.0
      %3780 = vmatpush1.msra.mxu0 0.0
      %3781 = vmatprep.subr.mxu0 0.0
      %3782 = vmatpush1.msra.mxu0 0.0
      %3783 = vmatprep.subr.mxu0 0.0
      %3784 = vmatpush1.msra.mxu0 0.0
      %3785 = vmatprep.subr.mxu0 0.0
      %3786 = vmatpush1.msra.mxu0 0.0
      %3787 = vmatprep.mubr.f32.mxu0 0.0
      %v3788 = vand.u32 %v3713, 4294901760
      %v3789 = vsub.f32 %v3713, %v3788
      %v3790 = vand.u32 %v3789, 4294901760
      %v3791 = vsub.f32 %v3789, %v3790
      %v3792 = vand.u32 %v3791, 4294901760
      %3793 = vmatmul.mubr.f32.gmra.mrb[0].mxu0 %v3792
      %v3794 = vpop.f32.mrb[0].mxu0
      %v3795 = vadd.f32 0.0, %v3794
      %v3796 = vpop.f32.mrb[0].mxu0
      %v3797 = vadd.f32 0.0, %v3796
      %3798 = vdwg.mxu0
      %v3799 = vand.u32 %v3719, 4294901760
      %v3800 = vsub.f32 %v3719, %v3799
      %v3801 = vand.u32 %v3800, 4294901760
      %v3802 = vsub.f32 %v3800, %v3801
      %v3803 = vand.u32 %v3802, 4294901760
      %3804 = vmatprep.subr.mxu0 %v3803
      %v3805 = vand.u32 %v3716, 4294901760
      %v3806 = vsub.f32 %v3716, %v3805
      %v3807 = vand.u32 %v3806, 4294901760
      %v3808 = vsub.f32 %v3806, %v3807
      %v3809 = vand.u32 %v3808, 4294901760
      %3810 = vmatpush1.msra.mxu0 %v3809
      %3811 = vmatprep.subr.mxu0 0.0
      %3812 = vmatpush1.msra.mxu0 0.0
      %3813 = vmatprep.subr.mxu0 0.0
      %3814 = vmatpush1.msra.mxu0 0.0
      %3815 = vmatprep.subr.mxu0 0.0
      %3816 = vmatpush1.msra.mxu0 0.0
      %3817 = vmatprep.subr.mxu0 0.0
      %3818 = vmatpush1.msra.mxu0 0.0
      %3819 = vmatprep.subr.mxu0 0.0
      %3820 = vmatpush1.msra.mxu0 0.0
      %3821 = vmatprep.subr.mxu0 0.0
      %3822 = vmatpush1.msra.mxu0 0.0
      %3823 = vmatprep.subr.mxu0 0.0
      %3824 = vmatpush1.msra.mxu0 0.0
      %3825 = vmatprep.subr.mxu0 0.0
      %3826 = vmatpush1.msra.mxu0 0.0
      %3827 = vmatprep.subr.mxu0 0.0
      %3828 = vmatpush1.msra.mxu0 0.0
      %3829 = vmatprep.subr.mxu0 0.0
      %3830 = vmatpush1.msra.mxu0 0.0
      %3831 = vmatprep.subr.mxu0 0.0
      %3832 = vmatpush1.msra.mxu0 0.0
      %3833 = vmatprep.subr.mxu0 0.0
      %3834 = vmatpush1.msra.mxu0 0.0
      %3835 = vmatprep.subr.mxu0 0.0
      %3836 = vmatpush1.msra.mxu0 0.0
      %3837 = vmatprep.subr.mxu0 0.0
      %3838 = vmatpush1.msra.mxu0 0.0
      %3839 = vmatprep.subr.mxu0 0.0
      %3840 = vmatpush1.msra.mxu0 0.0
      %3841 = vmatprep.subr.mxu0 0.0
      %3842 = vmatpush1.msra.mxu0 0.0
      %3843 = vmatprep.subr.mxu0 0.0
      %3844 = vmatpush1.msra.mxu0 0.0
      %3845 = vmatprep.subr.mxu0 0.0
      %3846 = vmatpush1.msra.mxu0 0.0
      %3847 = vmatprep.subr.mxu0 0.0
      %3848 = vmatpush1.msra.mxu0 0.0
      %3849 = vmatprep.subr.mxu0 0.0
      %3850 = vmatpush1.msra.mxu0 0.0
      %3851 = vmatprep.subr.mxu0 0.0
      %3852 = vmatpush1.msra.mxu0 0.0
      %3853 = vmatprep.subr.mxu0 0.0
      %3854 = vmatpush1.msra.mxu0 0.0
      %3855 = vmatprep.subr.mxu0 0.0
      %3856 = vmatpush1.msra.mxu0 0.0
      %3857 = vmatprep.subr.mxu0 0.0
      %3858 = vmatpush1.msra.mxu0 0.0
      %3859 = vmatprep.subr.mxu0 0.0
      %3860 = vmatpush1.msra.mxu0 0.0
      %3861 = vmatprep.subr.mxu0 0.0
      %3862 = vmatpush1.msra.mxu0 0.0
      %3863 = vmatprep.subr.mxu0 0.0
      %3864 = vmatpush1.msra.mxu0 0.0
      %3865 = vmatprep.subr.mxu0 0.0
      %3866 = vmatpush1.msra.mxu0 0.0
      %3867 = vmatprep.subr.mxu0 0.0
      %3868 = vmatpush1.msra.mxu0 0.0
      %3869 = vmatprep.subr.mxu0 0.0
      %3870 = vmatpush1.msra.mxu0 0.0
      %3871 = vmatprep.subr.mxu0 0.0
      %3872 = vmatpush1.msra.mxu0 0.0
      %3873 = vmatprep.mubr.f32.mxu0 0.0
      %v3874 = vand.u32 %v3713, 4294901760
      %3875 = vmatmul.mubr.f32.gmra.mrb[0].mxu0 %v3874
      %v3876 = vpop.f32.mrb[0].mxu0
      %v3877 = vadd.f32 %v3795, %v3876
      %v3878 = vpop.f32.mrb[0].mxu0
      %v3879 = vadd.f32 %v3797, %v3878
      %3880 = vdwg.mxu0
      %v3881 = vand.u32 %v3719, 4294901760
      %v3882 = vsub.f32 %v3719, %v3881
      %3883 = vmatprep.subr.mxu0 %v3882
      %v3884 = vand.u32 %v3716, 4294901760
      %v3885 = vsub.f32 %v3716, %v3884
      %3886 = vmatpush1.msra.mxu0 %v3885
      %3887 = vmatprep.subr.mxu0 0.0
      %3888 = vmatpush1.msra.mxu0 0.0
      %3889 = vmatprep.subr.mxu0 0.0
      %3890 = vmatpush1.msra.mxu0 0.0
      %3891 = vmatprep.subr.mxu0 0.0
      %3892 = vmatpush1.msra.mxu0 0.0
      %3893 = vmatprep.subr.mxu0 0.0
      %3894 = vmatpush1.msra.mxu0 0.0
      %3895 = vmatprep.subr.mxu0 0.0
      %3896 = vmatpush1.msra.mxu0 0.0
      %3897 = vmatprep.subr.mxu0 0.0
      %3898 = vmatpush1.msra.mxu0 0.0
      %3899 = vmatprep.subr.mxu0 0.0
      %3900 = vmatpush1.msra.mxu0 0.0
      %3901 = vmatprep.subr.mxu0 0.0
      %3902 = vmatpush1.msra.mxu0 0.0
      %3903 = vmatprep.subr.mxu0 0.0
      %3904 = vmatpush1.msra.mxu0 0.0
      %3905 = vmatprep.subr.mxu0 0.0
      %3906 = vmatpush1.msra.mxu0 0.0
      %3907 = vmatprep.subr.mxu0 0.0
      %3908 = vmatpush1.msra.mxu0 0.0
      %3909 = vmatprep.subr.mxu0 0.0
      %3910 = vmatpush1.msra.mxu0 0.0
      %3911 = vmatprep.subr.mxu0 0.0
      %3912 = vmatpush1.msra.mxu0 0.0
      %3913 = vmatprep.subr.mxu0 0.0
      %3914 = vmatpush1.msra.mxu0 0.0
      %3915 = vmatprep.subr.mxu0 0.0
      %3916 = vmatpush1.msra.mxu0 0.0
      %3917 = vmatprep.subr.mxu0 0.0
      %3918 = vmatpush1.msra.mxu0 0.0
      %3919 = vmatprep.subr.mxu0 0.0
      %3920 = vmatpush1.msra.mxu0 0.0
      %3921 = vmatprep.subr.mxu0 0.0
      %3922 = vmatpush1.msra.mxu0 0.0
      %3923 = vmatprep.subr.mxu0 0.0
      %3924 = vmatpush1.msra.mxu0 0.0
      %3925 = vmatprep.subr.mxu0 0.0
      %3926 = vmatpush1.msra.mxu0 0.0
      %3927 = vmatprep.subr.mxu0 0.0
      %3928 = vmatpush1.msra.mxu0 0.0
      %3929 = vmatprep.subr.mxu0 0.0
      %3930 = vmatpush1.msra.mxu0 0.0
      %3931 = vmatprep.subr.mxu0 0.0
      %3932 = vmatpush1.msra.mxu0 0.0
      %3933 = vmatprep.subr.mxu0 0.0
      %3934 = vmatpush1.msra.mxu0 0.0
      %3935 = vmatprep.subr.mxu0 0.0
      %3936 = vmatpush1.msra.mxu0 0.0
      %3937 = vmatprep.subr.mxu0 0.0
      %3938 = vmatpush1.msra.mxu0 0.0
      %3939 = vmatprep.subr.mxu0 0.0
      %3940 = vmatpush1.msra.mxu0 0.0
      %3941 = vmatprep.subr.mxu0 0.0
      %3942 = vmatpush1.msra.mxu0 0.0
      %3943 = vmatprep.subr.mxu0 0.0
      %3944 = vmatpush1.msra.mxu0 0.0
      %3945 = vmatprep.subr.mxu0 0.0
      %3946 = vmatpush1.msra.mxu0 0.0
      %3947 = vmatprep.subr.mxu0 0.0
      %3948 = vmatpush1.msra.mxu0 0.0
      %3949 = vmatprep.mubr.f32.mxu0 0.0
      %v3950 = vand.u32 %v3713, 4294901760
      %v3951 = vsub.f32 %v3713, %v3950
      %3952 = vmatmul.mubr.f32.gmra.mrb[0].mxu0 %v3951
      %v3953 = vpop.f32.mrb[0].mxu0
      %v3954 = vadd.f32 %v3877, %v3953
      %v3955 = vpop.f32.mrb[0].mxu0
      %v3956 = vadd.f32 %v3879, %v3955
      %3957 = vdwg.mxu0
      %v3958 = vand.u32 %v3719, 4294901760
      %3959 = vmatprep.subr.mxu0 %v3958
      %v3960 = vand.u32 %v3716, 4294901760
      %3961 = vmatpush1.msra.mxu0 %v3960
      %3962 = vmatprep.subr.mxu0 0.0
      %3963 = vmatpush1.msra.mxu0 0.0
      %3964 = vmatprep.subr.mxu0 0.0
      %3965 = vmatpush1.msra.mxu0 0.0
      %3966 = vmatprep.subr.mxu0 0.0
      %3967 = vmatpush1.msra.mxu0 0.0
      %3968 = vmatprep.subr.mxu0 0.0
      %3969 = vmatpush1.msra.mxu0 0.0
      %3970 = vmatprep.subr.mxu0 0.0
      %3971 = vmatpush1.msra.mxu0 0.0
      %3972 = vmatprep.subr.mxu0 0.0
      %3973 = vmatpush1.msra.mxu0 0.0
      %3974 = vmatprep.subr.mxu0 0.0
      %3975 = vmatpush1.msra.mxu0 0.0
      %3976 = vmatprep.subr.mxu0 0.0
      %3977 = vmatpush1.msra.mxu0 0.0
      %3978 = vmatprep.subr.mxu0 0.0
      %3979 = vmatpush1.msra.mxu0 0.0
      %3980 = vmatprep.subr.mxu0 0.0
      %3981 = vmatpush1.msra.mxu0 0.0
      %3982 = vmatprep.subr.mxu0 0.0
      %3983 = vmatpush1.msra.mxu0 0.0
      %3984 = vmatprep.subr.mxu0 0.0
      %3985 = vmatpush1.msra.mxu0 0.0
      %3986 = vmatprep.subr.mxu0 0.0
      %3987 = vmatpush1.msra.mxu0 0.0
      %3988 = vmatprep.subr.mxu0 0.0
      %3989 = vmatpush1.msra.mxu0 0.0
      %3990 = vmatprep.subr.mxu0 0.0
      %3991 = vmatpush1.msra.mxu0 0.0
      %3992 = vmatprep.subr.mxu0 0.0
      %3993 = vmatpush1.msra.mxu0 0.0
      %3994 = vmatprep.subr.mxu0 0.0
      %3995 = vmatpush1.msra.mxu0 0.0
      %3996 = vmatprep.subr.mxu0 0.0
      %3997 = vmatpush1.msra.mxu0 0.0
      %3998 = vmatprep.subr.mxu0 0.0
      %3999 = vmatpush1.msra.mxu0 0.0
      %4000 = vmatprep.subr.mxu0 0.0
      %4001 = vmatpush1.msra.mxu0 0.0
      %4002 = vmatprep.subr.mxu0 0.0
      %4003 = vmatpush1.msra.mxu0 0.0
      %4004 = vmatprep.subr.mxu0 0.0
      %4005 = vmatpush1.msra.mxu0 0.0
      %4006 = vmatprep.subr.mxu0 0.0
      %4007 = vmatpush1.msra.mxu0 0.0
      %4008 = vmatprep.subr.mxu0 0.0
      %4009 = vmatpush1.msra.mxu0 0.0
      %4010 = vmatprep.subr.mxu0 0.0
      %4011 = vmatpush1.msra.mxu0 0.0
      %4012 = vmatprep.subr.mxu0 0.0
      %4013 = vmatpush1.msra.mxu0 0.0
      %4014 = vmatprep.subr.mxu0 0.0
      %4015 = vmatpush1.msra.mxu0 0.0
      %4016 = vmatprep.subr.mxu0 0.0
      %4017 = vmatpush1.msra.mxu0 0.0
      %4018 = vmatprep.subr.mxu0 0.0
      %4019 = vmatpush1.msra.mxu0 0.0
      %4020 = vmatprep.subr.mxu0 0.0
      %4021 = vmatpush1.msra.mxu0 0.0
      %4022 = vmatprep.subr.mxu0 0.0
      %4023 = vmatpush1.msra.mxu0 0.0
      %4024 = vmatprep.mubr.f32.mxu0 0.0
      %v4025 = vand.u32 %v3713, 4294901760
      %v4026 = vsub.f32 %v3713, %v4025
      %v4027 = vand.u32 %v4026, 4294901760
      %4028 = vmatmul.mubr.f32.gmra.mrb[0].mxu0 %v4027
      %v4029 = vpop.f32.mrb[0].mxu0
      %v4030 = vadd.f32 %v3954, %v4029
      %v4031 = vpop.f32.mrb[0].mxu0
      %v4032 = vadd.f32 %v3956, %v4031
      %4033 = vdwg.mxu0
      %v4034 = vand.u32 %v3719, 4294901760
      %v4035 = vsub.f32 %v3719, %v4034
      %v4036 = vand.u32 %v4035, 4294901760
      %4037 = vmatprep.subr.mxu0 %v4036
      %v4038 = vand.u32 %v3716, 4294901760
      %v4039 = vsub.f32 %v3716, %v4038
      %v4040 = vand.u32 %v4039, 4294901760
      %4041 = vmatpush1.msra.mxu0 %v4040
      %4042 = vmatprep.subr.mxu0 0.0
      %4043 = vmatpush1.msra.mxu0 0.0
      %4044 = vmatprep.subr.mxu0 0.0
      %4045 = vmatpush1.msra.mxu0 0.0
      %4046 = vmatprep.subr.mxu0 0.0
      %4047 = vmatpush1.msra.mxu0 0.0
      %4048 = vmatprep.subr.mxu0 0.0
      %4049 = vmatpush1.msra.mxu0 0.0
      %4050 = vmatprep.subr.mxu0 0.0
      %4051 = vmatpush1.msra.mxu0 0.0
      %4052 = vmatprep.subr.mxu0 0.0
      %4053 = vmatpush1.msra.mxu0 0.0
      %4054 = vmatprep.subr.mxu0 0.0
      %4055 = vmatpush1.msra.mxu0 0.0
      %4056 = vmatprep.subr.mxu0 0.0
      %4057 = vmatpush1.msra.mxu0 0.0
      %4058 = vmatprep.subr.mxu0 0.0
      %4059 = vmatpush1.msra.mxu0 0.0
      %4060 = vmatprep.subr.mxu0 0.0
      %4061 = vmatpush1.msra.mxu0 0.0
      %4062 = vmatprep.subr.mxu0 0.0
      %4063 = vmatpush1.msra.mxu0 0.0
      %4064 = vmatprep.subr.mxu0 0.0
      %4065 = vmatpush1.msra.mxu0 0.0
      %4066 = vmatprep.subr.mxu0 0.0
      %4067 = vmatpush1.msra.mxu0 0.0
      %4068 = vmatprep.subr.mxu0 0.0
      %4069 = vmatpush1.msra.mxu0 0.0
      %4070 = vmatprep.subr.mxu0 0.0
      %4071 = vmatpush1.msra.mxu0 0.0
      %4072 = vmatprep.subr.mxu0 0.0
      %4073 = vmatpush1.msra.mxu0 0.0
      %4074 = vmatprep.subr.mxu0 0.0
      %4075 = vmatpush1.msra.mxu0 0.0
      %4076 = vmatprep.subr.mxu0 0.0
      %4077 = vmatpush1.msra.mxu0 0.0
      %4078 = vmatprep.subr.mxu0 0.0
      %4079 = vmatpush1.msra.mxu0 0.0
      %4080 = vmatprep.subr.mxu0 0.0
      %4081 = vmatpush1.msra.mxu0 0.0
      %4082 = vmatprep.subr.mxu0 0.0
      %4083 = vmatpush1.msra.mxu0 0.0
      %4084 = vmatprep.subr.mxu0 0.0
      %4085 = vmatpush1.msra.mxu0 0.0
      %4086 = vmatprep.subr.mxu0 0.0
      %4087 = vmatpush1.msra.mxu0 0.0
      %4088 = vmatprep.subr.mxu0 0.0
      %4089 = vmatpush1.msra.mxu0 0.0
      %4090 = vmatprep.subr.mxu0 0.0
      %4091 = vmatpush1.msra.mxu0 0.0
      %4092 = vmatprep.subr.mxu0 0.0
      %4093 = vmatpush1.msra.mxu0 0.0
      %4094 = vmatprep.subr.mxu0 0.0
      %4095 = vmatpush1.msra.mxu0 0.0
      %4096 = vmatprep.subr.mxu0 0.0
      %4097 = vmatpush1.msra.mxu0 0.0
      %4098 = vmatprep.subr.mxu0 0.0
      %4099 = vmatpush1.msra.mxu0 0.0
      %4100 = vmatprep.subr.mxu0 0.0
      %4101 = vmatpush1.msra.mxu0 0.0
      %4102 = vmatprep.subr.mxu0 0.0
      %4103 = vmatpush1.msra.mxu0 0.0
      %4104 = vmatprep.mubr.f32.mxu0 0.0
      %v4105 = vand.u32 %v3713, 4294901760
      %4106 = vmatmul.mubr.f32.gmra.mrb[0].mxu0 %v4105
      %v4107 = vpop.f32.mrb[0].mxu0
      %v4108 = vadd.f32 %v4030, %v4107
      %v4109 = vpop.f32.mrb[0].mxu0
      %v4110 = vadd.f32 %v4032, %v4109
      %4111 = vdwg.mxu0
      %v4112 = vand.u32 %v3719, 4294901760
      %4113 = vmatprep.subr.mxu0 %v4112
      %v4114 = vand.u32 %v3716, 4294901760
      %4115 = vmatpush1.msra.mxu0 %v4114
      %4116 = vmatprep.subr.mxu0 0.0
      %4117 = vmatpush1.msra.mxu0 0.0
      %4118 = vmatprep.subr.mxu0 0.0
      %4119 = vmatpush1.msra.mxu0 0.0
      %4120 = vmatprep.subr.mxu0 0.0
      %4121 = vmatpush1.msra.mxu0 0.0
      %4122 = vmatprep.subr.mxu0 0.0
      %4123 = vmatpush1.msra.mxu0 0.0
      %4124 = vmatprep.subr.mxu0 0.0
      %4125 = vmatpush1.msra.mxu0 0.0
      %4126 = vmatprep.subr.mxu0 0.0
      %4127 = vmatpush1.msra.mxu0 0.0
      %4128 = vmatprep.subr.mxu0 0.0
      %4129 = vmatpush1.msra.mxu0 0.0
      %4130 = vmatprep.subr.mxu0 0.0
      %4131 = vmatpush1.msra.mxu0 0.0
      %4132 = vmatprep.subr.mxu0 0.0
      %4133 = vmatpush1.msra.mxu0 0.0
      %4134 = vmatprep.subr.mxu0 0.0
      %4135 = vmatpush1.msra.mxu0 0.0
      %4136 = vmatprep.subr.mxu0 0.0
      %4137 = vmatpush1.msra.mxu0 0.0
      %4138 = vmatprep.subr.mxu0 0.0
      %4139 = vmatpush1.msra.mxu0 0.0
      %4140 = vmatprep.subr.mxu0 0.0
      %4141 = vmatpush1.msra.mxu0 0.0
      %4142 = vmatprep.subr.mxu0 0.0
      %4143 = vmatpush1.msra.mxu0 0.0
      %4144 = vmatprep.subr.mxu0 0.0
      %4145 = vmatpush1.msra.mxu0 0.0
      %4146 = vmatprep.subr.mxu0 0.0
      %4147 = vmatpush1.msra.mxu0 0.0
      %4148 = vmatprep.subr.mxu0 0.0
      %4149 = vmatpush1.msra.mxu0 0.0
      %4150 = vmatprep.subr.mxu0 0.0
      %4151 = vmatpush1.msra.mxu0 0.0
      %4152 = vmatprep.subr.mxu0 0.0
      %4153 = vmatpush1.msra.mxu0 0.0
      %4154 = vmatprep.subr.mxu0 0.0
      %4155 = vmatpush1.msra.mxu0 0.0
      %4156 = vmatprep.subr.mxu0 0.0
      %4157 = vmatpush1.msra.mxu0 0.0
      %4158 = vmatprep.subr.mxu0 0.0
      %4159 = vmatpush1.msra.mxu0 0.0
      %4160 = vmatprep.subr.mxu0 0.0
      %4161 = vmatpush1.msra.mxu0 0.0
      %4162 = vmatprep.subr.mxu0 0.0
      %4163 = vmatpush1.msra.mxu0 0.0
      %4164 = vmatprep.subr.mxu0 0.0
      %4165 = vmatpush1.msra.mxu0 0.0
      %4166 = vmatprep.subr.mxu0 0.0
      %4167 = vmatpush1.msra.mxu0 0.0
      %4168 = vmatprep.subr.mxu0 0.0
      %4169 = vmatpush1.msra.mxu0 0.0
      %4170 = vmatprep.subr.mxu0 0.0
      %4171 = vmatpush1.msra.mxu0 0.0
      %4172 = vmatprep.subr.mxu0 0.0
      %4173 = vmatpush1.msra.mxu0 0.0
      %4174 = vmatprep.subr.mxu0 0.0
      %4175 = vmatpush1.msra.mxu0 0.0
      %4176 = vmatprep.subr.mxu0 0.0
      %4177 = vmatpush1.msra.mxu0 0.0
      %4178 = vmatprep.mubr.f32.mxu0 0.0
      %v4179 = vand.u32 %v3713, 4294901760
      %4180 = vmatmul.mubr.f32.gmra.mrb[0].mxu0 %v4179
      %v4181 = vpop.f32.mrb[0].mxu0
      %v4182 = vadd.f32 %v4108, %v4181
      %v4183 = vpop.f32.mrb[0].mxu0
      %v4184 = vadd.f32 %v4110, %v4183
      %4185 = vdwg.mxu0
      %v4186 = vadd.f32 %v3708, %v4182
      %v4187 = vadd.f32 %v3709, %v4184
      %4188 = vrot.lane.b32.xlu0 %v3222, 127
      %v4189 = vpop.permute.xlu0 %4188
      %4190 = vrot.lane.b32.xlu0 %v3223, 127
      %v4191 = vpop.permute.xlu0 %4190
      %v4192 = vsel %vm1262, %v4189, %v4191
      %v4193 = vsel %vm1262, %v4191, %v4189
      %v4194 = vmul.f32 %v4192, %v1269
      %v4195 = vmul.f32 %v4193, %v1273
      %s4196 = scalar_lea.vmem %s2, 16
      %v4197 = vld [vmem:[%s4196] sm:$0x3]
      %v4199 = vsel %vm308, %v4197, 0
      %v4202 = vsel %vm312, %v4194, 0
      %v4205 = vsel %vm312, %v4195, 0
      %v4207 = vand.u32 %v4205, 4294901760
      %4208 = vmatprep.subr.mxu0 %v4207
      %v4209 = vand.u32 %v4202, 4294901760
      %4210 = vmatpush1.msra.mxu0 %v4209
      %4211 = vmatprep.subr.mxu0 0.0
      %4212 = vmatpush1.msra.mxu0 0.0
      %4213 = vmatprep.subr.mxu0 0.0
      %4214 = vmatpush1.msra.mxu0 0.0
      %4215 = vmatprep.subr.mxu0 0.0
      %4216 = vmatpush1.msra.mxu0 0.0
      %4217 = vmatprep.subr.mxu0 0.0
      %4218 = vmatpush1.msra.mxu0 0.0
      %4219 = vmatprep.subr.mxu0 0.0
      %4220 = vmatpush1.msra.mxu0 0.0
      %4221 = vmatprep.subr.mxu0 0.0
      %4222 = vmatpush1.msra.mxu0 0.0
      %4223 = vmatprep.subr.mxu0 0.0
      %4224 = vmatpush1.msra.mxu0 0.0
      %4225 = vmatprep.subr.mxu0 0.0
      %4226 = vmatpush1.msra.mxu0 0.0
      %4227 = vmatprep.subr.mxu0 0.0
      %4228 = vmatpush1.msra.mxu0 0.0
      %4229 = vmatprep.subr.mxu0 0.0
      %4230 = vmatpush1.msra.mxu0 0.0
      %4231 = vmatprep.subr.mxu0 0.0
      %4232 = vmatpush1.msra.mxu0 0.0
      %4233 = vmatprep.subr.mxu0 0.0
      %4234 = vmatpush1.msra.mxu0 0.0
      %4235 = vmatprep.subr.mxu0 0.0
      %4236 = vmatpush1.msra.mxu0 0.0
      %4237 = vmatprep.subr.mxu0 0.0
      %4238 = vmatpush1.msra.mxu0 0.0
      %4239 = vmatprep.subr.mxu0 0.0
      %4240 = vmatpush1.msra.mxu0 0.0
      %4241 = vmatprep.subr.mxu0 0.0
      %4242 = vmatpush1.msra.mxu0 0.0
      %4243 = vmatprep.subr.mxu0 0.0
      %4244 = vmatpush1.msra.mxu0 0.0
      %4245 = vmatprep.subr.mxu0 0.0
      %4246 = vmatpush1.msra.mxu0 0.0
      %4247 = vmatprep.subr.mxu0 0.0
      %4248 = vmatpush1.msra.mxu0 0.0
      %4249 = vmatprep.subr.mxu0 0.0
      %4250 = vmatpush1.msra.mxu0 0.0
      %4251 = vmatprep.subr.mxu0 0.0
      %4252 = vmatpush1.msra.mxu0 0.0
      %4253 = vmatprep.subr.mxu0 0.0
      %4254 = vmatpush1.msra.mxu0 0.0
      %4255 = vmatprep.subr.mxu0 0.0
      %4256 = vmatpush1.msra.mxu0 0.0
      %4257 = vmatprep.subr.mxu0 0.0
      %4258 = vmatpush1.msra.mxu0 0.0
      %4259 = vmatprep.subr.mxu0 0.0
      %4260 = vmatpush1.msra.mxu0 0.0
      %4261 = vmatprep.subr.mxu0 0.0
      %4262 = vmatpush1.msra.mxu0 0.0
      %4263 = vmatprep.subr.mxu0 0.0
      %4264 = vmatpush1.msra.mxu0 0.0
      %4265 = vmatprep.subr.mxu0 0.0
      %4266 = vmatpush1.msra.mxu0 0.0
      %4267 = vmatprep.subr.mxu0 0.0
      %4268 = vmatpush1.msra.mxu0 0.0
      %4269 = vmatprep.subr.mxu0 0.0
      %4270 = vmatpush1.msra.mxu0 0.0
      %4271 = vmatprep.subr.mxu0 0.0
      %4272 = vmatpush1.msra.mxu0 0.0
      %4273 = vmatprep.mubr.f32.mxu0 0.0
      %v4274 = vand.u32 %v4199, 4294901760
      %v4275 = vsub.f32 %v4199, %v4274
      %v4276 = vand.u32 %v4275, 4294901760
      %v4277 = vsub.f32 %v4275, %v4276
      %v4278 = vand.u32 %v4277, 4294901760
      %4279 = vmatmul.mubr.f32.gmra.mrb[0].mxu0 %v4278
      %v4280 = vpop.f32.mrb[0].mxu0
      %v4281 = vadd.f32 0.0, %v4280
      %v4282 = vpop.f32.mrb[0].mxu0
      %v4283 = vadd.f32 0.0, %v4282
      %4284 = vdwg.mxu0
      %v4285 = vand.u32 %v4205, 4294901760
      %v4286 = vsub.f32 %v4205, %v4285
      %v4287 = vand.u32 %v4286, 4294901760
      %v4288 = vsub.f32 %v4286, %v4287
      %v4289 = vand.u32 %v4288, 4294901760
      %4290 = vmatprep.subr.mxu0 %v4289
      %v4291 = vand.u32 %v4202, 4294901760
      %v4292 = vsub.f32 %v4202, %v4291
      %v4293 = vand.u32 %v4292, 4294901760
      %v4294 = vsub.f32 %v4292, %v4293
      %v4295 = vand.u32 %v4294, 4294901760
      %4296 = vmatpush1.msra.mxu0 %v4295
      %4297 = vmatprep.subr.mxu0 0.0
      %4298 = vmatpush1.msra.mxu0 0.0
      %4299 = vmatprep.subr.mxu0 0.0
      %4300 = vmatpush1.msra.mxu0 0.0
      %4301 = vmatprep.subr.mxu0 0.0
      %4302 = vmatpush1.msra.mxu0 0.0
      %4303 = vmatprep.subr.mxu0 0.0
      %4304 = vmatpush1.msra.mxu0 0.0
      %4305 = vmatprep.subr.mxu0 0.0
      %4306 = vmatpush1.msra.mxu0 0.0
      %4307 = vmatprep.subr.mxu0 0.0
      %4308 = vmatpush1.msra.mxu0 0.0
      %4309 = vmatprep.subr.mxu0 0.0
      %4310 = vmatpush1.msra.mxu0 0.0
      %4311 = vmatprep.subr.mxu0 0.0
      %4312 = vmatpush1.msra.mxu0 0.0
      %4313 = vmatprep.subr.mxu0 0.0
      %4314 = vmatpush1.msra.mxu0 0.0
      %4315 = vmatprep.subr.mxu0 0.0
      %4316 = vmatpush1.msra.mxu0 0.0
      %4317 = vmatprep.subr.mxu0 0.0
      %4318 = vmatpush1.msra.mxu0 0.0
      %4319 = vmatprep.subr.mxu0 0.0
      %4320 = vmatpush1.msra.mxu0 0.0
      %4321 = vmatprep.subr.mxu0 0.0
      %4322 = vmatpush1.msra.mxu0 0.0
      %4323 = vmatprep.subr.mxu0 0.0
      %4324 = vmatpush1.msra.mxu0 0.0
      %4325 = vmatprep.subr.mxu0 0.0
      %4326 = vmatpush1.msra.mxu0 0.0
      %4327 = vmatprep.subr.mxu0 0.0
      %4328 = vmatpush1.msra.mxu0 0.0
      %4329 = vmatprep.subr.mxu0 0.0
      %4330 = vmatpush1.msra.mxu0 0.0
      %4331 = vmatprep.subr.mxu0 0.0
      %4332 = vmatpush1.msra.mxu0 0.0
      %4333 = vmatprep.subr.mxu0 0.0
      %4334 = vmatpush1.msra.mxu0 0.0
      %4335 = vmatprep.subr.mxu0 0.0
      %4336 = vmatpush1.msra.mxu0 0.0
      %4337 = vmatprep.subr.mxu0 0.0
      %4338 = vmatpush1.msra.mxu0 0.0
      %4339 = vmatprep.subr.mxu0 0.0
      %4340 = vmatpush1.msra.mxu0 0.0
      %4341 = vmatprep.subr.mxu0 0.0
      %4342 = vmatpush1.msra.mxu0 0.0
      %4343 = vmatprep.subr.mxu0 0.0
      %4344 = vmatpush1.msra.mxu0 0.0
      %4345 = vmatprep.subr.mxu0 0.0
      %4346 = vmatpush1.msra.mxu0 0.0
      %4347 = vmatprep.subr.mxu0 0.0
      %4348 = vmatpush1.msra.mxu0 0.0
      %4349 = vmatprep.subr.mxu0 0.0
      %4350 = vmatpush1.msra.mxu0 0.0
      %4351 = vmatprep.subr.mxu0 0.0
      %4352 = vmatpush1.msra.mxu0 0.0
      %4353 = vmatprep.subr.mxu0 0.0
      %4354 = vmatpush1.msra.mxu0 0.0
      %4355 = vmatprep.subr.mxu0 0.0
      %4356 = vmatpush1.msra.mxu0 0.0
      %4357 = vmatprep.subr.mxu0 0.0
      %4358 = vmatpush1.msra.mxu0 0.0
      %4359 = vmatprep.mubr.f32.mxu0 0.0
      %v4360 = vand.u32 %v4199, 4294901760
      %4361 = vmatmul.mubr.f32.gmra.mrb[0].mxu0 %v4360
      %v4362 = vpop.f32.mrb[0].mxu0
      %v4363 = vadd.f32 %v4281, %v4362
      %v4364 = vpop.f32.mrb[0].mxu0
      %v4365 = vadd.f32 %v4283, %v4364
      %4366 = vdwg.mxu0
      %v4367 = vand.u32 %v4205, 4294901760
      %v4368 = vsub.f32 %v4205, %v4367
      %4369 = vmatprep.subr.mxu0 %v4368
      %v4370 = vand.u32 %v4202, 4294901760
      %v4371 = vsub.f32 %v4202, %v4370
      %4372 = vmatpush1.msra.mxu0 %v4371
      %4373 = vmatprep.subr.mxu0 0.0
      %4374 = vmatpush1.msra.mxu0 0.0
      %4375 = vmatprep.subr.mxu0 0.0
      %4376 = vmatpush1.msra.mxu0 0.0
      %4377 = vmatprep.subr.mxu0 0.0
      %4378 = vmatpush1.msra.mxu0 0.0
      %4379 = vmatprep.subr.mxu0 0.0
      %4380 = vmatpush1.msra.mxu0 0.0
      %4381 = vmatprep.subr.mxu0 0.0
      %4382 = vmatpush1.msra.mxu0 0.0
      %4383 = vmatprep.subr.mxu0 0.0
      %4384 = vmatpush1.msra.mxu0 0.0
      %4385 = vmatprep.subr.mxu0 0.0
      %4386 = vmatpush1.msra.mxu0 0.0
      %4387 = vmatprep.subr.mxu0 0.0
      %4388 = vmatpush1.msra.mxu0 0.0
      %4389 = vmatprep.subr.mxu0 0.0
      %4390 = vmatpush1.msra.mxu0 0.0
      %4391 = vmatprep.subr.mxu0 0.0
      %4392 = vmatpush1.msra.mxu0 0.0
      %4393 = vmatprep.subr.mxu0 0.0
      %4394 = vmatpush1.msra.mxu0 0.0
      %4395 = vmatprep.subr.mxu0 0.0
      %4396 = vmatpush1.msra.mxu0 0.0
      %4397 = vmatprep.subr.mxu0 0.0
      %4398 = vmatpush1.msra.mxu0 0.0
      %4399 = vmatprep.subr.mxu0 0.0
      %4400 = vmatpush1.msra.mxu0 0.0
      %4401 = vmatprep.subr.mxu0 0.0
      %4402 = vmatpush1.msra.mxu0 0.0
      %4403 = vmatprep.subr.mxu0 0.0
      %4404 = vmatpush1.msra.mxu0 0.0
      %4405 = vmatprep.subr.mxu0 0.0
      %4406 = vmatpush1.msra.mxu0 0.0
      %4407 = vmatprep.subr.mxu0 0.0
      %4408 = vmatpush1.msra.mxu0 0.0
      %4409 = vmatprep.subr.mxu0 0.0
      %4410 = vmatpush1.msra.mxu0 0.0
      %4411 = vmatprep.subr.mxu0 0.0
      %4412 = vmatpush1.msra.mxu0 0.0
      %4413 = vmatprep.subr.mxu0 0.0
      %4414 = vmatpush1.msra.mxu0 0.0
      %4415 = vmatprep.subr.mxu0 0.0
      %4416 = vmatpush1.msra.mxu0 0.0
      %4417 = vmatprep.subr.mxu0 0.0
      %4418 = vmatpush1.msra.mxu0 0.0
      %4419 = vmatprep.subr.mxu0 0.0
      %4420 = vmatpush1.msra.mxu0 0.0
      %4421 = vmatprep.subr.mxu0 0.0
      %4422 = vmatpush1.msra.mxu0 0.0
      %4423 = vmatprep.subr.mxu0 0.0
      %4424 = vmatpush1.msra.mxu0 0.0
      %4425 = vmatprep.subr.mxu0 0.0
      %4426 = vmatpush1.msra.mxu0 0.0
      %4427 = vmatprep.subr.mxu0 0.0
      %4428 = vmatpush1.msra.mxu0 0.0
      %4429 = vmatprep.subr.mxu0 0.0
      %4430 = vmatpush1.msra.mxu0 0.0
      %4431 = vmatprep.subr.mxu0 0.0
      %4432 = vmatpush1.msra.mxu0 0.0
      %4433 = vmatprep.subr.mxu0 0.0
      %4434 = vmatpush1.msra.mxu0 0.0
      %4435 = vmatprep.mubr.f32.mxu0 0.0
      %v4436 = vand.u32 %v4199, 4294901760
      %v4437 = vsub.f32 %v4199, %v4436
      %4438 = vmatmul.mubr.f32.gmra.mrb[0].mxu0 %v4437
      %v4439 = vpop.f32.mrb[0].mxu0
      %v4440 = vadd.f32 %v4363, %v4439
      %v4441 = vpop.f32.mrb[0].mxu0
      %v4442 = vadd.f32 %v4365, %v4441
      %4443 = vdwg.mxu0
      %v4444 = vand.u32 %v4205, 4294901760
      %4445 = vmatprep.subr.mxu0 %v4444
      %v4446 = vand.u32 %v4202, 4294901760
      %4447 = vmatpush1.msra.mxu0 %v4446
      %4448 = vmatprep.subr.mxu0 0.0
      %4449 = vmatpush1.msra.mxu0 0.0
      %4450 = vmatprep.subr.mxu0 0.0
      %4451 = vmatpush1.msra.mxu0 0.0
      %4452 = vmatprep.subr.mxu0 0.0
      %4453 = vmatpush1.msra.mxu0 0.0
      %4454 = vmatprep.subr.mxu0 0.0
      %4455 = vmatpush1.msra.mxu0 0.0
      %4456 = vmatprep.subr.mxu0 0.0
      %4457 = vmatpush1.msra.mxu0 0.0
      %4458 = vmatprep.subr.mxu0 0.0
      %4459 = vmatpush1.msra.mxu0 0.0
      %4460 = vmatprep.subr.mxu0 0.0
      %4461 = vmatpush1.msra.mxu0 0.0
      %4462 = vmatprep.subr.mxu0 0.0
      %4463 = vmatpush1.msra.mxu0 0.0
      %4464 = vmatprep.subr.mxu0 0.0
      %4465 = vmatpush1.msra.mxu0 0.0
      %4466 = vmatprep.subr.mxu0 0.0
      %4467 = vmatpush1.msra.mxu0 0.0
      %4468 = vmatprep.subr.mxu0 0.0
      %4469 = vmatpush1.msra.mxu0 0.0
      %4470 = vmatprep.subr.mxu0 0.0
      %4471 = vmatpush1.msra.mxu0 0.0
      %4472 = vmatprep.subr.mxu0 0.0
      %4473 = vmatpush1.msra.mxu0 0.0
      %4474 = vmatprep.subr.mxu0 0.0
      %4475 = vmatpush1.msra.mxu0 0.0
      %4476 = vmatprep.subr.mxu0 0.0
      %4477 = vmatpush1.msra.mxu0 0.0
      %4478 = vmatprep.subr.mxu0 0.0
      %4479 = vmatpush1.msra.mxu0 0.0
      %4480 = vmatprep.subr.mxu0 0.0
      %4481 = vmatpush1.msra.mxu0 0.0
      %4482 = vmatprep.subr.mxu0 0.0
      %4483 = vmatpush1.msra.mxu0 0.0
      %4484 = vmatprep.subr.mxu0 0.0
      %4485 = vmatpush1.msra.mxu0 0.0
      %4486 = vmatprep.subr.mxu0 0.0
      %4487 = vmatpush1.msra.mxu0 0.0
      %4488 = vmatprep.subr.mxu0 0.0
      %4489 = vmatpush1.msra.mxu0 0.0
      %4490 = vmatprep.subr.mxu0 0.0
      %4491 = vmatpush1.msra.mxu0 0.0
      %4492 = vmatprep.subr.mxu0 0.0
      %4493 = vmatpush1.msra.mxu0 0.0
      %4494 = vmatprep.subr.mxu0 0.0
      %4495 = vmatpush1.msra.mxu0 0.0
      %4496 = vmatprep.subr.mxu0 0.0
      %4497 = vmatpush1.msra.mxu0 0.0
      %4498 = vmatprep.subr.mxu0 0.0
      %4499 = vmatpush1.msra.mxu0 0.0
      %4500 = vmatprep.subr.mxu0 0.0
      %4501 = vmatpush1.msra.mxu0 0.0
      %4502 = vmatprep.subr.mxu0 0.0
      %4503 = vmatpush1.msra.mxu0 0.0
      %4504 = vmatprep.subr.mxu0 0.0
      %4505 = vmatpush1.msra.mxu0 0.0
      %4506 = vmatprep.subr.mxu0 0.0
      %4507 = vmatpush1.msra.mxu0 0.0
      %4508 = vmatprep.subr.mxu0 0.0
      %4509 = vmatpush1.msra.mxu0 0.0
      %4510 = vmatprep.mubr.f32.mxu0 0.0
      %v4511 = vand.u32 %v4199, 4294901760
      %v4512 = vsub.f32 %v4199, %v4511
      %v4513 = vand.u32 %v4512, 4294901760
      %4514 = vmatmul.mubr.f32.gmra.mrb[0].mxu0 %v4513
      %v4515 = vpop.f32.mrb[0].mxu0
      %v4516 = vadd.f32 %v4440, %v4515
      %v4517 = vpop.f32.mrb[0].mxu0
      %v4518 = vadd.f32 %v4442, %v4517
      %4519 = vdwg.mxu0
      %v4520 = vand.u32 %v4205, 4294901760
      %v4521 = vsub.f32 %v4205, %v4520
      %v4522 = vand.u32 %v4521, 4294901760
      %4523 = vmatprep.subr.mxu0 %v4522
      %v4524 = vand.u32 %v4202, 4294901760
      %v4525 = vsub.f32 %v4202, %v4524
      %v4526 = vand.u32 %v4525, 4294901760
      %4527 = vmatpush1.msra.mxu0 %v4526
      %4528 = vmatprep.subr.mxu0 0.0
      %4529 = vmatpush1.msra.mxu0 0.0
      %4530 = vmatprep.subr.mxu0 0.0
      %4531 = vmatpush1.msra.mxu0 0.0
      %4532 = vmatprep.subr.mxu0 0.0
      %4533 = vmatpush1.msra.mxu0 0.0
      %4534 = vmatprep.subr.mxu0 0.0
      %4535 = vmatpush1.msra.mxu0 0.0
      %4536 = vmatprep.subr.mxu0 0.0
      %4537 = vmatpush1.msra.mxu0 0.0
      %4538 = vmatprep.subr.mxu0 0.0
      %4539 = vmatpush1.msra.mxu0 0.0
      %4540 = vmatprep.subr.mxu0 0.0
      %4541 = vmatpush1.msra.mxu0 0.0
      %4542 = vmatprep.subr.mxu0 0.0
      %4543 = vmatpush1.msra.mxu0 0.0
      %4544 = vmatprep.subr.mxu0 0.0
      %4545 = vmatpush1.msra.mxu0 0.0
      %4546 = vmatprep.subr.mxu0 0.0
      %4547 = vmatpush1.msra.mxu0 0.0
      %4548 = vmatprep.subr.mxu0 0.0
      %4549 = vmatpush1.msra.mxu0 0.0
      %4550 = vmatprep.subr.mxu0 0.0
      %4551 = vmatpush1.msra.mxu0 0.0
      %4552 = vmatprep.subr.mxu0 0.0
      %4553 = vmatpush1.msra.mxu0 0.0
      %4554 = vmatprep.subr.mxu0 0.0
      %4555 = vmatpush1.msra.mxu0 0.0
      %4556 = vmatprep.subr.mxu0 0.0
      %4557 = vmatpush1.msra.mxu0 0.0
      %4558 = vmatprep.subr.mxu0 0.0
      %4559 = vmatpush1.msra.mxu0 0.0
      %4560 = vmatprep.subr.mxu0 0.0
      %4561 = vmatpush1.msra.mxu0 0.0
      %4562 = vmatprep.subr.mxu0 0.0
      %4563 = vmatpush1.msra.mxu0 0.0
      %4564 = vmatprep.subr.mxu0 0.0
      %4565 = vmatpush1.msra.mxu0 0.0
      %4566 = vmatprep.subr.mxu0 0.0
      %4567 = vmatpush1.msra.mxu0 0.0
      %4568 = vmatprep.subr.mxu0 0.0
      %4569 = vmatpush1.msra.mxu0 0.0
      %4570 = vmatprep.subr.mxu0 0.0
      %4571 = vmatpush1.msra.mxu0 0.0
      %4572 = vmatprep.subr.mxu0 0.0
      %4573 = vmatpush1.msra.mxu0 0.0
      %4574 = vmatprep.subr.mxu0 0.0
      %4575 = vmatpush1.msra.mxu0 0.0
      %4576 = vmatprep.subr.mxu0 0.0
      %4577 = vmatpush1.msra.mxu0 0.0
      %4578 = vmatprep.subr.mxu0 0.0
      %4579 = vmatpush1.msra.mxu0 0.0
      %4580 = vmatprep.subr.mxu0 0.0
      %4581 = vmatpush1.msra.mxu0 0.0
      %4582 = vmatprep.subr.mxu0 0.0
      %4583 = vmatpush1.msra.mxu0 0.0
      %4584 = vmatprep.subr.mxu0 0.0
      %4585 = vmatpush1.msra.mxu0 0.0
      %4586 = vmatprep.subr.mxu0 0.0
      %4587 = vmatpush1.msra.mxu0 0.0
      %4588 = vmatprep.subr.mxu0 0.0
      %4589 = vmatpush1.msra.mxu0 0.0
      %4590 = vmatprep.mubr.f32.mxu0 0.0
      %v4591 = vand.u32 %v4199, 4294901760
      %4592 = vmatmul.mubr.f32.gmra.mrb[0].mxu0 %v4591
      %v4593 = vpop.f32.mrb[0].mxu0
      %v4594 = vadd.f32 %v4516, %v4593
      %v4595 = vpop.f32.mrb[0].mxu0
      %v4596 = vadd.f32 %v4518, %v4595
      %4597 = vdwg.mxu0
      %v4598 = vand.u32 %v4205, 4294901760
      %4599 = vmatprep.subr.mxu0 %v4598
      %v4600 = vand.u32 %v4202, 4294901760
      %4601 = vmatpush1.msra.mxu0 %v4600
      %4602 = vmatprep.subr.mxu0 0.0
      %4603 = vmatpush1.msra.mxu0 0.0
      %4604 = vmatprep.subr.mxu0 0.0
      %4605 = vmatpush1.msra.mxu0 0.0
      %4606 = vmatprep.subr.mxu0 0.0
      %4607 = vmatpush1.msra.mxu0 0.0
      %4608 = vmatprep.subr.mxu0 0.0
      %4609 = vmatpush1.msra.mxu0 0.0
      %4610 = vmatprep.subr.mxu0 0.0
      %4611 = vmatpush1.msra.mxu0 0.0
      %4612 = vmatprep.subr.mxu0 0.0
      %4613 = vmatpush1.msra.mxu0 0.0
      %4614 = vmatprep.subr.mxu0 0.0
      %4615 = vmatpush1.msra.mxu0 0.0
      %4616 = vmatprep.subr.mxu0 0.0
      %4617 = vmatpush1.msra.mxu0 0.0
      %4618 = vmatprep.subr.mxu0 0.0
      %4619 = vmatpush1.msra.mxu0 0.0
      %4620 = vmatprep.subr.mxu0 0.0
      %4621 = vmatpush1.msra.mxu0 0.0
      %4622 = vmatprep.subr.mxu0 0.0
      %4623 = vmatpush1.msra.mxu0 0.0
      %4624 = vmatprep.subr.mxu0 0.0
      %4625 = vmatpush1.msra.mxu0 0.0
      %4626 = vmatprep.subr.mxu0 0.0
      %4627 = vmatpush1.msra.mxu0 0.0
      %4628 = vmatprep.subr.mxu0 0.0
      %4629 = vmatpush1.msra.mxu0 0.0
      %4630 = vmatprep.subr.mxu0 0.0
      %4631 = vmatpush1.msra.mxu0 0.0
      %4632 = vmatprep.subr.mxu0 0.0
      %4633 = vmatpush1.msra.mxu0 0.0
      %4634 = vmatprep.subr.mxu0 0.0
      %4635 = vmatpush1.msra.mxu0 0.0
      %4636 = vmatprep.subr.mxu0 0.0
      %4637 = vmatpush1.msra.mxu0 0.0
      %4638 = vmatprep.subr.mxu0 0.0
      %4639 = vmatpush1.msra.mxu0 0.0
      %4640 = vmatprep.subr.mxu0 0.0
      %4641 = vmatpush1.msra.mxu0 0.0
      %4642 = vmatprep.subr.mxu0 0.0
      %4643 = vmatpush1.msra.mxu0 0.0
      %4644 = vmatprep.subr.mxu0 0.0
      %4645 = vmatpush1.msra.mxu0 0.0
      %4646 = vmatprep.subr.mxu0 0.0
      %4647 = vmatpush1.msra.mxu0 0.0
      %4648 = vmatprep.subr.mxu0 0.0
      %4649 = vmatpush1.msra.mxu0 0.0
      %4650 = vmatprep.subr.mxu0 0.0
      %4651 = vmatpush1.msra.mxu0 0.0
      %4652 = vmatprep.subr.mxu0 0.0
      %4653 = vmatpush1.msra.mxu0 0.0
      %4654 = vmatprep.subr.mxu0 0.0
      %4655 = vmatpush1.msra.mxu0 0.0
      %4656 = vmatprep.subr.mxu0 0.0
      %4657 = vmatpush1.msra.mxu0 0.0
      %4658 = vmatprep.subr.mxu0 0.0
      %4659 = vmatpush1.msra.mxu0 0.0
      %4660 = vmatprep.subr.mxu0 0.0
      %4661 = vmatpush1.msra.mxu0 0.0
      %4662 = vmatprep.subr.mxu0 0.0
      %4663 = vmatpush1.msra.mxu0 0.0
      %4664 = vmatprep.mubr.f32.mxu0 0.0
      %v4665 = vand.u32 %v4199, 4294901760
      %4666 = vmatmul.mubr.f32.gmra.mrb[0].mxu0 %v4665
      %v4667 = vpop.f32.mrb[0].mxu0
      %v4668 = vadd.f32 %v4594, %v4667
      %v4669 = vpop.f32.mrb[0].mxu0
      %v4670 = vadd.f32 %v4596, %v4669
      %4671 = vdwg.mxu0
      %v4672 = vadd.f32 %v4186, %v4668
      %v4673 = vadd.f32 %v4187, %v4670
      %v4674 = vld [vmem:[%s3] sm:$0x3]
      %4676 = vset.pattern.permute.xlu0 0
      %4677 = vperm.xlu0 %4676, %v4674
      %v4678 = vpop.permute.xlu0 %4677
      %v4680 = vadd.f32 %v4672, %v4678
      %v4681 = vadd.f32 %v4673, %v4678
      %v4682 = vmax.f32 %v4680, 0.0
      %v4683 = vmax.f32 %v4681, 0.0
      %4684 = vrot.lane.b32.xlu0 %v4682, 16
      %v4685 = vpop.permute.xlu0 %4684
      %4686 = vrot.lane.b32.xlu0 %v4683, 16
      %v4687 = vpop.permute.xlu0 %4686
      %v4688 = vsel %vm269, %v4685, %v4687
      %v4689 = vsel %vm269, %v4687, %v4685
      %v4690 = vmul.f32 %v4689, %v276
      %v4691 = vmul.f32 %v4688, %v280
      %4692 = vrot.lane.b32.xlu0 %v4690, 1
      %v4693 = vpop.permute.xlu0 %4692
      %4694 = vrot.lane.b32.xlu0 %v4691, 1
      %v4695 = vpop.permute.xlu0 %4694
      %v4696 = vsel %vm289, %v4693, %v4695
      %v4697 = vsel %vm289, %v4695, %v4693
      %v4698 = vmul.f32 %v4697, %v296
      %v4699 = vmul.f32 %v4696, %v300
      %v4700 = vld [vmem:[%s4] sm:$0x3]
      %4702 = vset.pattern.permute.xlu0 0
      %4703 = vperm.xlu0 %4702, %v4700
      %v4704 = vpop.permute.xlu0 %4703
      %v4706 = vmul.f32 %v4704, %v4698
      %v4707 = vmul.f32 %v4704, %v4699
      %v4708 = vadd.f32 %v4706, 0.0
      %v4709 = vadd.f32 %v4707, 0.0
      %4710 = vset.pattern.permute.xlu0 1
      %4711 = vperm.xlu0 %4710, %v4700
      %v4712 = vpop.permute.xlu0 %4711
      %v4714 = vmul.f32 %v4712, %v4690
      %v4715 = vmul.f32 %v4712, %v4691
      %v4716 = vadd.f32 %v4708, %v4714
      %v4717 = vadd.f32 %v4709, %v4715
      %4718 = vrot.lane.b32.xlu0 %v4690, 127
      %v4719 = vpop.permute.xlu0 %4718
      %4720 = vrot.lane.b32.xlu0 %v4691, 127
      %v4721 = vpop.permute.xlu0 %4720
      %v4722 = vsel %vm1262, %v4719, %v4721
      %v4723 = vsel %vm1262, %v4721, %v4719
      %v4724 = vmul.f32 %v4722, %v1269
      %v4725 = vmul.f32 %v4723, %v1273
      %4726 = vset.pattern.permute.xlu0 2
      %4727 = vperm.xlu0 %4726, %v4700
      %v4728 = vpop.permute.xlu0 %4727
      %v4730 = vmul.f32 %v4728, %v4724
      %v4731 = vmul.f32 %v4728, %v4725
      %v4732 = vadd.f32 %v4716, %v4730
      %v4733 = vadd.f32 %v4717, %v4731
      %4734 = vrot.lane.b32.xlu0 %v4682, 1
      %v4735 = vpop.permute.xlu0 %4734
      %4736 = vrot.lane.b32.xlu0 %v4683, 1
      %v4737 = vpop.permute.xlu0 %4736
      %v4738 = vsel %vm289, %v4735, %v4737
      %v4739 = vsel %vm289, %v4737, %v4735
      %v4740 = vmul.f32 %v4739, %v296
      %v4741 = vmul.f32 %v4738, %v300
      %4742 = vset.pattern.permute.xlu0 3
      %4743 = vperm.xlu0 %4742, %v4700
      %v4744 = vpop.permute.xlu0 %4743
      %v4746 = vmul.f32 %v4744, %v4740
      %v4747 = vmul.f32 %v4744, %v4741
      %v4748 = vadd.f32 %v4732, %v4746
      %v4749 = vadd.f32 %v4733, %v4747
      %4750 = vset.pattern.permute.xlu0 4
      %4751 = vperm.xlu0 %4750, %v4700
      %v4752 = vpop.permute.xlu0 %4751
      %v4754 = vmul.f32 %v4752, %v4682
      %v4755 = vmul.f32 %v4752, %v4683
      %v4756 = vadd.f32 %v4748, %v4754
      %v4757 = vadd.f32 %v4749, %v4755
      %4758 = vrot.lane.b32.xlu0 %v4682, 127
      %v4759 = vpop.permute.xlu0 %4758
      %4760 = vrot.lane.b32.xlu0 %v4683, 127
      %v4761 = vpop.permute.xlu0 %4760
      %v4762 = vsel %vm1262, %v4759, %v4761
      %v4763 = vsel %vm1262, %v4761, %v4759
      %v4764 = vmul.f32 %v4762, %v1269
      %v4765 = vmul.f32 %v4763, %v1273
      %4766 = vset.pattern.permute.xlu0 5
      %4767 = vperm.xlu0 %4766, %v4700
      %v4768 = vpop.permute.xlu0 %4767
      %v4770 = vmul.f32 %v4768, %v4764
      %v4771 = vmul.f32 %v4768, %v4765
      %v4772 = vadd.f32 %v4756, %v4770
      %v4773 = vadd.f32 %v4757, %v4771
      %4774 = vrot.lane.b32.xlu0 %v4682, 112
      %v4775 = vpop.permute.xlu0 %4774
      %4776 = vrot.lane.b32.xlu0 %v4683, 112
      %v4777 = vpop.permute.xlu0 %4776
      %v4778 = vsel %vm3208, %v4775, %v4777
      %v4779 = vsel %vm3208, %v4777, %v4775
      %v4780 = vmul.f32 %v4778, %v3215
      %v4781 = vmul.f32 %v4779, %v3219
      %4782 = vrot.lane.b32.xlu0 %v4780, 1
      %v4783 = vpop.permute.xlu0 %4782
      %4784 = vrot.lane.b32.xlu0 %v4781, 1
      %v4785 = vpop.permute.xlu0 %4784
      %v4786 = vsel %vm289, %v4783, %v4785
      %v4787 = vsel %vm289, %v4785, %v4783
      %v4788 = vmul.f32 %v4787, %v296
      %v4789 = vmul.f32 %v4786, %v300
      %4790 = vset.pattern.permute.xlu0 6
      %4791 = vperm.xlu0 %4790, %v4700
      %v4792 = vpop.permute.xlu0 %4791
      %v4794 = vmul.f32 %v4792, %v4788
      %v4795 = vmul.f32 %v4792, %v4789
      %v4796 = vadd.f32 %v4772, %v4794
      %v4797 = vadd.f32 %v4773, %v4795
      %4798 = vset.pattern.permute.xlu0 7
      %4799 = vperm.xlu0 %4798, %v4700
      %v4800 = vpop.permute.xlu0 %4799
      %v4802 = vmul.f32 %v4800, %v4780
      %v4803 = vmul.f32 %v4800, %v4781
      %v4804 = vadd.f32 %v4796, %v4802
      %v4805 = vadd.f32 %v4797, %v4803
      %4806 = vrot.lane.b32.xlu0 %v4780, 127
      %v4807 = vpop.permute.xlu0 %4806
      %4808 = vrot.lane.b32.xlu0 %v4781, 127
      %v4809 = vpop.permute.xlu0 %4808
      %v4810 = vsel %vm1262, %v4807, %v4809
      %v4811 = vsel %vm1262, %v4809, %v4807
      %v4812 = vmul.f32 %v4810, %v1269
      %v4813 = vmul.f32 %v4811, %v1273
      %4814 = vset.pattern.permute.xlu0 8
      %4815 = vperm.xlu0 %4814, %v4700
      %v4816 = vpop.permute.xlu0 %4815
      %v4818 = vmul.f32 %v4816, %v4812
      %v4819 = vmul.f32 %v4816, %v4813
      %v4820 = vadd.f32 %v4804, %v4818
      %v4821 = vadd.f32 %v4805, %v4819
      %vm4822 = vcmask 1041408
      %v4823 = vsel %vm4822, %v4820, 0.0
      %v4824 = vrot.slane %v4823, 4
      %v4825 = vadd.f32 %v4823, %v4824
      %v4826 = vrot.slane %v4825, 2
      %v4827 = vadd.f32 %v4825, %v4826
      %v4828 = vrot.slane %v4827, 1
      %v4829 = vadd.f32 %v4827, %v4828
      %v4830 = vsel %vm4822, %v4821, 0.0
      %v4831 = vrot.slane %v4830, 4
      %v4832 = vadd.f32 %v4830, %v4831
      %v4833 = vrot.slane %v4832, 2
      %v4834 = vadd.f32 %v4832, %v4833
      %v4835 = vrot.slane %v4834, 1
      %v4836 = vadd.f32 %v4834, %v4835
      %v4837 = vld [vmem:[#allocation2] sm:$0x1]
      %4839 = vset.pattern.permute.xlu0 0
      %4840 = vperm.xlu0 %4839, %v4837
      %v4841 = vpop.permute.xlu0 %4840
      %v4843 = vlaneseq
      %v4844 = vshrl.u32 %v4843, 7
      %v4845 = vsub.s32 0, %v4844
      %v4846 = vrot.slane %v4841, %v4845
      %v4847 = vadd.f32 %v4829, %v4846
      %v4848 = vadd.f32 %v4836, %v4846
      %v4849 = vxor.u32 %v4847, 2147483648
      %v4850 = vxor.u32 %v4848, 2147483648
      %v4851 = vmul.f32 %v4849, 1.442695
      %v4852 = vpow.pop %v4851
      %v4853 = vmul.f32 %v4850, 1.442695
      %v4854 = vpow.pop %v4853
      %v4855 = vadd.f32 %v4852, 1.0
      %v4856 = vadd.f32 %v4854, 1.0
      %v4857 = vrcp.pop %v4855
      %v4858 = vmul.f32 1.0, %v4857
      %v4859 = vrcp.pop %v4856
      %v4860 = vmul.f32 1.0, %v4859
      %v4863 = vcombine.low %v4858, %v4860
      %v4865 = vunpack.c.l.s4 1966171168
      %v4866 = vunpack.c.0.s8 %v4865
      %v4867 = vlaneseq
      %v4868 = vshrl.u32 %v4867, 7
      %v4869 = vsub.s32 %v4866, %v4868
      %v4870 = vrot.slane %v4863, %v4869
      %v4872 = vunpack.c.l.s4 1966171168
      %v4873 = vunpack.c.0.s8 %v4872
      %v4874 = vlaneseq
      %v4875 = vshrl.u32 %v4874, 7
      %v4876 = vsub.s32 %v4873, %v4875
      %v4877 = vrot.slane %v4870, %v4876
      %v4879 = vlaneseq
      %vm4880 = vcmp.ge.s32.totalorder %v4879, 0
      %vm4881 = vcmp.lt.s32.totalorder %v4879, 256
      %vm4882 = vmand %vm4880, %vm4881
      %4883 = vst.msk [vmem:[%s251] sm:$0x3] %vm4882, %v4877
      %p4884 = scmp.lt.s32.totalorder %s19, 1
      %s4885 = scalar_select %p4884, %s19, 1
      %s4886 = smul.addr %s4885, 2
      %s4887 = scalar_lea.vmem %s6, %s4886
      // Predicated region
      $region45: #{pixel_attention.1} parent=43 // pred_check
        %p4888 = pneg %p168
      $region46: #{pixel_attention.1} parent=43 // pred_check_branch
        %4890 = sbr.rel (%p4888) target = $region48
      $region47: #{pixel_attention.1} parent=43 // pred_region
        _
      $region48: #{pixel_attention.1} parent=43 // pred_fallthru
        _
    $region44: #{pixel_attention.1} parent=5 // pred_fallthru
      _
    %p4891 = scmp.le.s32.totalorder 2, %s14
    // Predicated region
    $region49: #{pixel_attention.1} parent=5 // pred_check
      %p4892 = pneg %p4891
    $region50: #{pixel_attention.1} parent=5 // pred_check_branch
      %4894 = sbr.rel (%p4892) target = $region52
    $region51: #{pixel_attention.1} parent=5 // pred_region
      %s4895 = ssub.s32 %s14, 2
      // Predicated region
      $region53: #{pixel_attention.1} parent=51 // pred_check
        %p4896 = pneg %p174
      $region54: #{pixel_attention.1} parent=51 // pred_check_branch
        %4898 = sbr.rel (%p4896) target = $region56
      $region55: #{pixel_attention.1} parent=51 // pred_region
        %p4899 = scmp.lt.s32.totalorder %s20, 1
        %s4900 = scalar_select %p4899, %s20, 1
        %s4901 = smul.addr %s4900, 2
        %s4902 = scalar_lea.vmem %s6, %s4901
      $region56: #{pixel_attention.1} parent=51 // pred_fallthru
        _
    $region52: #{pixel_attention.1} parent=5 // pred_fallthru
      _
  $region6: #{pixel_attention.1} parent=0 // loop_footer
    %s18 = sadd.s32 1, %s14
  $region7: #{pixel_attention.1} parent=0 // loop_footer_branch
    %13 = sbr.rel target = $region3
  $region8: #{pixel_attention.1} parent=0 // loop_exit
    _

</llo_original>
